<compile_context>
chip_gen: v7x
topology: tpu7x:2x2x1
jax: 0.10.0
libtpu: 0.0.40
codegen_flags: <defaults>
</compile_context>

<pallas_src>
import jax
import jax.numpy as jnp
from jax.experimental import pallas as pl
from jax.experimental.pallas import tpu as pltpu

EPS = 1e-5


def fused_add_relu_conv1x1_bn_kernel(x1_ref, x2_ref, w_ref, gb_ref, out_ref):
    # x1_ref, x2_ref : (Cin, M)   full activations, M = N*H*W (resident across grid)
    # w_ref          : (Bc, Cin)  block of 1x1 conv weight rows (output channels)
    # gb_ref         : (Bc, 2)    packed [gamma, beta] per output channel
    # out_ref        : (Bc, M)
    z = jnp.maximum(x1_ref[...] + x2_ref[...], 0.0)                    # add + ReLU (VPU)
    y = jnp.dot(w_ref[...], z, preferred_element_type=jnp.float32)     # 1x1 conv on MXU: (Bc, M)

    # BatchNorm2d training-mode statistics per channel (= per row), mean-shifted
    # (two-pass) variance for numerical robustness.  Biased variance matches
    # PyTorch's normalization statistic.
    inv_m = 1.0 / y.shape[-1]
    mean = jnp.sum(y, axis=-1, keepdims=True) * inv_m                  # (Bc, 1)
    centered = y - mean                                                # (Bc, M)
    var = jnp.sum(centered * centered, axis=-1, keepdims=True) * inv_m # (Bc, 1)

    gamma = gb_ref[:, 0:1]                                             # (Bc, 1)
    beta = gb_ref[:, 1:2]                                              # (Bc, 1)
    s = gamma * jax.lax.rsqrt(var + EPS)                               # (Bc, 1)
    out_ref[...] = centered * s + beta                                 # one FMA epilogue


def _default_block_cout(cout):
    """Full-Cout block (grid=(1,)) on single-TC chips; 2-way row split on v7x
    so each of its two TensorCores takes half the output channels via the
    'parallel' grid axis."""
    try:
        kind = jax.devices()[0].device_kind.lower()
    except Exception:
        kind = ""
    if "v7" in kind and cout % 16 == 0:
        return cout // 2
    return cout


def fused_module(x149, x157, conv_w, bn_gamma, bn_beta, *, block_cout=None):
    """x149, x157: (N, C, H, W) float32. conv_w: (Cout, Cin, 1, 1). Returns (N, Cout, H, W)."""
    N, C, H, W = x149.shape
    Cout = conv_w.shape[0]
    M = N * H * W

    # NCHW -> (Cin, M). For N == 1 this is a pure reshape (zero data movement).
    if N == 1:
        x1 = x149.reshape(C, M)
        x2 = x157.reshape(C, M)
    else:
        x1 = jnp.transpose(x149, (1, 0, 2, 3)).reshape(C, M)
        x2 = jnp.transpose(x157, (1, 0, 2, 3)).reshape(C, M)

    wmat = conv_w.reshape(Cout, C)                       # (Cout, Cin), used as LHS -> no transpose
    gb = jnp.stack([bn_gamma, bn_beta], axis=-1)         # (Cout, 2) packed, lane-dense-ish single DMA

    # Cout block: must divide Cout and be a multiple of 8 sublanes; else single block.
    bc = block_cout if block_cout is not None else _default_block_cout(Cout)
    if (Cout % bc != 0) or (bc % 8 != 0):
        bc = Cout
    grid = (Cout // bc,)

    bytes_accessed = (2 * C * M + Cout * C + Cout * 2 + Cout * M) * 4
    cost = pl.CostEstimate(flops=2 * Cout * C * M,
                           transcendentals=0,
                           bytes_accessed=bytes_accessed)

    def run(single_buffer_residents):
        # x1/x2 never change block index; when the grid has >1 step they only
        # need a single VMEM buffer (no pipelining benefit from a second).
        if single_buffer_residents:
            resident_kwargs = dict(pipeline_mode=pl.Buffered(1))
        else:
            resident_kwargs = {}
        in_specs = [
            pl.BlockSpec((C, M), lambda i: (0, 0), **resident_kwargs),   # x1 (resident)
            pl.BlockSpec((C, M), lambda i: (0, 0), **resident_kwargs),   # x2 (resident)
            pl.BlockSpec((bc, C), lambda i: (i, 0)),                     # weight row-block
            pl.BlockSpec((bc, 2), lambda i: (i, 0)),                     # packed gamma/beta
        ]
        return pl.pallas_call(
            fused_add_relu_conv1x1_bn_kernel,
            out_shape=jax.ShapeDtypeStruct((Cout, M), jnp.float32),
            grid=grid,
            in_specs=in_specs,
            out_specs=pl.BlockSpec((bc, M), lambda i: (i, 0)),
            compiler_params=pltpu.CompilerParams(
                dimension_semantics=("parallel",),
            ),
            cost_estimate=cost,
        )(x1, x2, wmat, gb)

    if grid[0] > 1:
        try:
            out_flat = run(True)
        except Exception:
            # Fall back to default double-buffering if Buffered(1) is rejected.
            out_flat = run(False)
    else:
        out_flat = run(False)

    # (Cout, M) -> NCHW
    if N == 1:
        return out_flat.reshape(1, Cout, H, W)
    return jnp.transpose(out_flat.reshape(Cout, N, H, W), (1, 0, 2, 3))


def reference(x149, x157, conv_w, bn_gamma, bn_beta):
    z = jnp.maximum(x149 + x157, 0.0)
    y = jnp.einsum("nchw,oc->nohw", z, conv_w.reshape(conv_w.shape[0], conv_w.shape[1]))
    mean = jnp.mean(y, axis=(0, 2, 3), keepdims=True)
    var = jnp.mean((y - mean) ** 2, axis=(0, 2, 3), keepdims=True)
    return (y - mean) * jax.lax.rsqrt(var + EPS) * bn_gamma[None, :, None, None] + \
        bn_beta[None, :, None, None]


if __name__ == "__main__":
    N, C, H, W = 1, 720, 14, 14   # shapes implied by the module (Conv2d(720, 720, 1x1))
    Cout = 720

    key = jax.random.PRNGKey(0)
    k1, k2, k3 = jax.random.split(key, 3)
    x149 = jax.random.normal(k1, (N, C, H, W), dtype=jnp.float32)
    x157 = jax.random.normal(k2, (N, C, H, W), dtype=jnp.float32)

    # Deterministic parameter init (synthetic, mirrors PyTorch shapes/defaults):
    # conv weight ~ kaiming-uniform-ish range; BN gamma=1, beta=0.
    bound = 1.0 / (C ** 0.5)
    conv_w = jax.random.uniform(k3, (Cout, C, 1, 1), dtype=jnp.float32,
                                minval=-bound, maxval=bound)
    bn_gamma = jnp.ones((Cout,), dtype=jnp.float32)
    bn_beta = jnp.zeros((Cout,), dtype=jnp.float32)

    out = fused_module(x149, x157, conv_w, bn_gamma, bn_beta)
    out = jax.block_until_ready(out)

    ref = reference(x149, x157, conv_w, bn_gamma, bn_beta)
    assert out.shape == (N, Cout, H, W)
    assert jnp.allclose(out, ref, atol=2e-4, rtol=2e-4), float(jnp.max(jnp.abs(out - ref)))

    # TODO(synk): running_mean/running_var updates of BatchNorm2d (track_running_stats)
    # are not emitted; only the forward normalization with batch stats is fused.
    print("KERNEL_OK")
</pallas_src>

<mosaic_0001>
module attributes {stable_mosaic.version = 11 : i64} {
  func.func @fused_add_relu_conv1x1_bn_kernel(%arg0: i32, %arg1: memref<720x196xf32, #tpu.memory_space<vmem>>, %arg2: memref<720x196xf32, #tpu.memory_space<vmem>>, %arg3: memref<720x720xf32, #tpu.memory_space<vmem>>, %arg4: memref<720x2xf32, #tpu.memory_space<vmem>>, %arg5: memref<720x196xf32, #tpu.memory_space<vmem>>) attributes {dimension_semantics = [#tpu.dimension_semantics<parallel>], iteration_bounds = array<i64: 1>, scalar_prefetch = 0 : i64, scratch_operands = 0 : i64, tpu.core_type = #tpu.core_type<tc>, window_params = [{pipeline_mode = #tpu.pipeline_mode<synchronous>, transform_indices = @transform_0, window_bounds = array<i64: 720, 196>}, {pipeline_mode = #tpu.pipeline_mode<synchronous>, transform_indices = @transform_1, window_bounds = array<i64: 720, 196>}, {transform_indices = @transform_2, window_bounds = array<i64: 720, 720>}, {transform_indices = @transform_3, window_bounds = array<i64: 720, 2>}, {transform_indices = @transform_4, window_bounds = array<i64: 720, 196>}]} {
    %c0 = arith.constant 0 : index
    %c0_0 = arith.constant 0 : index
    %0 = vector.load %arg1[%c0, %c0_0] : memref<720x196xf32, #tpu.memory_space<vmem>>, vector<720x196xf32>
    %c0_1 = arith.constant 0 : index
    %c0_2 = arith.constant 0 : index
    %1 = vector.load %arg2[%c0_1, %c0_2] : memref<720x196xf32, #tpu.memory_space<vmem>>, vector<720x196xf32>
    %2 = arith.addf %0, %1 : vector<720x196xf32>
    %cst = arith.constant 0.000000e+00 : f32
    %3 = vector.broadcast %cst : f32 to vector<720x196xf32>
    %4 = arith.maximumf %2, %3 : vector<720x196xf32>
    %c0_3 = arith.constant 0 : index
    %c0_4 = arith.constant 0 : index
    %5 = vector.load %arg3[%c0_3, %c0_4] : memref<720x720xf32, #tpu.memory_space<vmem>>, vector<720x720xf32>
    %cst_5 = arith.constant dense<0.000000e+00> : vector<720x196xf32>
    %6 = tpu.matmul %5, %4, %cst_5 {dimension_numbers = #tpu.dot_dimension_numbers<[1], [0], [0], [1], [0, 0, 1, 1], [], []>} : vector<720x720xf32>, vector<720x196xf32>, vector<720x196xf32> -> vector<720x196xf32>
    %cst_6 = arith.constant dense<0.000000e+00> : vector<720xf32>
    %7 = vector.multi_reduction <add>, %6, %cst_6 [1] : vector<720x196xf32> to vector<720xf32>
    %8 = vector.shape_cast %7 : vector<720xf32> to vector<720x1xf32>
    %cst_7 = arith.constant 0.00510204071 : f32
    %9 = vector.broadcast %cst_7 : f32 to vector<720x1xf32>
    %10 = arith.mulf %8, %9 : vector<720x1xf32>
    %11 = vector.broadcast %10 : vector<720x1xf32> to vector<720x196xf32>
    %12 = arith.subf %6, %11 : vector<720x196xf32>
    %13 = arith.mulf %12, %12 : vector<720x196xf32>
    %cst_8 = arith.constant dense<0.000000e+00> : vector<720xf32>
    %14 = vector.multi_reduction <add>, %13, %cst_8 [1] : vector<720x196xf32> to vector<720xf32>
    %15 = vector.shape_cast %14 : vector<720xf32> to vector<720x1xf32>
    %cst_9 = arith.constant 0.00510204071 : f32
    %16 = vector.broadcast %cst_9 : f32 to vector<720x1xf32>
    %17 = arith.mulf %15, %16 : vector<720x1xf32>
    %c0_10 = arith.constant 0 : index
    %c0_11 = arith.constant 0 : index
    %18 = vector.load %arg4[%c0_10, %c0_11] : memref<720x2xf32, #tpu.memory_space<vmem>>, vector<720x1xf32>
    %c0_12 = arith.constant 0 : index
    %c1 = arith.constant 1 : index
    %19 = vector.load %arg4[%c0_12, %c1] : memref<720x2xf32, #tpu.memory_space<vmem>>, vector<720x1xf32>
    %cst_13 = arith.constant 9.99999974E-6 : f32
    %20 = vector.broadcast %cst_13 : f32 to vector<720x1xf32>
    %21 = arith.addf %17, %20 : vector<720x1xf32>
    %22 = math.rsqrt %21 : vector<720x1xf32>
    %23 = arith.mulf %18, %22 : vector<720x1xf32>
    %24 = vector.broadcast %23 : vector<720x1xf32> to vector<720x196xf32>
    %25 = arith.mulf %12, %24 : vector<720x196xf32>
    %26 = vector.broadcast %19 : vector<720x1xf32> to vector<720x196xf32>
    %27 = arith.addf %25, %26 : vector<720x196xf32>
    %c0_14 = arith.constant 0 : index
    %c0_15 = arith.constant 0 : index
    %28 = vector.load %arg5[%c0_14, %c0_15] : memref<720x196xf32, #tpu.memory_space<vmem>>, vector<720x196xf32>
    tpu.vector_store %arg5[%c0_14, %c0_15], %27 {strides = array<i32>} : memref<720x196xf32, #tpu.memory_space<vmem>>, vector<720x196xf32>,
    return
  }
  func.func @transform_0(%arg0: i32) -> (i32, i32) {
    %c0_i32 = arith.constant 0 : i32
    %c0_i32_0 = arith.constant 0 : i32
    %c0_i32_1 = arith.constant 0 : i32
    return %c0_i32, %c0_i32_0 : i32, i32
  }
  func.func @transform_1(%arg0: i32) -> (i32, i32) {
    %c0_i32 = arith.constant 0 : i32
    %c0_i32_0 = arith.constant 0 : i32
    %c0_i32_1 = arith.constant 0 : i32
    return %c0_i32, %c0_i32_0 : i32, i32
  }
  func.func @transform_2(%arg0: i32) -> (i32, i32) {
    %c0_i32 = arith.constant 0 : i32
    %c0_i32_0 = arith.constant 0 : i32
    return %arg0, %c0_i32 : i32, i32
  }
  func.func @transform_3(%arg0: i32) -> (i32, i32) {
    %c0_i32 = arith.constant 0 : i32
    %c0_i32_0 = arith.constant 0 : i32
    return %arg0, %c0_i32 : i32, i32
  }
  func.func @transform_4(%arg0: i32) -> (i32, i32) {
    %c0_i32 = arith.constant 0 : i32
    %c0_i32_0 = arith.constant 0 : i32
    return %arg0, %c0_i32 : i32, i32
  }
}

</mosaic_0001>

<llo_original>
// kernel: tpu_custom_call.1
$region0: #{tpu_custom_call.1}
  #allocation0 [shape = 'u32[]', space=smem, size = 0x4, offset = 0x4, fixed_abs, tag = 'smem constant byte address 0x4 - core index']
  #allocation1 [shape = 'u32[144,128]{1,0:T(1,128)}', space=vmem, size = 0x12000, scoped, tag = 'internal scratch']
  %s0 = inlined_call_operand.vmem [shape: f32[720,196], index: 0, kind: input, shape index: {}]
  %s1 = inlined_call_operand.vmem [shape: f32[720,196], index: 1, kind: input, shape index: {}]
  %s2 = inlined_call_operand.vmem [shape: f32[720,720], index: 2, kind: input, shape index: {}]
  %s3 = inlined_call_operand.vmem [shape: f32[720,2], index: 3, kind: input, shape index: {}]
  %s4 = inlined_call_operand.vmem [shape: f32[720,196], index: 4, kind: output, shape index: {}]
  %s5 = sld [smem:[#allocation0]]
  $region26: #{tpu_custom_call.1} parent=0
    _
  %s7 = ssub.s32 1, %s5
  %s8 = scalar_select 0, %s7, %s5
  // Predicated region
  $region2: #{tpu_custom_call.1} parent=0 // pred_check
    _
  $region3: #{tpu_custom_call.1} parent=0 // pred_check_branch
    %10 = sbr.rel (0) target = $region5
  $region4: #{tpu_custom_call.1} parent=0 // pred_region
    _
  $region5: #{tpu_custom_call.1} parent=0 // pred_fallthru
    _
  // Predicated region
  $region6: #{tpu_custom_call.1} parent=0 // pred_check
    _
  $region7: #{tpu_custom_call.1} parent=0 // pred_check_branch
    %12 = sbr.rel (0) target = $region9
  $region8: #{tpu_custom_call.1} parent=0 // pred_region
    _
  $region9: #{tpu_custom_call.1} parent=0 // pred_fallthru
    _
  // Predicated region
  $region10: #{tpu_custom_call.1} parent=0 // pred_check
    _
  $region11: #{tpu_custom_call.1} parent=0 // pred_check_branch
    %14 = sbr.rel (0) target = $region13
  $region12: #{tpu_custom_call.1} parent=0 // pred_region
    _
  $region13: #{tpu_custom_call.1} parent=0 // pred_fallthru
    _
  // Predicated region
  $region14: #{tpu_custom_call.1} parent=0 // pred_check
    _
  $region15: #{tpu_custom_call.1} parent=0 // pred_check_branch
    %16 = sbr.rel (0) target = $region17
  $region16: #{tpu_custom_call.1} parent=0 // pred_region
    _
  $region17: #{tpu_custom_call.1} parent=0 // pred_fallthru
    _
  %v17 = vld [vmem:[%s0] sm:$0xff]
  %v18 = vld [vmem:[%s0 + $0x8] sm:$0xff]
  %v19 = vld [vmem:[%s0 + $0x10] sm:$0xff]
  %v20 = vld [vmem:[%s0 + $0x18] sm:$0xff]
  %v21 = vld [vmem:[%s0 + $0x20] sm:$0xff]
  %v22 = vld [vmem:[%s0 + $0x28] sm:$0xff]
  %v23 = vld [vmem:[%s0 + $0x30] sm:$0xff]
  %v24 = vld [vmem:[%s0 + $0x38] sm:$0xff]
  %v25 = vld [vmem:[%s0 + $0x40] sm:$0xff]
  %v26 = vld [vmem:[%s0 + $0x48] sm:$0xff]
  %v27 = vld [vmem:[%s0 + $0x50] sm:$0xff]
  %v28 = vld [vmem:[%s0 + $0x58] sm:$0xff]
  %v29 = vld [vmem:[%s0 + $0x60] sm:$0xff]
  %v30 = vld [vmem:[%s0 + $0x68] sm:$0xff]
  %v31 = vld [vmem:[%s0 + $0x70] sm:$0xff]
  %v32 = vld [vmem:[%s0 + $0x78] sm:$0xff]
  %v33 = vld [vmem:[%s0 + $0x80] sm:$0xff]
  %v34 = vld [vmem:[%s0 + $0x88] sm:$0xff]
  %v35 = vld [vmem:[%s0 + $0x90] sm:$0xff]
  %v36 = vld [vmem:[%s0 + $0x98] sm:$0xff]
  %v37 = vld [vmem:[%s0 + $0xa0] sm:$0xff]
  %v38 = vld [vmem:[%s0 + $0xa8] sm:$0xff]
  %v39 = vld [vmem:[%s0 + $0xb0] sm:$0xff]
  %v40 = vld [vmem:[%s0 + $0xb8] sm:$0xff]
  %v41 = vld [vmem:[%s0 + $0xc0] sm:$0xff]
  %v42 = vld [vmem:[%s0 + $0xc8] sm:$0xff]
  %v43 = vld [vmem:[%s0 + $0xd0] sm:$0xff]
  %v44 = vld [vmem:[%s0 + $0xd8] sm:$0xff]
  %v45 = vld [vmem:[%s0 + $0xe0] sm:$0xff]
  %v46 = vld [vmem:[%s0 + $0xe8] sm:$0xff]
  %v47 = vld [vmem:[%s0 + $0xf0] sm:$0xff]
  %v48 = vld [vmem:[%s0 + $0xf8] sm:$0xff]
  %v49 = vld [vmem:[%s0 + $0x100] sm:$0xff]
  %v50 = vld [vmem:[%s0 + $0x108] sm:$0xff]
  %v51 = vld [vmem:[%s0 + $0x110] sm:$0xff]
  %v52 = vld [vmem:[%s0 + $0x118] sm:$0xff]
  %v53 = vld [vmem:[%s0 + $0x120] sm:$0xff]
  %v54 = vld [vmem:[%s0 + $0x128] sm:$0xff]
  %v55 = vld [vmem:[%s0 + $0x130] sm:$0xff]
  %v56 = vld [vmem:[%s0 + $0x138] sm:$0xff]
  %v57 = vld [vmem:[%s0 + $0x140] sm:$0xff]
  %v58 = vld [vmem:[%s0 + $0x148] sm:$0xff]
  %v59 = vld [vmem:[%s0 + $0x150] sm:$0xff]
  %v60 = vld [vmem:[%s0 + $0x158] sm:$0xff]
  %v61 = vld [vmem:[%s0 + $0x160] sm:$0xff]
  %v62 = vld [vmem:[%s0 + $0x168] sm:$0xff]
  %v63 = vld [vmem:[%s0 + $0x170] sm:$0xff]
  %v64 = vld [vmem:[%s0 + $0x178] sm:$0xff]
  %v65 = vld [vmem:[%s0 + $0x180] sm:$0xff]
  %v66 = vld [vmem:[%s0 + $0x188] sm:$0xff]
  %v67 = vld [vmem:[%s0 + $0x190] sm:$0xff]
  %v68 = vld [vmem:[%s0 + $0x198] sm:$0xff]
  %v69 = vld [vmem:[%s0 + $0x1a0] sm:$0xff]
  %v70 = vld [vmem:[%s0 + $0x1a8] sm:$0xff]
  %v71 = vld [vmem:[%s0 + $0x1b0] sm:$0xff]
  %v72 = vld [vmem:[%s0 + $0x1b8] sm:$0xff]
  %v73 = vld [vmem:[%s0 + $0x1c0] sm:$0xff]
  %v74 = vld [vmem:[%s0 + $0x1c8] sm:$0xff]
  %v75 = vld [vmem:[%s0 + $0x1d0] sm:$0xff]
  %v76 = vld [vmem:[%s0 + $0x1d8] sm:$0xff]
  %v77 = vld [vmem:[%s0 + $0x1e0] sm:$0xff]
  %v78 = vld [vmem:[%s0 + $0x1e8] sm:$0xff]
  %v79 = vld [vmem:[%s0 + $0x1f0] sm:$0xff]
  %v80 = vld [vmem:[%s0 + $0x1f8] sm:$0xff]
  %v81 = vld [vmem:[%s0 + $0x200] sm:$0xff]
  %v82 = vld [vmem:[%s0 + $0x208] sm:$0xff]
  %v83 = vld [vmem:[%s0 + $0x210] sm:$0xff]
  %v84 = vld [vmem:[%s0 + $0x218] sm:$0xff]
  %v85 = vld [vmem:[%s0 + $0x220] sm:$0xff]
  %v86 = vld [vmem:[%s0 + $0x228] sm:$0xff]
  %v87 = vld [vmem:[%s0 + $0x230] sm:$0xff]
  %v88 = vld [vmem:[%s0 + $0x238] sm:$0xff]
  %v89 = vld [vmem:[%s0 + $0x240] sm:$0xff]
  %v90 = vld [vmem:[%s0 + $0x248] sm:$0xff]
  %v91 = vld [vmem:[%s0 + $0x250] sm:$0xff]
  %v92 = vld [vmem:[%s0 + $0x258] sm:$0xff]
  %v93 = vld [vmem:[%s0 + $0x260] sm:$0xff]
  %v94 = vld [vmem:[%s0 + $0x268] sm:$0xff]
  %v95 = vld [vmem:[%s0 + $0x270] sm:$0xff]
  %v96 = vld [vmem:[%s0 + $0x278] sm:$0xff]
  %v97 = vld [vmem:[%s0 + $0x280] sm:$0xff]
  %v98 = vld [vmem:[%s0 + $0x288] sm:$0xff]
  %v99 = vld [vmem:[%s0 + $0x290] sm:$0xff]
  %v100 = vld [vmem:[%s0 + $0x298] sm:$0xff]
  %v101 = vld [vmem:[%s0 + $0x2a0] sm:$0xff]
  %v102 = vld [vmem:[%s0 + $0x2a8] sm:$0xff]
  %v103 = vld [vmem:[%s0 + $0x2b0] sm:$0xff]
  %v104 = vld [vmem:[%s0 + $0x2b8] sm:$0xff]
  %v105 = vld [vmem:[%s0 + $0x2c0] sm:$0xff]
  %v106 = vld [vmem:[%s0 + $0x2c8] sm:$0xff]
  %v107 = vld [vmem:[%s0 + $0x2d0] sm:$0xff]
  %v108 = vld [vmem:[%s0 + $0x2d8] sm:$0xff]
  %v109 = vld [vmem:[%s0 + $0x2e0] sm:$0xff]
  %v110 = vld [vmem:[%s0 + $0x2e8] sm:$0xff]
  %v111 = vld [vmem:[%s0 + $0x2f0] sm:$0xff]
  %v112 = vld [vmem:[%s0 + $0x2f8] sm:$0xff]
  %v113 = vld [vmem:[%s0 + $0x300] sm:$0xff]
  %v114 = vld [vmem:[%s0 + $0x308] sm:$0xff]
  %v115 = vld [vmem:[%s0 + $0x310] sm:$0xff]
  %v116 = vld [vmem:[%s0 + $0x318] sm:$0xff]
  %v117 = vld [vmem:[%s0 + $0x320] sm:$0xff]
  %v118 = vld [vmem:[%s0 + $0x328] sm:$0xff]
  %v119 = vld [vmem:[%s0 + $0x330] sm:$0xff]
  %v120 = vld [vmem:[%s0 + $0x338] sm:$0xff]
  %v121 = vld [vmem:[%s0 + $0x340] sm:$0xff]
  %v122 = vld [vmem:[%s0 + $0x348] sm:$0xff]
  %v123 = vld [vmem:[%s0 + $0x350] sm:$0xff]
  %v124 = vld [vmem:[%s0 + $0x358] sm:$0xff]
  %v125 = vld [vmem:[%s0 + $0x360] sm:$0xff]
  %v126 = vld [vmem:[%s0 + $0x368] sm:$0xff]
  %v127 = vld [vmem:[%s0 + $0x370] sm:$0xff]
  %v128 = vld [vmem:[%s0 + $0x378] sm:$0xff]
  %v129 = vld [vmem:[%s0 + $0x380] sm:$0xff]
  %v130 = vld [vmem:[%s0 + $0x388] sm:$0xff]
  %v131 = vld [vmem:[%s0 + $0x390] sm:$0xff]
  %v132 = vld [vmem:[%s0 + $0x398] sm:$0xff]
  %v133 = vld [vmem:[%s0 + $0x3a0] sm:$0xff]
  %v134 = vld [vmem:[%s0 + $0x3a8] sm:$0xff]
  %v135 = vld [vmem:[%s0 + $0x3b0] sm:$0xff]
  %v136 = vld [vmem:[%s0 + $0x3b8] sm:$0xff]
  %v137 = vld [vmem:[%s0 + $0x3c0] sm:$0xff]
  %v138 = vld [vmem:[%s0 + $0x3c8] sm:$0xff]
  %v139 = vld [vmem:[%s0 + $0x3d0] sm:$0xff]
  %v140 = vld [vmem:[%s0 + $0x3d8] sm:$0xff]
  %v141 = vld [vmem:[%s0 + $0x3e0] sm:$0xff]
  %v142 = vld [vmem:[%s0 + $0x3e8] sm:$0xff]
  %v143 = vld [vmem:[%s0 + $0x3f0] sm:$0xff]
  %v144 = vld [vmem:[%s0 + $0x3f8] sm:$0xff]
  %v145 = vld [vmem:[%s0 + $0x400] sm:$0xff]
  %v146 = vld [vmem:[%s0 + $0x408] sm:$0xff]
  %v147 = vld [vmem:[%s0 + $0x410] sm:$0xff]
  %v148 = vld [vmem:[%s0 + $0x418] sm:$0xff]
  %v149 = vld [vmem:[%s0 + $0x420] sm:$0xff]
  %v150 = vld [vmem:[%s0 + $0x428] sm:$0xff]
  %v151 = vld [vmem:[%s0 + $0x430] sm:$0xff]
  %v152 = vld [vmem:[%s0 + $0x438] sm:$0xff]
  %v153 = vld [vmem:[%s0 + $0x440] sm:$0xff]
  %v154 = vld [vmem:[%s0 + $0x448] sm:$0xff]
  %v155 = vld [vmem:[%s0 + $0x450] sm:$0xff]
  %v156 = vld [vmem:[%s0 + $0x458] sm:$0xff]
  %v157 = vld [vmem:[%s0 + $0x460] sm:$0xff]
  %v158 = vld [vmem:[%s0 + $0x468] sm:$0xff]
  %v159 = vld [vmem:[%s0 + $0x470] sm:$0xff]
  %v160 = vld [vmem:[%s0 + $0x478] sm:$0xff]
  %v161 = vld [vmem:[%s0 + $0x480] sm:$0xff]
  %v162 = vld [vmem:[%s0 + $0x488] sm:$0xff]
  %v163 = vld [vmem:[%s0 + $0x490] sm:$0xff]
  %v164 = vld [vmem:[%s0 + $0x498] sm:$0xff]
  %v165 = vld [vmem:[%s0 + $0x4a0] sm:$0xff]
  %v166 = vld [vmem:[%s0 + $0x4a8] sm:$0xff]
  %v167 = vld [vmem:[%s0 + $0x4b0] sm:$0xff]
  %v168 = vld [vmem:[%s0 + $0x4b8] sm:$0xff]
  %v169 = vld [vmem:[%s0 + $0x4c0] sm:$0xff]
  %v170 = vld [vmem:[%s0 + $0x4c8] sm:$0xff]
  %v171 = vld [vmem:[%s0 + $0x4d0] sm:$0xff]
  %v172 = vld [vmem:[%s0 + $0x4d8] sm:$0xff]
  %v173 = vld [vmem:[%s0 + $0x4e0] sm:$0xff]
  %v174 = vld [vmem:[%s0 + $0x4e8] sm:$0xff]
  %v175 = vld [vmem:[%s0 + $0x4f0] sm:$0xff]
  %v176 = vld [vmem:[%s0 + $0x4f8] sm:$0xff]
  %v177 = vld [vmem:[%s0 + $0x500] sm:$0xff]
  %v178 = vld [vmem:[%s0 + $0x508] sm:$0xff]
  %v179 = vld [vmem:[%s0 + $0x510] sm:$0xff]
  %v180 = vld [vmem:[%s0 + $0x518] sm:$0xff]
  %v181 = vld [vmem:[%s0 + $0x520] sm:$0xff]
  %v182 = vld [vmem:[%s0 + $0x528] sm:$0xff]
  %v183 = vld [vmem:[%s0 + $0x530] sm:$0xff]
  %v184 = vld [vmem:[%s0 + $0x538] sm:$0xff]
  %v185 = vld [vmem:[%s0 + $0x540] sm:$0xff]
  %v186 = vld [vmem:[%s0 + $0x548] sm:$0xff]
  %v187 = vld [vmem:[%s0 + $0x550] sm:$0xff]
  %v188 = vld [vmem:[%s0 + $0x558] sm:$0xff]
  %v189 = vld [vmem:[%s0 + $0x560] sm:$0xff]
  %v190 = vld [vmem:[%s0 + $0x568] sm:$0xff]
  %v191 = vld [vmem:[%s0 + $0x570] sm:$0xff]
  %v192 = vld [vmem:[%s0 + $0x578] sm:$0xff]
  %v193 = vld [vmem:[%s0 + $0x580] sm:$0xff]
  %v194 = vld [vmem:[%s0 + $0x588] sm:$0xff]
  %v195 = vld [vmem:[%s0 + $0x590] sm:$0xff]
  %v196 = vld [vmem:[%s0 + $0x598] sm:$0xff]
  %v197 = vld [vmem:[%s1] sm:$0xff]
  %v198 = vld [vmem:[%s1 + $0x8] sm:$0xff]
  %v199 = vld [vmem:[%s1 + $0x10] sm:$0xff]
  %v200 = vld [vmem:[%s1 + $0x18] sm:$0xff]
  %v201 = vld [vmem:[%s1 + $0x20] sm:$0xff]
  %v202 = vld [vmem:[%s1 + $0x28] sm:$0xff]
  %v203 = vld [vmem:[%s1 + $0x30] sm:$0xff]
  %v204 = vld [vmem:[%s1 + $0x38] sm:$0xff]
  %v205 = vld [vmem:[%s1 + $0x40] sm:$0xff]
  %v206 = vld [vmem:[%s1 + $0x48] sm:$0xff]
  %v207 = vld [vmem:[%s1 + $0x50] sm:$0xff]
  %v208 = vld [vmem:[%s1 + $0x58] sm:$0xff]
  %v209 = vld [vmem:[%s1 + $0x60] sm:$0xff]
  %v210 = vld [vmem:[%s1 + $0x68] sm:$0xff]
  %v211 = vld [vmem:[%s1 + $0x70] sm:$0xff]
  %v212 = vld [vmem:[%s1 + $0x78] sm:$0xff]
  %v213 = vld [vmem:[%s1 + $0x80] sm:$0xff]
  %v214 = vld [vmem:[%s1 + $0x88] sm:$0xff]
  %v215 = vld [vmem:[%s1 + $0x90] sm:$0xff]
  %v216 = vld [vmem:[%s1 + $0x98] sm:$0xff]
  %v217 = vld [vmem:[%s1 + $0xa0] sm:$0xff]
  %v218 = vld [vmem:[%s1 + $0xa8] sm:$0xff]
  %v219 = vld [vmem:[%s1 + $0xb0] sm:$0xff]
  %v220 = vld [vmem:[%s1 + $0xb8] sm:$0xff]
  %v221 = vld [vmem:[%s1 + $0xc0] sm:$0xff]
  %v222 = vld [vmem:[%s1 + $0xc8] sm:$0xff]
  %v223 = vld [vmem:[%s1 + $0xd0] sm:$0xff]
  %v224 = vld [vmem:[%s1 + $0xd8] sm:$0xff]
  %v225 = vld [vmem:[%s1 + $0xe0] sm:$0xff]
  %v226 = vld [vmem:[%s1 + $0xe8] sm:$0xff]
  %v227 = vld [vmem:[%s1 + $0xf0] sm:$0xff]
  %v228 = vld [vmem:[%s1 + $0xf8] sm:$0xff]
  %v229 = vld [vmem:[%s1 + $0x100] sm:$0xff]
  %v230 = vld [vmem:[%s1 + $0x108] sm:$0xff]
  %v231 = vld [vmem:[%s1 + $0x110] sm:$0xff]
  %v232 = vld [vmem:[%s1 + $0x118] sm:$0xff]
  %v233 = vld [vmem:[%s1 + $0x120] sm:$0xff]
  %v234 = vld [vmem:[%s1 + $0x128] sm:$0xff]
  %v235 = vld [vmem:[%s1 + $0x130] sm:$0xff]
  %v236 = vld [vmem:[%s1 + $0x138] sm:$0xff]
  %v237 = vld [vmem:[%s1 + $0x140] sm:$0xff]
  %v238 = vld [vmem:[%s1 + $0x148] sm:$0xff]
  %v239 = vld [vmem:[%s1 + $0x150] sm:$0xff]
  %v240 = vld [vmem:[%s1 + $0x158] sm:$0xff]
  %v241 = vld [vmem:[%s1 + $0x160] sm:$0xff]
  %v242 = vld [vmem:[%s1 + $0x168] sm:$0xff]
  %v243 = vld [vmem:[%s1 + $0x170] sm:$0xff]
  %v244 = vld [vmem:[%s1 + $0x178] sm:$0xff]
  %v245 = vld [vmem:[%s1 + $0x180] sm:$0xff]
  %v246 = vld [vmem:[%s1 + $0x188] sm:$0xff]
  %v247 = vld [vmem:[%s1 + $0x190] sm:$0xff]
  %v248 = vld [vmem:[%s1 + $0x198] sm:$0xff]
  %v249 = vld [vmem:[%s1 + $0x1a0] sm:$0xff]
  %v250 = vld [vmem:[%s1 + $0x1a8] sm:$0xff]
  %v251 = vld [vmem:[%s1 + $0x1b0] sm:$0xff]
  %v252 = vld [vmem:[%s1 + $0x1b8] sm:$0xff]
  %v253 = vld [vmem:[%s1 + $0x1c0] sm:$0xff]
  %v254 = vld [vmem:[%s1 + $0x1c8] sm:$0xff]
  %v255 = vld [vmem:[%s1 + $0x1d0] sm:$0xff]
  %v256 = vld [vmem:[%s1 + $0x1d8] sm:$0xff]
  %v257 = vld [vmem:[%s1 + $0x1e0] sm:$0xff]
  %v258 = vld [vmem:[%s1 + $0x1e8] sm:$0xff]
  %v259 = vld [vmem:[%s1 + $0x1f0] sm:$0xff]
  %v260 = vld [vmem:[%s1 + $0x1f8] sm:$0xff]
  %v261 = vld [vmem:[%s1 + $0x200] sm:$0xff]
  %v262 = vld [vmem:[%s1 + $0x208] sm:$0xff]
  %v263 = vld [vmem:[%s1 + $0x210] sm:$0xff]
  %v264 = vld [vmem:[%s1 + $0x218] sm:$0xff]
  %v265 = vld [vmem:[%s1 + $0x220] sm:$0xff]
  %v266 = vld [vmem:[%s1 + $0x228] sm:$0xff]
  %v267 = vld [vmem:[%s1 + $0x230] sm:$0xff]
  %v268 = vld [vmem:[%s1 + $0x238] sm:$0xff]
  %v269 = vld [vmem:[%s1 + $0x240] sm:$0xff]
  %v270 = vld [vmem:[%s1 + $0x248] sm:$0xff]
  %v271 = vld [vmem:[%s1 + $0x250] sm:$0xff]
  %v272 = vld [vmem:[%s1 + $0x258] sm:$0xff]
  %v273 = vld [vmem:[%s1 + $0x260] sm:$0xff]
  %v274 = vld [vmem:[%s1 + $0x268] sm:$0xff]
  %v275 = vld [vmem:[%s1 + $0x270] sm:$0xff]
  %v276 = vld [vmem:[%s1 + $0x278] sm:$0xff]
  %v277 = vld [vmem:[%s1 + $0x280] sm:$0xff]
  %v278 = vld [vmem:[%s1 + $0x288] sm:$0xff]
  %v279 = vld [vmem:[%s1 + $0x290] sm:$0xff]
  %v280 = vld [vmem:[%s1 + $0x298] sm:$0xff]
  %v281 = vld [vmem:[%s1 + $0x2a0] sm:$0xff]
  %v282 = vld [vmem:[%s1 + $0x2a8] sm:$0xff]
  %v283 = vld [vmem:[%s1 + $0x2b0] sm:$0xff]
  %v284 = vld [vmem:[%s1 + $0x2b8] sm:$0xff]
  %v285 = vld [vmem:[%s1 + $0x2c0] sm:$0xff]
  %v286 = vld [vmem:[%s1 + $0x2c8] sm:$0xff]
  %v287 = vld [vmem:[%s1 + $0x2d0] sm:$0xff]
  %v288 = vld [vmem:[%s1 + $0x2d8] sm:$0xff]
  %v289 = vld [vmem:[%s1 + $0x2e0] sm:$0xff]
  %v290 = vld [vmem:[%s1 + $0x2e8] sm:$0xff]
  %v291 = vld [vmem:[%s1 + $0x2f0] sm:$0xff]
  %v292 = vld [vmem:[%s1 + $0x2f8] sm:$0xff]
  %v293 = vld [vmem:[%s1 + $0x300] sm:$0xff]
  %v294 = vld [vmem:[%s1 + $0x308] sm:$0xff]
  %v295 = vld [vmem:[%s1 + $0x310] sm:$0xff]
  %v296 = vld [vmem:[%s1 + $0x318] sm:$0xff]
  %v297 = vld [vmem:[%s1 + $0x320] sm:$0xff]
  %v298 = vld [vmem:[%s1 + $0x328] sm:$0xff]
  %v299 = vld [vmem:[%s1 + $0x330] sm:$0xff]
  %v300 = vld [vmem:[%s1 + $0x338] sm:$0xff]
  %v301 = vld [vmem:[%s1 + $0x340] sm:$0xff]
  %v302 = vld [vmem:[%s1 + $0x348] sm:$0xff]
  %v303 = vld [vmem:[%s1 + $0x350] sm:$0xff]
  %v304 = vld [vmem:[%s1 + $0x358] sm:$0xff]
  %v305 = vld [vmem:[%s1 + $0x360] sm:$0xff]
  %v306 = vld [vmem:[%s1 + $0x368] sm:$0xff]
  %v307 = vld [vmem:[%s1 + $0x370] sm:$0xff]
  %v308 = vld [vmem:[%s1 + $0x378] sm:$0xff]
  %v309 = vld [vmem:[%s1 + $0x380] sm:$0xff]
  %v310 = vld [vmem:[%s1 + $0x388] sm:$0xff]
  %v311 = vld [vmem:[%s1 + $0x390] sm:$0xff]
  %v312 = vld [vmem:[%s1 + $0x398] sm:$0xff]
  %v313 = vld [vmem:[%s1 + $0x3a0] sm:$0xff]
  %v314 = vld [vmem:[%s1 + $0x3a8] sm:$0xff]
  %v315 = vld [vmem:[%s1 + $0x3b0] sm:$0xff]
  %v316 = vld [vmem:[%s1 + $0x3b8] sm:$0xff]
  %v317 = vld [vmem:[%s1 + $0x3c0] sm:$0xff]
  %v318 = vld [vmem:[%s1 + $0x3c8] sm:$0xff]
  %v319 = vld [vmem:[%s1 + $0x3d0] sm:$0xff]
  %v320 = vld [vmem:[%s1 + $0x3d8] sm:$0xff]
  %v321 = vld [vmem:[%s1 + $0x3e0] sm:$0xff]
  %v322 = vld [vmem:[%s1 + $0x3e8] sm:$0xff]
  %v323 = vld [vmem:[%s1 + $0x3f0] sm:$0xff]
  %v324 = vld [vmem:[%s1 + $0x3f8] sm:$0xff]
  %v325 = vld [vmem:[%s1 + $0x400] sm:$0xff]
  %v326 = vld [vmem:[%s1 + $0x408] sm:$0xff]
  %v327 = vld [vmem:[%s1 + $0x410] sm:$0xff]
  %v328 = vld [vmem:[%s1 + $0x418] sm:$0xff]
  %v329 = vld [vmem:[%s1 + $0x420] sm:$0xff]
  %v330 = vld [vmem:[%s1 + $0x428] sm:$0xff]
  %v331 = vld [vmem:[%s1 + $0x430] sm:$0xff]
  %v332 = vld [vmem:[%s1 + $0x438] sm:$0xff]
  %v333 = vld [vmem:[%s1 + $0x440] sm:$0xff]
  %v334 = vld [vmem:[%s1 + $0x448] sm:$0xff]
  %v335 = vld [vmem:[%s1 + $0x450] sm:$0xff]
  %v336 = vld [vmem:[%s1 + $0x458] sm:$0xff]
  %v337 = vld [vmem:[%s1 + $0x460] sm:$0xff]
  %v338 = vld [vmem:[%s1 + $0x468] sm:$0xff]
  %v339 = vld [vmem:[%s1 + $0x470] sm:$0xff]
  %v340 = vld [vmem:[%s1 + $0x478] sm:$0xff]
  %v341 = vld [vmem:[%s1 + $0x480] sm:$0xff]
  %v342 = vld [vmem:[%s1 + $0x488] sm:$0xff]
  %v343 = vld [vmem:[%s1 + $0x490] sm:$0xff]
  %v344 = vld [vmem:[%s1 + $0x498] sm:$0xff]
  %v345 = vld [vmem:[%s1 + $0x4a0] sm:$0xff]
  %v346 = vld [vmem:[%s1 + $0x4a8] sm:$0xff]
  %v347 = vld [vmem:[%s1 + $0x4b0] sm:$0xff]
  %v348 = vld [vmem:[%s1 + $0x4b8] sm:$0xff]
  %v349 = vld [vmem:[%s1 + $0x4c0] sm:$0xff]
  %v350 = vld [vmem:[%s1 + $0x4c8] sm:$0xff]
  %v351 = vld [vmem:[%s1 + $0x4d0] sm:$0xff]
  %v352 = vld [vmem:[%s1 + $0x4d8] sm:$0xff]
  %v353 = vld [vmem:[%s1 + $0x4e0] sm:$0xff]
  %v354 = vld [vmem:[%s1 + $0x4e8] sm:$0xff]
  %v355 = vld [vmem:[%s1 + $0x4f0] sm:$0xff]
  %v356 = vld [vmem:[%s1 + $0x4f8] sm:$0xff]
  %v357 = vld [vmem:[%s1 + $0x500] sm:$0xff]
  %v358 = vld [vmem:[%s1 + $0x508] sm:$0xff]
  %v359 = vld [vmem:[%s1 + $0x510] sm:$0xff]
  %v360 = vld [vmem:[%s1 + $0x518] sm:$0xff]
  %v361 = vld [vmem:[%s1 + $0x520] sm:$0xff]
  %v362 = vld [vmem:[%s1 + $0x528] sm:$0xff]
  %v363 = vld [vmem:[%s1 + $0x530] sm:$0xff]
  %v364 = vld [vmem:[%s1 + $0x538] sm:$0xff]
  %v365 = vld [vmem:[%s1 + $0x540] sm:$0xff]
  %v366 = vld [vmem:[%s1 + $0x548] sm:$0xff]
  %v367 = vld [vmem:[%s1 + $0x550] sm:$0xff]
  %v368 = vld [vmem:[%s1 + $0x558] sm:$0xff]
  %v369 = vld [vmem:[%s1 + $0x560] sm:$0xff]
  %v370 = vld [vmem:[%s1 + $0x568] sm:$0xff]
  %v371 = vld [vmem:[%s1 + $0x570] sm:$0xff]
  %v372 = vld [vmem:[%s1 + $0x578] sm:$0xff]
  %v373 = vld [vmem:[%s1 + $0x580] sm:$0xff]
  %v374 = vld [vmem:[%s1 + $0x588] sm:$0xff]
  %v375 = vld [vmem:[%s1 + $0x590] sm:$0xff]
  %v376 = vld [vmem:[%s1 + $0x598] sm:$0xff]
  %v377 = vadd.f32 %v17, %v197
  %v378 = vadd.f32 %v18, %v198
  %v379 = vadd.f32 %v19, %v199
  %v380 = vadd.f32 %v20, %v200
  %v381 = vadd.f32 %v21, %v201
  %v382 = vadd.f32 %v22, %v202
  %v383 = vadd.f32 %v23, %v203
  %v384 = vadd.f32 %v24, %v204
  %v385 = vadd.f32 %v25, %v205
  %v386 = vadd.f32 %v26, %v206
  %v387 = vadd.f32 %v27, %v207
  %v388 = vadd.f32 %v28, %v208
  %v389 = vadd.f32 %v29, %v209
  %v390 = vadd.f32 %v30, %v210
  %v391 = vadd.f32 %v31, %v211
  %v392 = vadd.f32 %v32, %v212
  %v393 = vadd.f32 %v33, %v213
  %v394 = vadd.f32 %v34, %v214
  %v395 = vadd.f32 %v35, %v215
  %v396 = vadd.f32 %v36, %v216
  %v397 = vadd.f32 %v37, %v217
  %v398 = vadd.f32 %v38, %v218
  %v399 = vadd.f32 %v39, %v219
  %v400 = vadd.f32 %v40, %v220
  %v401 = vadd.f32 %v41, %v221
  %v402 = vadd.f32 %v42, %v222
  %v403 = vadd.f32 %v43, %v223
  %v404 = vadd.f32 %v44, %v224
  %v405 = vadd.f32 %v45, %v225
  %v406 = vadd.f32 %v46, %v226
  %v407 = vadd.f32 %v47, %v227
  %v408 = vadd.f32 %v48, %v228
  %v409 = vadd.f32 %v49, %v229
  %v410 = vadd.f32 %v50, %v230
  %v411 = vadd.f32 %v51, %v231
  %v412 = vadd.f32 %v52, %v232
  %v413 = vadd.f32 %v53, %v233
  %v414 = vadd.f32 %v54, %v234
  %v415 = vadd.f32 %v55, %v235
  %v416 = vadd.f32 %v56, %v236
  %v417 = vadd.f32 %v57, %v237
  %v418 = vadd.f32 %v58, %v238
  %v419 = vadd.f32 %v59, %v239
  %v420 = vadd.f32 %v60, %v240
  %v421 = vadd.f32 %v61, %v241
  %v422 = vadd.f32 %v62, %v242
  %v423 = vadd.f32 %v63, %v243
  %v424 = vadd.f32 %v64, %v244
  %v425 = vadd.f32 %v65, %v245
  %v426 = vadd.f32 %v66, %v246
  %v427 = vadd.f32 %v67, %v247
  %v428 = vadd.f32 %v68, %v248
  %v429 = vadd.f32 %v69, %v249
  %v430 = vadd.f32 %v70, %v250
  %v431 = vadd.f32 %v71, %v251
  %v432 = vadd.f32 %v72, %v252
  %v433 = vadd.f32 %v73, %v253
  %v434 = vadd.f32 %v74, %v254
  %v435 = vadd.f32 %v75, %v255
  %v436 = vadd.f32 %v76, %v256
  %v437 = vadd.f32 %v77, %v257
  %v438 = vadd.f32 %v78, %v258
  %v439 = vadd.f32 %v79, %v259
  %v440 = vadd.f32 %v80, %v260
  %v441 = vadd.f32 %v81, %v261
  %v442 = vadd.f32 %v82, %v262
  %v443 = vadd.f32 %v83, %v263
  %v444 = vadd.f32 %v84, %v264
  %v445 = vadd.f32 %v85, %v265
  %v446 = vadd.f32 %v86, %v266
  %v447 = vadd.f32 %v87, %v267
  %v448 = vadd.f32 %v88, %v268
  %v449 = vadd.f32 %v89, %v269
  %v450 = vadd.f32 %v90, %v270
  %v451 = vadd.f32 %v91, %v271
  %v452 = vadd.f32 %v92, %v272
  %v453 = vadd.f32 %v93, %v273
  %v454 = vadd.f32 %v94, %v274
  %v455 = vadd.f32 %v95, %v275
  %v456 = vadd.f32 %v96, %v276
  %v457 = vadd.f32 %v97, %v277
  %v458 = vadd.f32 %v98, %v278
  %v459 = vadd.f32 %v99, %v279
  %v460 = vadd.f32 %v100, %v280
  %v461 = vadd.f32 %v101, %v281
  %v462 = vadd.f32 %v102, %v282
  %v463 = vadd.f32 %v103, %v283
  %v464 = vadd.f32 %v104, %v284
  %v465 = vadd.f32 %v105, %v285
  %v466 = vadd.f32 %v106, %v286
  %v467 = vadd.f32 %v107, %v287
  %v468 = vadd.f32 %v108, %v288
  %v469 = vadd.f32 %v109, %v289
  %v470 = vadd.f32 %v110, %v290
  %v471 = vadd.f32 %v111, %v291
  %v472 = vadd.f32 %v112, %v292
  %v473 = vadd.f32 %v113, %v293
  %v474 = vadd.f32 %v114, %v294
  %v475 = vadd.f32 %v115, %v295
  %v476 = vadd.f32 %v116, %v296
  %v477 = vadd.f32 %v117, %v297
  %v478 = vadd.f32 %v118, %v298
  %v479 = vadd.f32 %v119, %v299
  %v480 = vadd.f32 %v120, %v300
  %v481 = vadd.f32 %v121, %v301
  %v482 = vadd.f32 %v122, %v302
  %v483 = vadd.f32 %v123, %v303
  %v484 = vadd.f32 %v124, %v304
  %v485 = vadd.f32 %v125, %v305
  %v486 = vadd.f32 %v126, %v306
  %v487 = vadd.f32 %v127, %v307
  %v488 = vadd.f32 %v128, %v308
  %v489 = vadd.f32 %v129, %v309
  %v490 = vadd.f32 %v130, %v310
  %v491 = vadd.f32 %v131, %v311
  %v492 = vadd.f32 %v132, %v312
  %v493 = vadd.f32 %v133, %v313
  %v494 = vadd.f32 %v134, %v314
  %v495 = vadd.f32 %v135, %v315
  %v496 = vadd.f32 %v136, %v316
  %v497 = vadd.f32 %v137, %v317
  %v498 = vadd.f32 %v138, %v318
  %v499 = vadd.f32 %v139, %v319
  %v500 = vadd.f32 %v140, %v320
  %v501 = vadd.f32 %v141, %v321
  %v502 = vadd.f32 %v142, %v322
  %v503 = vadd.f32 %v143, %v323
  %v504 = vadd.f32 %v144, %v324
  %v505 = vadd.f32 %v145, %v325
  %v506 = vadd.f32 %v146, %v326
  %v507 = vadd.f32 %v147, %v327
  %v508 = vadd.f32 %v148, %v328
  %v509 = vadd.f32 %v149, %v329
  %v510 = vadd.f32 %v150, %v330
  %v511 = vadd.f32 %v151, %v331
  %v512 = vadd.f32 %v152, %v332
  %v513 = vadd.f32 %v153, %v333
  %v514 = vadd.f32 %v154, %v334
  %v515 = vadd.f32 %v155, %v335
  %v516 = vadd.f32 %v156, %v336
  %v517 = vadd.f32 %v157, %v337
  %v518 = vadd.f32 %v158, %v338
  %v519 = vadd.f32 %v159, %v339
  %v520 = vadd.f32 %v160, %v340
  %v521 = vadd.f32 %v161, %v341
  %v522 = vadd.f32 %v162, %v342
  %v523 = vadd.f32 %v163, %v343
  %v524 = vadd.f32 %v164, %v344
  %v525 = vadd.f32 %v165, %v345
  %v526 = vadd.f32 %v166, %v346
  %v527 = vadd.f32 %v167, %v347
  %v528 = vadd.f32 %v168, %v348
  %v529 = vadd.f32 %v169, %v349
  %v530 = vadd.f32 %v170, %v350
  %v531 = vadd.f32 %v171, %v351
  %v532 = vadd.f32 %v172, %v352
  %v533 = vadd.f32 %v173, %v353
  %v534 = vadd.f32 %v174, %v354
  %v535 = vadd.f32 %v175, %v355
  %v536 = vadd.f32 %v176, %v356
  %v537 = vadd.f32 %v177, %v357
  %v538 = vadd.f32 %v178, %v358
  %v539 = vadd.f32 %v179, %v359
  %v540 = vadd.f32 %v180, %v360
  %v541 = vadd.f32 %v181, %v361
  %v542 = vadd.f32 %v182, %v362
  %v543 = vadd.f32 %v183, %v363
  %v544 = vadd.f32 %v184, %v364
  %v545 = vadd.f32 %v185, %v365
  %v546 = vadd.f32 %v186, %v366
  %v547 = vadd.f32 %v187, %v367
  %v548 = vadd.f32 %v188, %v368
  %v549 = vadd.f32 %v189, %v369
  %v550 = vadd.f32 %v190, %v370
  %v551 = vadd.f32 %v191, %v371
  %v552 = vadd.f32 %v192, %v372
  %v553 = vadd.f32 %v193, %v373
  %v554 = vadd.f32 %v194, %v374
  %v555 = vadd.f32 %v195, %v375
  %v556 = vadd.f32 %v196, %v376
  %v557 = vmax.f32 %v377, 0.0
  %v558 = vmax.f32 %v378, 0.0
  %v559 = vmax.f32 %v379, 0.0
  %v560 = vmax.f32 %v380, 0.0
  %v561 = vmax.f32 %v381, 0.0
  %v562 = vmax.f32 %v382, 0.0
  %v563 = vmax.f32 %v383, 0.0
  %v564 = vmax.f32 %v384, 0.0
  %v565 = vmax.f32 %v385, 0.0
  %v566 = vmax.f32 %v386, 0.0
  %v567 = vmax.f32 %v387, 0.0
  %v568 = vmax.f32 %v388, 0.0
  %v569 = vmax.f32 %v389, 0.0
  %v570 = vmax.f32 %v390, 0.0
  %v571 = vmax.f32 %v391, 0.0
  %v572 = vmax.f32 %v392, 0.0
  %v573 = vmax.f32 %v393, 0.0
  %v574 = vmax.f32 %v394, 0.0
  %v575 = vmax.f32 %v395, 0.0
  %v576 = vmax.f32 %v396, 0.0
  %v577 = vmax.f32 %v397, 0.0
  %v578 = vmax.f32 %v398, 0.0
  %v579 = vmax.f32 %v399, 0.0
  %v580 = vmax.f32 %v400, 0.0
  %v581 = vmax.f32 %v401, 0.0
  %v582 = vmax.f32 %v402, 0.0
  %v583 = vmax.f32 %v403, 0.0
  %v584 = vmax.f32 %v404, 0.0
  %v585 = vmax.f32 %v405, 0.0
  %v586 = vmax.f32 %v406, 0.0
  %v587 = vmax.f32 %v407, 0.0
  %v588 = vmax.f32 %v408, 0.0
  %v589 = vmax.f32 %v409, 0.0
  %v590 = vmax.f32 %v410, 0.0
  %v591 = vmax.f32 %v411, 0.0
  %v592 = vmax.f32 %v412, 0.0
  %v593 = vmax.f32 %v413, 0.0
  %v594 = vmax.f32 %v414, 0.0
  %v595 = vmax.f32 %v415, 0.0
  %v596 = vmax.f32 %v416, 0.0
  %v597 = vmax.f32 %v417, 0.0
  %v598 = vmax.f32 %v418, 0.0
  %v599 = vmax.f32 %v419, 0.0
  %v600 = vmax.f32 %v420, 0.0
  %v601 = vmax.f32 %v421, 0.0
  %v602 = vmax.f32 %v422, 0.0
  %v603 = vmax.f32 %v423, 0.0
  %v604 = vmax.f32 %v424, 0.0
  %v605 = vmax.f32 %v425, 0.0
  %v606 = vmax.f32 %v426, 0.0
  %v607 = vmax.f32 %v427, 0.0
  %v608 = vmax.f32 %v428, 0.0
  %v609 = vmax.f32 %v429, 0.0
  %v610 = vmax.f32 %v430, 0.0
  %v611 = vmax.f32 %v431, 0.0
  %v612 = vmax.f32 %v432, 0.0
  %v613 = vmax.f32 %v433, 0.0
  %v614 = vmax.f32 %v434, 0.0
  %v615 = vmax.f32 %v435, 0.0
  %v616 = vmax.f32 %v436, 0.0
  %v617 = vmax.f32 %v437, 0.0
  %v618 = vmax.f32 %v438, 0.0
  %v619 = vmax.f32 %v439, 0.0
  %v620 = vmax.f32 %v440, 0.0
  %v621 = vmax.f32 %v441, 0.0
  %v622 = vmax.f32 %v442, 0.0
  %v623 = vmax.f32 %v443, 0.0
  %v624 = vmax.f32 %v444, 0.0
  %v625 = vmax.f32 %v445, 0.0
  %v626 = vmax.f32 %v446, 0.0
  %v627 = vmax.f32 %v447, 0.0
  %v628 = vmax.f32 %v448, 0.0
  %v629 = vmax.f32 %v449, 0.0
  %v630 = vmax.f32 %v450, 0.0
  %v631 = vmax.f32 %v451, 0.0
  %v632 = vmax.f32 %v452, 0.0
  %v633 = vmax.f32 %v453, 0.0
  %v634 = vmax.f32 %v454, 0.0
  %v635 = vmax.f32 %v455, 0.0
  %v636 = vmax.f32 %v456, 0.0
  %v637 = vmax.f32 %v457, 0.0
  %v638 = vmax.f32 %v458, 0.0
  %v639 = vmax.f32 %v459, 0.0
  %v640 = vmax.f32 %v460, 0.0
  %v641 = vmax.f32 %v461, 0.0
  %v642 = vmax.f32 %v462, 0.0
  %v643 = vmax.f32 %v463, 0.0
  %v644 = vmax.f32 %v464, 0.0
  %v645 = vmax.f32 %v465, 0.0
  %v646 = vmax.f32 %v466, 0.0
  %v647 = vmax.f32 %v467, 0.0
  %v648 = vmax.f32 %v468, 0.0
  %v649 = vmax.f32 %v469, 0.0
  %v650 = vmax.f32 %v470, 0.0
  %v651 = vmax.f32 %v471, 0.0
  %v652 = vmax.f32 %v472, 0.0
  %v653 = vmax.f32 %v473, 0.0
  %v654 = vmax.f32 %v474, 0.0
  %v655 = vmax.f32 %v475, 0.0
  %v656 = vmax.f32 %v476, 0.0
  %v657 = vmax.f32 %v477, 0.0
  %v658 = vmax.f32 %v478, 0.0
  %v659 = vmax.f32 %v479, 0.0
  %v660 = vmax.f32 %v480, 0.0
  %v661 = vmax.f32 %v481, 0.0
  %v662 = vmax.f32 %v482, 0.0
  %v663 = vmax.f32 %v483, 0.0
  %v664 = vmax.f32 %v484, 0.0
  %v665 = vmax.f32 %v485, 0.0
  %v666 = vmax.f32 %v486, 0.0
  %v667 = vmax.f32 %v487, 0.0
  %v668 = vmax.f32 %v488, 0.0
  %v669 = vmax.f32 %v489, 0.0
  %v670 = vmax.f32 %v490, 0.0
  %v671 = vmax.f32 %v491, 0.0
  %v672 = vmax.f32 %v492, 0.0
  %v673 = vmax.f32 %v493, 0.0
  %v674 = vmax.f32 %v494, 0.0
  %v675 = vmax.f32 %v495, 0.0
  %v676 = vmax.f32 %v496, 0.0
  %v677 = vmax.f32 %v497, 0.0
  %v678 = vmax.f32 %v498, 0.0
  %v679 = vmax.f32 %v499, 0.0
  %v680 = vmax.f32 %v500, 0.0
  %v681 = vmax.f32 %v501, 0.0
  %v682 = vmax.f32 %v502, 0.0
  %v683 = vmax.f32 %v503, 0.0
  %v684 = vmax.f32 %v504, 0.0
  %v685 = vmax.f32 %v505, 0.0
  %v686 = vmax.f32 %v506, 0.0
  %v687 = vmax.f32 %v507, 0.0
  %v688 = vmax.f32 %v508, 0.0
  %v689 = vmax.f32 %v509, 0.0
  %v690 = vmax.f32 %v510, 0.0
  %v691 = vmax.f32 %v511, 0.0
  %v692 = vmax.f32 %v512, 0.0
  %v693 = vmax.f32 %v513, 0.0
  %v694 = vmax.f32 %v514, 0.0
  %v695 = vmax.f32 %v515, 0.0
  %v696 = vmax.f32 %v516, 0.0
  %v697 = vmax.f32 %v517, 0.0
  %v698 = vmax.f32 %v518, 0.0
  %v699 = vmax.f32 %v519, 0.0
  %v700 = vmax.f32 %v520, 0.0
  %v701 = vmax.f32 %v521, 0.0
  %v702 = vmax.f32 %v522, 0.0
  %v703 = vmax.f32 %v523, 0.0
  %v704 = vmax.f32 %v524, 0.0
  %v705 = vmax.f32 %v525, 0.0
  %v706 = vmax.f32 %v526, 0.0
  %v707 = vmax.f32 %v527, 0.0
  %v708 = vmax.f32 %v528, 0.0
  %v709 = vmax.f32 %v529, 0.0
  %v710 = vmax.f32 %v530, 0.0
  %v711 = vmax.f32 %v531, 0.0
  %v712 = vmax.f32 %v532, 0.0
  %v713 = vmax.f32 %v533, 0.0
  %v714 = vmax.f32 %v534, 0.0
  %v715 = vmax.f32 %v535, 0.0
  %v716 = vmax.f32 %v536, 0.0
  %v717 = vmax.f32 %v537, 0.0
  %v718 = vmax.f32 %v538, 0.0
  %v719 = vmax.f32 %v539, 0.0
  %v720 = vmax.f32 %v540, 0.0
  %v721 = vmax.f32 %v541, 0.0
  %v722 = vmax.f32 %v542, 0.0
  %v723 = vmax.f32 %v543, 0.0
  %v724 = vmax.f32 %v544, 0.0
  %v725 = vmax.f32 %v545, 0.0
  %v726 = vmax.f32 %v546, 0.0
  %v727 = vmax.f32 %v547, 0.0
  %v728 = vmax.f32 %v548, 0.0
  %v729 = vmax.f32 %v549, 0.0
  %v730 = vmax.f32 %v550, 0.0
  %v731 = vmax.f32 %v551, 0.0
  %v732 = vmax.f32 %v552, 0.0
  %v733 = vmax.f32 %v553, 0.0
  %v734 = vmax.f32 %v554, 0.0
  %v735 = vmax.f32 %v555, 0.0
  %v736 = vmax.f32 %v556, 0.0
  %v737 = vld [vmem:[%s2] sm:$0xff]
  %v738 = vld [vmem:[%s2 + $0x8] sm:$0xff]
  %v739 = vld [vmem:[%s2 + $0x10] sm:$0xff]
  %v740 = vld [vmem:[%s2 + $0x18] sm:$0xff]
  %v741 = vld [vmem:[%s2 + $0x20] sm:$0xff]
  %v742 = vld [vmem:[%s2 + $0x28] sm:$0xff]
  %v743 = vld [vmem:[%s2 + $0x30] sm:$0xff]
  %v744 = vld [vmem:[%s2 + $0x38] sm:$0xff]
  %v745 = vld [vmem:[%s2 + $0x40] sm:$0xff]
  %v746 = vld [vmem:[%s2 + $0x48] sm:$0xff]
  %v747 = vld [vmem:[%s2 + $0x50] sm:$0xff]
  %v748 = vld [vmem:[%s2 + $0x58] sm:$0xff]
  %v749 = vld [vmem:[%s2 + $0x60] sm:$0xff]
  %v750 = vld [vmem:[%s2 + $0x68] sm:$0xff]
  %v751 = vld [vmem:[%s2 + $0x70] sm:$0xff]
  %v752 = vld [vmem:[%s2 + $0x78] sm:$0xff]
  %v753 = vld [vmem:[%s2 + $0x80] sm:$0xff]
  %v754 = vld [vmem:[%s2 + $0x88] sm:$0xff]
  %v755 = vld [vmem:[%s2 + $0x90] sm:$0xff]
  %v756 = vld [vmem:[%s2 + $0x98] sm:$0xff]
  %v757 = vld [vmem:[%s2 + $0xa0] sm:$0xff]
  %v758 = vld [vmem:[%s2 + $0xa8] sm:$0xff]
  %v759 = vld [vmem:[%s2 + $0xb0] sm:$0xff]
  %v760 = vld [vmem:[%s2 + $0xb8] sm:$0xff]
  %v761 = vld [vmem:[%s2 + $0xc0] sm:$0xff]
  %v762 = vld [vmem:[%s2 + $0xc8] sm:$0xff]
  %v763 = vld [vmem:[%s2 + $0xd0] sm:$0xff]
  %v764 = vld [vmem:[%s2 + $0xd8] sm:$0xff]
  %v765 = vld [vmem:[%s2 + $0xe0] sm:$0xff]
  %v766 = vld [vmem:[%s2 + $0xe8] sm:$0xff]
  %v767 = vld [vmem:[%s2 + $0xf0] sm:$0xff]
  %v768 = vld [vmem:[%s2 + $0xf8] sm:$0xff]
  %v769 = vld [vmem:[%s2 + $0x100] sm:$0xff]
  %v770 = vld [vmem:[%s2 + $0x108] sm:$0xff]
  %v771 = vld [vmem:[%s2 + $0x110] sm:$0xff]
  %v772 = vld [vmem:[%s2 + $0x118] sm:$0xff]
  %v773 = vld [vmem:[%s2 + $0x120] sm:$0xff]
  %v774 = vld [vmem:[%s2 + $0x128] sm:$0xff]
  %v775 = vld [vmem:[%s2 + $0x130] sm:$0xff]
  %v776 = vld [vmem:[%s2 + $0x138] sm:$0xff]
  %v777 = vld [vmem:[%s2 + $0x140] sm:$0xff]
  %v778 = vld [vmem:[%s2 + $0x148] sm:$0xff]
  %v779 = vld [vmem:[%s2 + $0x150] sm:$0xff]
  %v780 = vld [vmem:[%s2 + $0x158] sm:$0xff]
  %v781 = vld [vmem:[%s2 + $0x160] sm:$0xff]
  %v782 = vld [vmem:[%s2 + $0x168] sm:$0xff]
  %v783 = vld [vmem:[%s2 + $0x170] sm:$0xff]
  %v784 = vld [vmem:[%s2 + $0x178] sm:$0xff]
  %v785 = vld [vmem:[%s2 + $0x180] sm:$0xff]
  %v786 = vld [vmem:[%s2 + $0x188] sm:$0xff]
  %v787 = vld [vmem:[%s2 + $0x190] sm:$0xff]
  %v788 = vld [vmem:[%s2 + $0x198] sm:$0xff]
  %v789 = vld [vmem:[%s2 + $0x1a0] sm:$0xff]
  %v790 = vld [vmem:[%s2 + $0x1a8] sm:$0xff]
  %v791 = vld [vmem:[%s2 + $0x1b0] sm:$0xff]
  %v792 = vld [vmem:[%s2 + $0x1b8] sm:$0xff]
  %v793 = vld [vmem:[%s2 + $0x1c0] sm:$0xff]
  %v794 = vld [vmem:[%s2 + $0x1c8] sm:$0xff]
  %v795 = vld [vmem:[%s2 + $0x1d0] sm:$0xff]
  %v796 = vld [vmem:[%s2 + $0x1d8] sm:$0xff]
  %v797 = vld [vmem:[%s2 + $0x1e0] sm:$0xff]
  %v798 = vld [vmem:[%s2 + $0x1e8] sm:$0xff]
  %v799 = vld [vmem:[%s2 + $0x1f0] sm:$0xff]
  %v800 = vld [vmem:[%s2 + $0x1f8] sm:$0xff]
  %v801 = vld [vmem:[%s2 + $0x200] sm:$0xff]
  %v802 = vld [vmem:[%s2 + $0x208] sm:$0xff]
  %v803 = vld [vmem:[%s2 + $0x210] sm:$0xff]
  %v804 = vld [vmem:[%s2 + $0x218] sm:$0xff]
  %v805 = vld [vmem:[%s2 + $0x220] sm:$0xff]
  %v806 = vld [vmem:[%s2 + $0x228] sm:$0xff]
  %v807 = vld [vmem:[%s2 + $0x230] sm:$0xff]
  %v808 = vld [vmem:[%s2 + $0x238] sm:$0xff]
  %v809 = vld [vmem:[%s2 + $0x240] sm:$0xff]
  %v810 = vld [vmem:[%s2 + $0x248] sm:$0xff]
  %v811 = vld [vmem:[%s2 + $0x250] sm:$0xff]
  %v812 = vld [vmem:[%s2 + $0x258] sm:$0xff]
  %v813 = vld [vmem:[%s2 + $0x260] sm:$0xff]
  %v814 = vld [vmem:[%s2 + $0x268] sm:$0xff]
  %v815 = vld [vmem:[%s2 + $0x270] sm:$0xff]
  %v816 = vld [vmem:[%s2 + $0x278] sm:$0xff]
  %v817 = vld [vmem:[%s2 + $0x280] sm:$0xff]
  %v818 = vld [vmem:[%s2 + $0x288] sm:$0xff]
  %v819 = vld [vmem:[%s2 + $0x290] sm:$0xff]
  %v820 = vld [vmem:[%s2 + $0x298] sm:$0xff]
  %v821 = vld [vmem:[%s2 + $0x2a0] sm:$0xff]
  %v822 = vld [vmem:[%s2 + $0x2a8] sm:$0xff]
  %v823 = vld [vmem:[%s2 + $0x2b0] sm:$0xff]
  %v824 = vld [vmem:[%s2 + $0x2b8] sm:$0xff]
  %v825 = vld [vmem:[%s2 + $0x2c0] sm:$0xff]
  %v826 = vld [vmem:[%s2 + $0x2c8] sm:$0xff]
  %v827 = vld [vmem:[%s2 + $0x2d0] sm:$0xff]
  %v828 = vld [vmem:[%s2 + $0x2d8] sm:$0xff]
  %v829 = vld [vmem:[%s2 + $0x2e0] sm:$0xff]
  %v830 = vld [vmem:[%s2 + $0x2e8] sm:$0xff]
  %v831 = vld [vmem:[%s2 + $0x2f0] sm:$0xff]
  %v832 = vld [vmem:[%s2 + $0x2f8] sm:$0xff]
  %v833 = vld [vmem:[%s2 + $0x300] sm:$0xff]
  %v834 = vld [vmem:[%s2 + $0x308] sm:$0xff]
  %v835 = vld [vmem:[%s2 + $0x310] sm:$0xff]
  %v836 = vld [vmem:[%s2 + $0x318] sm:$0xff]
  %v837 = vld [vmem:[%s2 + $0x320] sm:$0xff]
  %v838 = vld [vmem:[%s2 + $0x328] sm:$0xff]
  %v839 = vld [vmem:[%s2 + $0x330] sm:$0xff]
  %v840 = vld [vmem:[%s2 + $0x338] sm:$0xff]
  %v841 = vld [vmem:[%s2 + $0x340] sm:$0xff]
  %v842 = vld [vmem:[%s2 + $0x348] sm:$0xff]
  %v843 = vld [vmem:[%s2 + $0x350] sm:$0xff]
  %v844 = vld [vmem:[%s2 + $0x358] sm:$0xff]
  %v845 = vld [vmem:[%s2 + $0x360] sm:$0xff]
  %v846 = vld [vmem:[%s2 + $0x368] sm:$0xff]
  %v847 = vld [vmem:[%s2 + $0x370] sm:$0xff]
  %v848 = vld [vmem:[%s2 + $0x378] sm:$0xff]
  %v849 = vld [vmem:[%s2 + $0x380] sm:$0xff]
  %v850 = vld [vmem:[%s2 + $0x388] sm:$0xff]
  %v851 = vld [vmem:[%s2 + $0x390] sm:$0xff]
  %v852 = vld [vmem:[%s2 + $0x398] sm:$0xff]
  %v853 = vld [vmem:[%s2 + $0x3a0] sm:$0xff]
  %v854 = vld [vmem:[%s2 + $0x3a8] sm:$0xff]
  %v855 = vld [vmem:[%s2 + $0x3b0] sm:$0xff]
  %v856 = vld [vmem:[%s2 + $0x3b8] sm:$0xff]
  %v857 = vld [vmem:[%s2 + $0x3c0] sm:$0xff]
  %v858 = vld [vmem:[%s2 + $0x3c8] sm:$0xff]
  %v859 = vld [vmem:[%s2 + $0x3d0] sm:$0xff]
  %v860 = vld [vmem:[%s2 + $0x3d8] sm:$0xff]
  %v861 = vld [vmem:[%s2 + $0x3e0] sm:$0xff]
  %v862 = vld [vmem:[%s2 + $0x3e8] sm:$0xff]
  %v863 = vld [vmem:[%s2 + $0x3f0] sm:$0xff]
  %v864 = vld [vmem:[%s2 + $0x3f8] sm:$0xff]
  %v865 = vld [vmem:[%s2 + $0x400] sm:$0xff]
  %v866 = vld [vmem:[%s2 + $0x408] sm:$0xff]
  %v867 = vld [vmem:[%s2 + $0x410] sm:$0xff]
  %v868 = vld [vmem:[%s2 + $0x418] sm:$0xff]
  %v869 = vld [vmem:[%s2 + $0x420] sm:$0xff]
  %v870 = vld [vmem:[%s2 + $0x428] sm:$0xff]
  %v871 = vld [vmem:[%s2 + $0x430] sm:$0xff]
  %v872 = vld [vmem:[%s2 + $0x438] sm:$0xff]
  %v873 = vld [vmem:[%s2 + $0x440] sm:$0xff]
  %v874 = vld [vmem:[%s2 + $0x448] sm:$0xff]
  %v875 = vld [vmem:[%s2 + $0x450] sm:$0xff]
  %v876 = vld [vmem:[%s2 + $0x458] sm:$0xff]
  %v877 = vld [vmem:[%s2 + $0x460] sm:$0xff]
  %v878 = vld [vmem:[%s2 + $0x468] sm:$0xff]
  %v879 = vld [vmem:[%s2 + $0x470] sm:$0xff]
  %v880 = vld [vmem:[%s2 + $0x478] sm:$0xff]
  %v881 = vld [vmem:[%s2 + $0x480] sm:$0xff]
  %v882 = vld [vmem:[%s2 + $0x488] sm:$0xff]
  %v883 = vld [vmem:[%s2 + $0x490] sm:$0xff]
  %v884 = vld [vmem:[%s2 + $0x498] sm:$0xff]
  %v885 = vld [vmem:[%s2 + $0x4a0] sm:$0xff]
  %v886 = vld [vmem:[%s2 + $0x4a8] sm:$0xff]
  %v887 = vld [vmem:[%s2 + $0x4b0] sm:$0xff]
  %v888 = vld [vmem:[%s2 + $0x4b8] sm:$0xff]
  %v889 = vld [vmem:[%s2 + $0x4c0] sm:$0xff]
  %v890 = vld [vmem:[%s2 + $0x4c8] sm:$0xff]
  %v891 = vld [vmem:[%s2 + $0x4d0] sm:$0xff]
  %v892 = vld [vmem:[%s2 + $0x4d8] sm:$0xff]
  %v893 = vld [vmem:[%s2 + $0x4e0] sm:$0xff]
  %v894 = vld [vmem:[%s2 + $0x4e8] sm:$0xff]
  %v895 = vld [vmem:[%s2 + $0x4f0] sm:$0xff]
  %v896 = vld [vmem:[%s2 + $0x4f8] sm:$0xff]
  %v897 = vld [vmem:[%s2 + $0x500] sm:$0xff]
  %v898 = vld [vmem:[%s2 + $0x508] sm:$0xff]
  %v899 = vld [vmem:[%s2 + $0x510] sm:$0xff]
  %v900 = vld [vmem:[%s2 + $0x518] sm:$0xff]
  %v901 = vld [vmem:[%s2 + $0x520] sm:$0xff]
  %v902 = vld [vmem:[%s2 + $0x528] sm:$0xff]
  %v903 = vld [vmem:[%s2 + $0x530] sm:$0xff]
  %v904 = vld [vmem:[%s2 + $0x538] sm:$0xff]
  %v905 = vld [vmem:[%s2 + $0x540] sm:$0xff]
  %v906 = vld [vmem:[%s2 + $0x548] sm:$0xff]
  %v907 = vld [vmem:[%s2 + $0x550] sm:$0xff]
  %v908 = vld [vmem:[%s2 + $0x558] sm:$0xff]
  %v909 = vld [vmem:[%s2 + $0x560] sm:$0xff]
  %v910 = vld [vmem:[%s2 + $0x568] sm:$0xff]
  %v911 = vld [vmem:[%s2 + $0x570] sm:$0xff]
  %v912 = vld [vmem:[%s2 + $0x578] sm:$0xff]
  %v913 = vld [vmem:[%s2 + $0x580] sm:$0xff]
  %v914 = vld [vmem:[%s2 + $0x588] sm:$0xff]
  %v915 = vld [vmem:[%s2 + $0x590] sm:$0xff]
  %v916 = vld [vmem:[%s2 + $0x598] sm:$0xff]
  %v917 = vld [vmem:[%s2 + $0x5a0] sm:$0xff]
  %v918 = vld [vmem:[%s2 + $0x5a8] sm:$0xff]
  %v919 = vld [vmem:[%s2 + $0x5b0] sm:$0xff]
  %v920 = vld [vmem:[%s2 + $0x5b8] sm:$0xff]
  %v921 = vld [vmem:[%s2 + $0x5c0] sm:$0xff]
  %v922 = vld [vmem:[%s2 + $0x5c8] sm:$0xff]
  %v923 = vld [vmem:[%s2 + $0x5d0] sm:$0xff]
  %v924 = vld [vmem:[%s2 + $0x5d8] sm:$0xff]
  %v925 = vld [vmem:[%s2 + $0x5e0] sm:$0xff]
  %v926 = vld [vmem:[%s2 + $0x5e8] sm:$0xff]
  %v927 = vld [vmem:[%s2 + $0x5f0] sm:$0xff]
  %v928 = vld [vmem:[%s2 + $0x5f8] sm:$0xff]
  %v929 = vld [vmem:[%s2 + $0x600] sm:$0xff]
  %v930 = vld [vmem:[%s2 + $0x608] sm:$0xff]
  %v931 = vld [vmem:[%s2 + $0x610] sm:$0xff]
  %v932 = vld [vmem:[%s2 + $0x618] sm:$0xff]
  %v933 = vld [vmem:[%s2 + $0x620] sm:$0xff]
  %v934 = vld [vmem:[%s2 + $0x628] sm:$0xff]
  %v935 = vld [vmem:[%s2 + $0x630] sm:$0xff]
  %v936 = vld [vmem:[%s2 + $0x638] sm:$0xff]
  %v937 = vld [vmem:[%s2 + $0x640] sm:$0xff]
  %v938 = vld [vmem:[%s2 + $0x648] sm:$0xff]
  %v939 = vld [vmem:[%s2 + $0x650] sm:$0xff]
  %v940 = vld [vmem:[%s2 + $0x658] sm:$0xff]
  %v941 = vld [vmem:[%s2 + $0x660] sm:$0xff]
  %v942 = vld [vmem:[%s2 + $0x668] sm:$0xff]
  %v943 = vld [vmem:[%s2 + $0x670] sm:$0xff]
  %v944 = vld [vmem:[%s2 + $0x678] sm:$0xff]
  %v945 = vld [vmem:[%s2 + $0x680] sm:$0xff]
  %v946 = vld [vmem:[%s2 + $0x688] sm:$0xff]
  %v947 = vld [vmem:[%s2 + $0x690] sm:$0xff]
  %v948 = vld [vmem:[%s2 + $0x698] sm:$0xff]
  %v949 = vld [vmem:[%s2 + $0x6a0] sm:$0xff]
  %v950 = vld [vmem:[%s2 + $0x6a8] sm:$0xff]
  %v951 = vld [vmem:[%s2 + $0x6b0] sm:$0xff]
  %v952 = vld [vmem:[%s2 + $0x6b8] sm:$0xff]
  %v953 = vld [vmem:[%s2 + $0x6c0] sm:$0xff]
  %v954 = vld [vmem:[%s2 + $0x6c8] sm:$0xff]
  %v955 = vld [vmem:[%s2 + $0x6d0] sm:$0xff]
  %v956 = vld [vmem:[%s2 + $0x6d8] sm:$0xff]
  %v957 = vld [vmem:[%s2 + $0x6e0] sm:$0xff]
  %v958 = vld [vmem:[%s2 + $0x6e8] sm:$0xff]
  %v959 = vld [vmem:[%s2 + $0x6f0] sm:$0xff]
  %v960 = vld [vmem:[%s2 + $0x6f8] sm:$0xff]
  %v961 = vld [vmem:[%s2 + $0x700] sm:$0xff]
  %v962 = vld [vmem:[%s2 + $0x708] sm:$0xff]
  %v963 = vld [vmem:[%s2 + $0x710] sm:$0xff]
  %v964 = vld [vmem:[%s2 + $0x718] sm:$0xff]
  %v965 = vld [vmem:[%s2 + $0x720] sm:$0xff]
  %v966 = vld [vmem:[%s2 + $0x728] sm:$0xff]
  %v967 = vld [vmem:[%s2 + $0x730] sm:$0xff]
  %v968 = vld [vmem:[%s2 + $0x738] sm:$0xff]
  %v969 = vld [vmem:[%s2 + $0x740] sm:$0xff]
  %v970 = vld [vmem:[%s2 + $0x748] sm:$0xff]
  %v971 = vld [vmem:[%s2 + $0x750] sm:$0xff]
  %v972 = vld [vmem:[%s2 + $0x758] sm:$0xff]
  %v973 = vld [vmem:[%s2 + $0x760] sm:$0xff]
  %v974 = vld [vmem:[%s2 + $0x768] sm:$0xff]
  %v975 = vld [vmem:[%s2 + $0x770] sm:$0xff]
  %v976 = vld [vmem:[%s2 + $0x778] sm:$0xff]
  %v977 = vld [vmem:[%s2 + $0x780] sm:$0xff]
  %v978 = vld [vmem:[%s2 + $0x788] sm:$0xff]
  %v979 = vld [vmem:[%s2 + $0x790] sm:$0xff]
  %v980 = vld [vmem:[%s2 + $0x798] sm:$0xff]
  %v981 = vld [vmem:[%s2 + $0x7a0] sm:$0xff]
  %v982 = vld [vmem:[%s2 + $0x7a8] sm:$0xff]
  %v983 = vld [vmem:[%s2 + $0x7b0] sm:$0xff]
  %v984 = vld [vmem:[%s2 + $0x7b8] sm:$0xff]
  %v985 = vld [vmem:[%s2 + $0x7c0] sm:$0xff]
  %v986 = vld [vmem:[%s2 + $0x7c8] sm:$0xff]
  %v987 = vld [vmem:[%s2 + $0x7d0] sm:$0xff]
  %v988 = vld [vmem:[%s2 + $0x7d8] sm:$0xff]
  %v989 = vld [vmem:[%s2 + $0x7e0] sm:$0xff]
  %v990 = vld [vmem:[%s2 + $0x7e8] sm:$0xff]
  %v991 = vld [vmem:[%s2 + $0x7f0] sm:$0xff]
  %v992 = vld [vmem:[%s2 + $0x7f8] sm:$0xff]
  %v993 = vld [vmem:[%s2 + $0x800] sm:$0xff]
  %v994 = vld [vmem:[%s2 + $0x808] sm:$0xff]
  %v995 = vld [vmem:[%s2 + $0x810] sm:$0xff]
  %v996 = vld [vmem:[%s2 + $0x818] sm:$0xff]
  %v997 = vld [vmem:[%s2 + $0x820] sm:$0xff]
  %v998 = vld [vmem:[%s2 + $0x828] sm:$0xff]
  %v999 = vld [vmem:[%s2 + $0x830] sm:$0xff]
  %v1000 = vld [vmem:[%s2 + $0x838] sm:$0xff]
  %v1001 = vld [vmem:[%s2 + $0x840] sm:$0xff]
  %v1002 = vld [vmem:[%s2 + $0x848] sm:$0xff]
  %v1003 = vld [vmem:[%s2 + $0x850] sm:$0xff]
  %v1004 = vld [vmem:[%s2 + $0x858] sm:$0xff]
  %v1005 = vld [vmem:[%s2 + $0x860] sm:$0xff]
  %v1006 = vld [vmem:[%s2 + $0x868] sm:$0xff]
  %v1007 = vld [vmem:[%s2 + $0x870] sm:$0xff]
  %v1008 = vld [vmem:[%s2 + $0x878] sm:$0xff]
  %v1009 = vld [vmem:[%s2 + $0x880] sm:$0xff]
  %v1010 = vld [vmem:[%s2 + $0x888] sm:$0xff]
  %v1011 = vld [vmem:[%s2 + $0x890] sm:$0xff]
  %v1012 = vld [vmem:[%s2 + $0x898] sm:$0xff]
  %v1013 = vld [vmem:[%s2 + $0x8a0] sm:$0xff]
  %v1014 = vld [vmem:[%s2 + $0x8a8] sm:$0xff]
  %v1015 = vld [vmem:[%s2 + $0x8b0] sm:$0xff]
  %v1016 = vld [vmem:[%s2 + $0x8b8] sm:$0xff]
  %v1017 = vld [vmem:[%s2 + $0x8c0] sm:$0xff]
  %v1018 = vld [vmem:[%s2 + $0x8c8] sm:$0xff]
  %v1019 = vld [vmem:[%s2 + $0x8d0] sm:$0xff]
  %v1020 = vld [vmem:[%s2 + $0x8d8] sm:$0xff]
  %v1021 = vld [vmem:[%s2 + $0x8e0] sm:$0xff]
  %v1022 = vld [vmem:[%s2 + $0x8e8] sm:$0xff]
  %v1023 = vld [vmem:[%s2 + $0x8f0] sm:$0xff]
  %v1024 = vld [vmem:[%s2 + $0x8f8] sm:$0xff]
  %v1025 = vld [vmem:[%s2 + $0x900] sm:$0xff]
  %v1026 = vld [vmem:[%s2 + $0x908] sm:$0xff]
  %v1027 = vld [vmem:[%s2 + $0x910] sm:$0xff]
  %v1028 = vld [vmem:[%s2 + $0x918] sm:$0xff]
  %v1029 = vld [vmem:[%s2 + $0x920] sm:$0xff]
  %v1030 = vld [vmem:[%s2 + $0x928] sm:$0xff]
  %v1031 = vld [vmem:[%s2 + $0x930] sm:$0xff]
  %v1032 = vld [vmem:[%s2 + $0x938] sm:$0xff]
  %v1033 = vld [vmem:[%s2 + $0x940] sm:$0xff]
  %v1034 = vld [vmem:[%s2 + $0x948] sm:$0xff]
  %v1035 = vld [vmem:[%s2 + $0x950] sm:$0xff]
  %v1036 = vld [vmem:[%s2 + $0x958] sm:$0xff]
  %v1037 = vld [vmem:[%s2 + $0x960] sm:$0xff]
  %v1038 = vld [vmem:[%s2 + $0x968] sm:$0xff]
  %v1039 = vld [vmem:[%s2 + $0x970] sm:$0xff]
  %v1040 = vld [vmem:[%s2 + $0x978] sm:$0xff]
  %v1041 = vld [vmem:[%s2 + $0x980] sm:$0xff]
  %v1042 = vld [vmem:[%s2 + $0x988] sm:$0xff]
  %v1043 = vld [vmem:[%s2 + $0x990] sm:$0xff]
  %v1044 = vld [vmem:[%s2 + $0x998] sm:$0xff]
  %v1045 = vld [vmem:[%s2 + $0x9a0] sm:$0xff]
  %v1046 = vld [vmem:[%s2 + $0x9a8] sm:$0xff]
  %v1047 = vld [vmem:[%s2 + $0x9b0] sm:$0xff]
  %v1048 = vld [vmem:[%s2 + $0x9b8] sm:$0xff]
  %v1049 = vld [vmem:[%s2 + $0x9c0] sm:$0xff]
  %v1050 = vld [vmem:[%s2 + $0x9c8] sm:$0xff]
  %v1051 = vld [vmem:[%s2 + $0x9d0] sm:$0xff]
  %v1052 = vld [vmem:[%s2 + $0x9d8] sm:$0xff]
  %v1053 = vld [vmem:[%s2 + $0x9e0] sm:$0xff]
  %v1054 = vld [vmem:[%s2 + $0x9e8] sm:$0xff]
  %v1055 = vld [vmem:[%s2 + $0x9f0] sm:$0xff]
  %v1056 = vld [vmem:[%s2 + $0x9f8] sm:$0xff]
  %v1057 = vld [vmem:[%s2 + $0xa00] sm:$0xff]
  %v1058 = vld [vmem:[%s2 + $0xa08] sm:$0xff]
  %v1059 = vld [vmem:[%s2 + $0xa10] sm:$0xff]
  %v1060 = vld [vmem:[%s2 + $0xa18] sm:$0xff]
  %v1061 = vld [vmem:[%s2 + $0xa20] sm:$0xff]
  %v1062 = vld [vmem:[%s2 + $0xa28] sm:$0xff]
  %v1063 = vld [vmem:[%s2 + $0xa30] sm:$0xff]
  %v1064 = vld [vmem:[%s2 + $0xa38] sm:$0xff]
  %v1065 = vld [vmem:[%s2 + $0xa40] sm:$0xff]
  %v1066 = vld [vmem:[%s2 + $0xa48] sm:$0xff]
  %v1067 = vld [vmem:[%s2 + $0xa50] sm:$0xff]
  %v1068 = vld [vmem:[%s2 + $0xa58] sm:$0xff]
  %v1069 = vld [vmem:[%s2 + $0xa60] sm:$0xff]
  %v1070 = vld [vmem:[%s2 + $0xa68] sm:$0xff]
  %v1071 = vld [vmem:[%s2 + $0xa70] sm:$0xff]
  %v1072 = vld [vmem:[%s2 + $0xa78] sm:$0xff]
  %v1073 = vld [vmem:[%s2 + $0xa80] sm:$0xff]
  %v1074 = vld [vmem:[%s2 + $0xa88] sm:$0xff]
  %v1075 = vld [vmem:[%s2 + $0xa90] sm:$0xff]
  %v1076 = vld [vmem:[%s2 + $0xa98] sm:$0xff]
  %v1077 = vld [vmem:[%s2 + $0xaa0] sm:$0xff]
  %v1078 = vld [vmem:[%s2 + $0xaa8] sm:$0xff]
  %v1079 = vld [vmem:[%s2 + $0xab0] sm:$0xff]
  %v1080 = vld [vmem:[%s2 + $0xab8] sm:$0xff]
  %v1081 = vld [vmem:[%s2 + $0xac0] sm:$0xff]
  %v1082 = vld [vmem:[%s2 + $0xac8] sm:$0xff]
  %v1083 = vld [vmem:[%s2 + $0xad0] sm:$0xff]
  %v1084 = vld [vmem:[%s2 + $0xad8] sm:$0xff]
  %v1085 = vld [vmem:[%s2 + $0xae0] sm:$0xff]
  %v1086 = vld [vmem:[%s2 + $0xae8] sm:$0xff]
  %v1087 = vld [vmem:[%s2 + $0xaf0] sm:$0xff]
  %v1088 = vld [vmem:[%s2 + $0xaf8] sm:$0xff]
  %v1089 = vld [vmem:[%s2 + $0xb00] sm:$0xff]
  %v1090 = vld [vmem:[%s2 + $0xb08] sm:$0xff]
  %v1091 = vld [vmem:[%s2 + $0xb10] sm:$0xff]
  %v1092 = vld [vmem:[%s2 + $0xb18] sm:$0xff]
  %v1093 = vld [vmem:[%s2 + $0xb20] sm:$0xff]
  %v1094 = vld [vmem:[%s2 + $0xb28] sm:$0xff]
  %v1095 = vld [vmem:[%s2 + $0xb30] sm:$0xff]
  %v1096 = vld [vmem:[%s2 + $0xb38] sm:$0xff]
  %v1097 = vld [vmem:[%s2 + $0xb40] sm:$0xff]
  %v1098 = vld [vmem:[%s2 + $0xb48] sm:$0xff]
  %v1099 = vld [vmem:[%s2 + $0xb50] sm:$0xff]
  %v1100 = vld [vmem:[%s2 + $0xb58] sm:$0xff]
  %v1101 = vld [vmem:[%s2 + $0xb60] sm:$0xff]
  %v1102 = vld [vmem:[%s2 + $0xb68] sm:$0xff]
  %v1103 = vld [vmem:[%s2 + $0xb70] sm:$0xff]
  %v1104 = vld [vmem:[%s2 + $0xb78] sm:$0xff]
  %v1105 = vld [vmem:[%s2 + $0xb80] sm:$0xff]
  %v1106 = vld [vmem:[%s2 + $0xb88] sm:$0xff]
  %v1107 = vld [vmem:[%s2 + $0xb90] sm:$0xff]
  %v1108 = vld [vmem:[%s2 + $0xb98] sm:$0xff]
  %v1109 = vld [vmem:[%s2 + $0xba0] sm:$0xff]
  %v1110 = vld [vmem:[%s2 + $0xba8] sm:$0xff]
  %v1111 = vld [vmem:[%s2 + $0xbb0] sm:$0xff]
  %v1112 = vld [vmem:[%s2 + $0xbb8] sm:$0xff]
  %v1113 = vld [vmem:[%s2 + $0xbc0] sm:$0xff]
  %v1114 = vld [vmem:[%s2 + $0xbc8] sm:$0xff]
  %v1115 = vld [vmem:[%s2 + $0xbd0] sm:$0xff]
  %v1116 = vld [vmem:[%s2 + $0xbd8] sm:$0xff]
  %v1117 = vld [vmem:[%s2 + $0xbe0] sm:$0xff]
  %v1118 = vld [vmem:[%s2 + $0xbe8] sm:$0xff]
  %v1119 = vld [vmem:[%s2 + $0xbf0] sm:$0xff]
  %v1120 = vld [vmem:[%s2 + $0xbf8] sm:$0xff]
  %v1121 = vld [vmem:[%s2 + $0xc00] sm:$0xff]
  %v1122 = vld [vmem:[%s2 + $0xc08] sm:$0xff]
  %v1123 = vld [vmem:[%s2 + $0xc10] sm:$0xff]
  %v1124 = vld [vmem:[%s2 + $0xc18] sm:$0xff]
  %v1125 = vld [vmem:[%s2 + $0xc20] sm:$0xff]
  %v1126 = vld [vmem:[%s2 + $0xc28] sm:$0xff]
  %v1127 = vld [vmem:[%s2 + $0xc30] sm:$0xff]
  %v1128 = vld [vmem:[%s2 + $0xc38] sm:$0xff]
  %v1129 = vld [vmem:[%s2 + $0xc40] sm:$0xff]
  %v1130 = vld [vmem:[%s2 + $0xc48] sm:$0xff]
  %v1131 = vld [vmem:[%s2 + $0xc50] sm:$0xff]
  %v1132 = vld [vmem:[%s2 + $0xc58] sm:$0xff]
  %v1133 = vld [vmem:[%s2 + $0xc60] sm:$0xff]
  %v1134 = vld [vmem:[%s2 + $0xc68] sm:$0xff]
  %v1135 = vld [vmem:[%s2 + $0xc70] sm:$0xff]
  %v1136 = vld [vmem:[%s2 + $0xc78] sm:$0xff]
  %v1137 = vld [vmem:[%s2 + $0xc80] sm:$0xff]
  %v1138 = vld [vmem:[%s2 + $0xc88] sm:$0xff]
  %v1139 = vld [vmem:[%s2 + $0xc90] sm:$0xff]
  %v1140 = vld [vmem:[%s2 + $0xc98] sm:$0xff]
  %v1141 = vld [vmem:[%s2 + $0xca0] sm:$0xff]
  %v1142 = vld [vmem:[%s2 + $0xca8] sm:$0xff]
  %v1143 = vld [vmem:[%s2 + $0xcb0] sm:$0xff]
  %v1144 = vld [vmem:[%s2 + $0xcb8] sm:$0xff]
  %v1145 = vld [vmem:[%s2 + $0xcc0] sm:$0xff]
  %v1146 = vld [vmem:[%s2 + $0xcc8] sm:$0xff]
  %v1147 = vld [vmem:[%s2 + $0xcd0] sm:$0xff]
  %v1148 = vld [vmem:[%s2 + $0xcd8] sm:$0xff]
  %v1149 = vld [vmem:[%s2 + $0xce0] sm:$0xff]
  %v1150 = vld [vmem:[%s2 + $0xce8] sm:$0xff]
  %v1151 = vld [vmem:[%s2 + $0xcf0] sm:$0xff]
  %v1152 = vld [vmem:[%s2 + $0xcf8] sm:$0xff]
  %v1153 = vld [vmem:[%s2 + $0xd00] sm:$0xff]
  %v1154 = vld [vmem:[%s2 + $0xd08] sm:$0xff]
  %v1155 = vld [vmem:[%s2 + $0xd10] sm:$0xff]
  %v1156 = vld [vmem:[%s2 + $0xd18] sm:$0xff]
  %v1157 = vld [vmem:[%s2 + $0xd20] sm:$0xff]
  %v1158 = vld [vmem:[%s2 + $0xd28] sm:$0xff]
  %v1159 = vld [vmem:[%s2 + $0xd30] sm:$0xff]
  %v1160 = vld [vmem:[%s2 + $0xd38] sm:$0xff]
  %v1161 = vld [vmem:[%s2 + $0xd40] sm:$0xff]
  %v1162 = vld [vmem:[%s2 + $0xd48] sm:$0xff]
  %v1163 = vld [vmem:[%s2 + $0xd50] sm:$0xff]
  %v1164 = vld [vmem:[%s2 + $0xd58] sm:$0xff]
  %v1165 = vld [vmem:[%s2 + $0xd60] sm:$0xff]
  %v1166 = vld [vmem:[%s2 + $0xd68] sm:$0xff]
  %v1167 = vld [vmem:[%s2 + $0xd70] sm:$0xff]
  %v1168 = vld [vmem:[%s2 + $0xd78] sm:$0xff]
  %v1169 = vld [vmem:[%s2 + $0xd80] sm:$0xff]
  %v1170 = vld [vmem:[%s2 + $0xd88] sm:$0xff]
  %v1171 = vld [vmem:[%s2 + $0xd90] sm:$0xff]
  %v1172 = vld [vmem:[%s2 + $0xd98] sm:$0xff]
  %v1173 = vld [vmem:[%s2 + $0xda0] sm:$0xff]
  %v1174 = vld [vmem:[%s2 + $0xda8] sm:$0xff]
  %v1175 = vld [vmem:[%s2 + $0xdb0] sm:$0xff]
  %v1176 = vld [vmem:[%s2 + $0xdb8] sm:$0xff]
  %v1177 = vld [vmem:[%s2 + $0xdc0] sm:$0xff]
  %v1178 = vld [vmem:[%s2 + $0xdc8] sm:$0xff]
  %v1179 = vld [vmem:[%s2 + $0xdd0] sm:$0xff]
  %v1180 = vld [vmem:[%s2 + $0xdd8] sm:$0xff]
  %v1181 = vld [vmem:[%s2 + $0xde0] sm:$0xff]
  %v1182 = vld [vmem:[%s2 + $0xde8] sm:$0xff]
  %v1183 = vld [vmem:[%s2 + $0xdf0] sm:$0xff]
  %v1184 = vld [vmem:[%s2 + $0xdf8] sm:$0xff]
  %v1185 = vld [vmem:[%s2 + $0xe00] sm:$0xff]
  %v1186 = vld [vmem:[%s2 + $0xe08] sm:$0xff]
  %v1187 = vld [vmem:[%s2 + $0xe10] sm:$0xff]
  %v1188 = vld [vmem:[%s2 + $0xe18] sm:$0xff]
  %v1189 = vld [vmem:[%s2 + $0xe20] sm:$0xff]
  %v1190 = vld [vmem:[%s2 + $0xe28] sm:$0xff]
  %v1191 = vld [vmem:[%s2 + $0xe30] sm:$0xff]
  %v1192 = vld [vmem:[%s2 + $0xe38] sm:$0xff]
  %v1193 = vld [vmem:[%s2 + $0xe40] sm:$0xff]
  %v1194 = vld [vmem:[%s2 + $0xe48] sm:$0xff]
  %v1195 = vld [vmem:[%s2 + $0xe50] sm:$0xff]
  %v1196 = vld [vmem:[%s2 + $0xe58] sm:$0xff]
  %v1197 = vld [vmem:[%s2 + $0xe60] sm:$0xff]
  %v1198 = vld [vmem:[%s2 + $0xe68] sm:$0xff]
  %v1199 = vld [vmem:[%s2 + $0xe70] sm:$0xff]
  %v1200 = vld [vmem:[%s2 + $0xe78] sm:$0xff]
  %v1201 = vld [vmem:[%s2 + $0xe80] sm:$0xff]
  %v1202 = vld [vmem:[%s2 + $0xe88] sm:$0xff]
  %v1203 = vld [vmem:[%s2 + $0xe90] sm:$0xff]
  %v1204 = vld [vmem:[%s2 + $0xe98] sm:$0xff]
  %v1205 = vld [vmem:[%s2 + $0xea0] sm:$0xff]
  %v1206 = vld [vmem:[%s2 + $0xea8] sm:$0xff]
  %v1207 = vld [vmem:[%s2 + $0xeb0] sm:$0xff]
  %v1208 = vld [vmem:[%s2 + $0xeb8] sm:$0xff]
  %v1209 = vld [vmem:[%s2 + $0xec0] sm:$0xff]
  %v1210 = vld [vmem:[%s2 + $0xec8] sm:$0xff]
  %v1211 = vld [vmem:[%s2 + $0xed0] sm:$0xff]
  %v1212 = vld [vmem:[%s2 + $0xed8] sm:$0xff]
  %v1213 = vld [vmem:[%s2 + $0xee0] sm:$0xff]
  %v1214 = vld [vmem:[%s2 + $0xee8] sm:$0xff]
  %v1215 = vld [vmem:[%s2 + $0xef0] sm:$0xff]
  %v1216 = vld [vmem:[%s2 + $0xef8] sm:$0xff]
  %v1217 = vld [vmem:[%s2 + $0xf00] sm:$0xff]
  %v1218 = vld [vmem:[%s2 + $0xf08] sm:$0xff]
  %v1219 = vld [vmem:[%s2 + $0xf10] sm:$0xff]
  %v1220 = vld [vmem:[%s2 + $0xf18] sm:$0xff]
  %v1221 = vld [vmem:[%s2 + $0xf20] sm:$0xff]
  %v1222 = vld [vmem:[%s2 + $0xf28] sm:$0xff]
  %v1223 = vld [vmem:[%s2 + $0xf30] sm:$0xff]
  %v1224 = vld [vmem:[%s2 + $0xf38] sm:$0xff]
  %v1225 = vld [vmem:[%s2 + $0xf40] sm:$0xff]
  %v1226 = vld [vmem:[%s2 + $0xf48] sm:$0xff]
  %v1227 = vld [vmem:[%s2 + $0xf50] sm:$0xff]
  %v1228 = vld [vmem:[%s2 + $0xf58] sm:$0xff]
  %v1229 = vld [vmem:[%s2 + $0xf60] sm:$0xff]
  %v1230 = vld [vmem:[%s2 + $0xf68] sm:$0xff]
  %v1231 = vld [vmem:[%s2 + $0xf70] sm:$0xff]
  %v1232 = vld [vmem:[%s2 + $0xf78] sm:$0xff]
  %v1233 = vld [vmem:[%s2 + $0xf80] sm:$0xff]
  %v1234 = vld [vmem:[%s2 + $0xf88] sm:$0xff]
  %v1235 = vld [vmem:[%s2 + $0xf90] sm:$0xff]
  %v1236 = vld [vmem:[%s2 + $0xf98] sm:$0xff]
  %v1237 = vld [vmem:[%s2 + $0xfa0] sm:$0xff]
  %v1238 = vld [vmem:[%s2 + $0xfa8] sm:$0xff]
  %v1239 = vld [vmem:[%s2 + $0xfb0] sm:$0xff]
  %v1240 = vld [vmem:[%s2 + $0xfb8] sm:$0xff]
  %v1241 = vld [vmem:[%s2 + $0xfc0] sm:$0xff]
  %v1242 = vld [vmem:[%s2 + $0xfc8] sm:$0xff]
  %v1243 = vld [vmem:[%s2 + $0xfd0] sm:$0xff]
  %v1244 = vld [vmem:[%s2 + $0xfd8] sm:$0xff]
  %v1245 = vld [vmem:[%s2 + $0xfe0] sm:$0xff]
  %v1246 = vld [vmem:[%s2 + $0xfe8] sm:$0xff]
  %v1247 = vld [vmem:[%s2 + $0xff0] sm:$0xff]
  %v1248 = vld [vmem:[%s2 + $0xff8] sm:$0xff]
  %v1249 = vld [vmem:[%s2 + $0x1000] sm:$0xff]
  %v1250 = vld [vmem:[%s2 + $0x1008] sm:$0xff]
  %v1251 = vld [vmem:[%s2 + $0x1010] sm:$0xff]
  %v1252 = vld [vmem:[%s2 + $0x1018] sm:$0xff]
  %v1253 = vld [vmem:[%s2 + $0x1020] sm:$0xff]
  %v1254 = vld [vmem:[%s2 + $0x1028] sm:$0xff]
  %v1255 = vld [vmem:[%s2 + $0x1030] sm:$0xff]
  %v1256 = vld [vmem:[%s2 + $0x1038] sm:$0xff]
  %v1257 = vld [vmem:[%s2 + $0x1040] sm:$0xff]
  %v1258 = vld [vmem:[%s2 + $0x1048] sm:$0xff]
  %v1259 = vld [vmem:[%s2 + $0x1050] sm:$0xff]
  %v1260 = vld [vmem:[%s2 + $0x1058] sm:$0xff]
  %v1261 = vld [vmem:[%s2 + $0x1060] sm:$0xff]
  %v1262 = vld [vmem:[%s2 + $0x1068] sm:$0xff]
  %v1263 = vld [vmem:[%s2 + $0x1070] sm:$0xff]
  %v1264 = vld [vmem:[%s2 + $0x1078] sm:$0xff]
  %v1265 = vld [vmem:[%s2 + $0x1080] sm:$0xff]
  %v1266 = vld [vmem:[%s2 + $0x1088] sm:$0xff]
  %v1267 = vld [vmem:[%s2 + $0x1090] sm:$0xff]
  %v1268 = vld [vmem:[%s2 + $0x1098] sm:$0xff]
  %v1269 = vld [vmem:[%s2 + $0x10a0] sm:$0xff]
  %v1270 = vld [vmem:[%s2 + $0x10a8] sm:$0xff]
  %v1271 = vld [vmem:[%s2 + $0x10b0] sm:$0xff]
  %v1272 = vld [vmem:[%s2 + $0x10b8] sm:$0xff]
  %v1273 = vld [vmem:[%s2 + $0x10c0] sm:$0xff]
  %v1274 = vld [vmem:[%s2 + $0x10c8] sm:$0xff]
  %v1275 = vld [vmem:[%s2 + $0x10d0] sm:$0xff]
  %v1276 = vld [vmem:[%s2 + $0x10d8] sm:$0xff]
  %vm1277 = vcmask 654336
  %v1279 = vsel %vm1277, %v742, 0
  %v1282 = vsel %vm1277, %v748, 0
  %v1285 = vsel %vm1277, %v754, 0
  %v1288 = vsel %vm1277, %v760, 0
  %v1291 = vsel %vm1277, %v766, 0
  %v1294 = vsel %vm1277, %v772, 0
  %v1297 = vsel %vm1277, %v778, 0
  %v1300 = vsel %vm1277, %v784, 0
  %v1303 = vsel %vm1277, %v790, 0
  %v1306 = vsel %vm1277, %v796, 0
  %v1309 = vsel %vm1277, %v802, 0
  %v1312 = vsel %vm1277, %v808, 0
  %v1315 = vsel %vm1277, %v814, 0
  %v1318 = vsel %vm1277, %v820, 0
  %v1321 = vsel %vm1277, %v826, 0
  %v1324 = vsel %vm1277, %v832, 0
  %v1327 = vsel %vm1277, %v838, 0
  %v1330 = vsel %vm1277, %v844, 0
  %v1333 = vsel %vm1277, %v850, 0
  %v1336 = vsel %vm1277, %v856, 0
  %v1339 = vsel %vm1277, %v862, 0
  %v1342 = vsel %vm1277, %v868, 0
  %v1345 = vsel %vm1277, %v874, 0
  %v1348 = vsel %vm1277, %v880, 0
  %v1351 = vsel %vm1277, %v886, 0
  %v1354 = vsel %vm1277, %v892, 0
  %v1357 = vsel %vm1277, %v898, 0
  %v1360 = vsel %vm1277, %v904, 0
  %v1363 = vsel %vm1277, %v910, 0
  %v1366 = vsel %vm1277, %v916, 0
  %v1369 = vsel %vm1277, %v922, 0
  %v1372 = vsel %vm1277, %v928, 0
  %v1375 = vsel %vm1277, %v934, 0
  %v1378 = vsel %vm1277, %v940, 0
  %v1381 = vsel %vm1277, %v946, 0
  %v1384 = vsel %vm1277, %v952, 0
  %v1387 = vsel %vm1277, %v958, 0
  %v1390 = vsel %vm1277, %v964, 0
  %v1393 = vsel %vm1277, %v970, 0
  %v1396 = vsel %vm1277, %v976, 0
  %v1399 = vsel %vm1277, %v982, 0
  %v1402 = vsel %vm1277, %v988, 0
  %v1405 = vsel %vm1277, %v994, 0
  %v1408 = vsel %vm1277, %v1000, 0
  %v1411 = vsel %vm1277, %v1006, 0
  %v1414 = vsel %vm1277, %v1012, 0
  %v1417 = vsel %vm1277, %v1018, 0
  %v1420 = vsel %vm1277, %v1024, 0
  %v1423 = vsel %vm1277, %v1030, 0
  %v1426 = vsel %vm1277, %v1036, 0
  %v1429 = vsel %vm1277, %v1042, 0
  %v1432 = vsel %vm1277, %v1048, 0
  %v1435 = vsel %vm1277, %v1054, 0
  %v1438 = vsel %vm1277, %v1060, 0
  %v1441 = vsel %vm1277, %v1066, 0
  %v1444 = vsel %vm1277, %v1072, 0
  %v1447 = vsel %vm1277, %v1078, 0
  %v1450 = vsel %vm1277, %v1084, 0
  %v1453 = vsel %vm1277, %v1090, 0
  %v1456 = vsel %vm1277, %v1096, 0
  %v1459 = vsel %vm1277, %v1102, 0
  %v1462 = vsel %vm1277, %v1108, 0
  %v1465 = vsel %vm1277, %v1114, 0
  %v1468 = vsel %vm1277, %v1120, 0
  %v1471 = vsel %vm1277, %v1126, 0
  %v1474 = vsel %vm1277, %v1132, 0
  %v1477 = vsel %vm1277, %v1138, 0
  %v1480 = vsel %vm1277, %v1144, 0
  %v1483 = vsel %vm1277, %v1150, 0
  %v1486 = vsel %vm1277, %v1156, 0
  %v1489 = vsel %vm1277, %v1162, 0
  %v1492 = vsel %vm1277, %v1168, 0
  %v1495 = vsel %vm1277, %v1174, 0
  %v1498 = vsel %vm1277, %v1180, 0
  %v1501 = vsel %vm1277, %v1186, 0
  %v1504 = vsel %vm1277, %v1192, 0
  %v1507 = vsel %vm1277, %v1198, 0
  %v1510 = vsel %vm1277, %v1204, 0
  %v1513 = vsel %vm1277, %v1210, 0
  %v1516 = vsel %vm1277, %v1216, 0
  %v1519 = vsel %vm1277, %v1222, 0
  %v1522 = vsel %vm1277, %v1228, 0
  %v1525 = vsel %vm1277, %v1234, 0
  %v1528 = vsel %vm1277, %v1240, 0
  %v1531 = vsel %vm1277, %v1246, 0
  %v1534 = vsel %vm1277, %v1252, 0
  %v1537 = vsel %vm1277, %v1258, 0
  %v1540 = vsel %vm1277, %v1264, 0
  %v1543 = vsel %vm1277, %v1270, 0
  %v1546 = vsel %vm1277, %v1276, 0
  %1548 = vmatprep.subr.mxu0 %v558
  %1549 = vmatpush1.msra.mxu0 %v557
  %1550 = vmatprep.subr.mxu0 %v560
  %1551 = vmatpush1.msra.mxu0 %v559
  %1552 = vmatprep.subr.mxu0 %v562
  %1553 = vmatpush1.msra.mxu0 %v561
  %1554 = vmatprep.subr.mxu0 %v564
  %1555 = vmatpush1.msra.mxu0 %v563
  %1556 = vmatprep.subr.mxu0 %v566
  %1557 = vmatpush1.msra.mxu0 %v565
  %1558 = vmatprep.subr.mxu0 %v568
  %1559 = vmatpush1.msra.mxu0 %v567
  %1560 = vmatprep.subr.mxu0 %v570
  %1561 = vmatpush1.msra.mxu0 %v569
  %1562 = vmatprep.subr.mxu0 %v572
  %1563 = vmatpush1.msra.mxu0 %v571
  %1564 = vmatprep.subr.mxu0 %v574
  %1565 = vmatpush1.msra.mxu0 %v573
  %1566 = vmatprep.subr.mxu0 %v576
  %1567 = vmatpush1.msra.mxu0 %v575
  %1568 = vmatprep.subr.mxu0 %v578
  %1569 = vmatpush1.msra.mxu0 %v577
  %1570 = vmatprep.subr.mxu0 %v580
  %1571 = vmatpush1.msra.mxu0 %v579
  %1572 = vmatprep.subr.mxu0 %v582
  %1573 = vmatpush1.msra.mxu0 %v581
  %1574 = vmatprep.subr.mxu0 %v584
  %1575 = vmatpush1.msra.mxu0 %v583
  %1576 = vmatprep.subr.mxu0 %v586
  %1577 = vmatpush1.msra.mxu0 %v585
  %1578 = vmatprep.subr.mxu0 %v588
  %1579 = vmatpush1.msra.mxu0 %v587
  %1580 = vmatprep.subr.mxu0 %v590
  %1581 = vmatpush1.msra.mxu0 %v589
  %1582 = vmatprep.subr.mxu0 %v592
  %1583 = vmatpush1.msra.mxu0 %v591
  %1584 = vmatprep.subr.mxu0 %v594
  %1585 = vmatpush1.msra.mxu0 %v593
  %1586 = vmatprep.subr.mxu0 %v596
  %1587 = vmatpush1.msra.mxu0 %v595
  %1588 = vmatprep.subr.mxu0 %v598
  %1589 = vmatpush1.msra.mxu0 %v597
  %1590 = vmatprep.subr.mxu0 %v600
  %1591 = vmatpush1.msra.mxu0 %v599
  %1592 = vmatprep.subr.mxu0 %v602
  %1593 = vmatpush1.msra.mxu0 %v601
  %1594 = vmatprep.subr.mxu0 %v604
  %1595 = vmatpush1.msra.mxu0 %v603
  %1596 = vmatprep.subr.mxu0 %v606
  %1597 = vmatpush1.msra.mxu0 %v605
  %1598 = vmatprep.subr.mxu0 %v608
  %1599 = vmatpush1.msra.mxu0 %v607
  %1600 = vmatprep.subr.mxu0 %v610
  %1601 = vmatpush1.msra.mxu0 %v609
  %1602 = vmatprep.subr.mxu0 %v612
  %1603 = vmatpush1.msra.mxu0 %v611
  %1604 = vmatprep.subr.mxu0 %v614
  %1605 = vmatpush1.msra.mxu0 %v613
  %1606 = vmatprep.subr.mxu0 %v616
  %1607 = vmatpush1.msra.mxu0 %v615
  %1608 = vmatprep.subr.mxu0 %v618
  %1609 = vmatpush1.msra.mxu0 %v617
  %1610 = vmatprep.subr.mxu0 %v620
  %1611 = vmatpush1.msra.mxu0 %v619
  %1612 = vmatprep.mubr.f32.mxu0 %v738
  %1613 = vmatmul.mubr.f32.gmra.mrb[0].mxu0 %v737
  %v1614 = vpop.f32.mrb[0].mxu0
  %v1615 = vadd.f32 0.0, %v1614
  %v1616 = vpop.f32.mrb[0].mxu0
  %v1617 = vadd.f32 0.0, %v1616
  %1618 = vmatprep.mubr.f32.mxu0 %v744
  %1619 = vmatmul.mubr.f32.gmra.mrb[0].mxu0 %v743
  %v1620 = vpop.f32.mrb[0].mxu0
  %v1621 = vadd.f32 0.0, %v1620
  %v1622 = vpop.f32.mrb[0].mxu0
  %v1623 = vadd.f32 0.0, %v1622
  %1624 = vmatprep.mubr.f32.mxu0 %v750
  %1625 = vmatmul.mubr.f32.gmra.mrb[0].mxu0 %v749
  %v1626 = vpop.f32.mrb[0].mxu0
  %v1627 = vadd.f32 0.0, %v1626
  %v1628 = vpop.f32.mrb[0].mxu0
  %v1629 = vadd.f32 0.0, %v1628
  %1630 = vmatprep.mubr.f32.mxu0 %v756
  %1631 = vmatmul.mubr.f32.gmra.mrb[0].mxu0 %v755
  %v1632 = vpop.f32.mrb[0].mxu0
  %v1633 = vadd.f32 0.0, %v1632
  %v1634 = vpop.f32.mrb[0].mxu0
  %v1635 = vadd.f32 0.0, %v1634
  %1636 = vmatprep.mubr.f32.mxu0 %v762
  %1637 = vmatmul.mubr.f32.gmra.mrb[0].mxu0 %v761
  %v1638 = vpop.f32.mrb[0].mxu0
  %v1639 = vadd.f32 0.0, %v1638
  %v1640 = vpop.f32.mrb[0].mxu0
  %v1641 = vadd.f32 0.0, %v1640
  %1642 = vmatprep.mubr.f32.mxu0 %v768
  %1643 = vmatmul.mubr.f32.gmra.mrb[0].mxu0 %v767
  %v1644 = vpop.f32.mrb[0].mxu0
  %v1645 = vadd.f32 0.0, %v1644
  %v1646 = vpop.f32.mrb[0].mxu0
  %v1647 = vadd.f32 0.0, %v1646
  %1648 = vmatprep.mubr.f32.mxu0 %v774
  %1649 = vmatmul.mubr.f32.gmra.mrb[0].mxu0 %v773
  %v1650 = vpop.f32.mrb[0].mxu0
  %v1651 = vadd.f32 0.0, %v1650
  %v1652 = vpop.f32.mrb[0].mxu0
  %v1653 = vadd.f32 0.0, %v1652
  %1654 = vmatprep.mubr.f32.mxu0 %v780
  %1655 = vmatmul.mubr.f32.gmra.mrb[0].mxu0 %v779
  %v1656 = vpop.f32.mrb[0].mxu0
  %v1657 = vadd.f32 0.0, %v1656
  %v1658 = vpop.f32.mrb[0].mxu0
  %v1659 = vadd.f32 0.0, %v1658
  %1660 = vmatprep.mubr.f32.mxu0 %v786
  %1661 = vmatmul.mubr.f32.gmra.mrb[0].mxu0 %v785
  %v1662 = vpop.f32.mrb[0].mxu0
  %v1663 = vadd.f32 0.0, %v1662
  %v1664 = vpop.f32.mrb[0].mxu0
  %v1665 = vadd.f32 0.0, %v1664
  %1666 = vmatprep.mubr.f32.mxu0 %v792
  %1667 = vmatmul.mubr.f32.gmra.mrb[0].mxu0 %v791
  %v1668 = vpop.f32.mrb[0].mxu0
  %v1669 = vadd.f32 0.0, %v1668
  %v1670 = vpop.f32.mrb[0].mxu0
  %v1671 = vadd.f32 0.0, %v1670
  %1672 = vmatprep.mubr.f32.mxu0 %v798
  %1673 = vmatmul.mubr.f32.gmra.mrb[0].mxu0 %v797
  %v1674 = vpop.f32.mrb[0].mxu0
  %v1675 = vadd.f32 0.0, %v1674
  %v1676 = vpop.f32.mrb[0].mxu0
  %v1677 = vadd.f32 0.0, %v1676
  %1678 = vmatprep.mubr.f32.mxu0 %v804
  %1679 = vmatmul.mubr.f32.gmra.mrb[0].mxu0 %v803
  %v1680 = vpop.f32.mrb[0].mxu0
  %v1681 = vadd.f32 0.0, %v1680
  %v1682 = vpop.f32.mrb[0].mxu0
  %v1683 = vadd.f32 0.0, %v1682
  %1684 = vmatprep.mubr.f32.mxu0 %v810
  %1685 = vmatmul.mubr.f32.gmra.mrb[0].mxu0 %v809
  %v1686 = vpop.f32.mrb[0].mxu0
  %v1687 = vadd.f32 0.0, %v1686
  %v1688 = vpop.f32.mrb[0].mxu0
  %v1689 = vadd.f32 0.0, %v1688
  %1690 = vmatprep.mubr.f32.mxu0 %v816
  %1691 = vmatmul.mubr.f32.gmra.mrb[0].mxu0 %v815
  %v1692 = vpop.f32.mrb[0].mxu0
  %v1693 = vadd.f32 0.0, %v1692
  %v1694 = vpop.f32.mrb[0].mxu0
  %v1695 = vadd.f32 0.0, %v1694
  %1696 = vmatprep.mubr.f32.mxu0 %v822
  %1697 = vmatmul.mubr.f32.gmra.mrb[0].mxu0 %v821
  %v1698 = vpop.f32.mrb[0].mxu0
  %v1699 = vadd.f32 0.0, %v1698
  %v1700 = vpop.f32.mrb[0].mxu0
  %v1701 = vadd.f32 0.0, %v1700
  %1702 = vmatprep.mubr.f32.mxu0 %v828
  %1703 = vmatmul.mubr.f32.gmra.mrb[0].mxu0 %v827
  %v1704 = vpop.f32.mrb[0].mxu0
  %v1705 = vadd.f32 0.0, %v1704
  %v1706 = vpop.f32.mrb[0].mxu0
  %v1707 = vadd.f32 0.0, %v1706
  %1708 = vmatprep.mubr.f32.mxu0 %v834
  %1709 = vmatmul.mubr.f32.gmra.mrb[0].mxu0 %v833
  %v1710 = vpop.f32.mrb[0].mxu0
  %v1711 = vadd.f32 0.0, %v1710
  %v1712 = vpop.f32.mrb[0].mxu0
  %v1713 = vadd.f32 0.0, %v1712
  %1714 = vmatprep.mubr.f32.mxu0 %v840
  %1715 = vmatmul.mubr.f32.gmra.mrb[0].mxu0 %v839
  %v1716 = vpop.f32.mrb[0].mxu0
  %v1717 = vadd.f32 0.0, %v1716
  %v1718 = vpop.f32.mrb[0].mxu0
  %v1719 = vadd.f32 0.0, %v1718
  %1720 = vmatprep.mubr.f32.mxu0 %v846
  %1721 = vmatmul.mubr.f32.gmra.mrb[0].mxu0 %v845
  %v1722 = vpop.f32.mrb[0].mxu0
  %v1723 = vadd.f32 0.0, %v1722
  %v1724 = vpop.f32.mrb[0].mxu0
  %v1725 = vadd.f32 0.0, %v1724
  %1726 = vmatprep.mubr.f32.mxu0 %v852
  %1727 = vmatmul.mubr.f32.gmra.mrb[0].mxu0 %v851
  %v1728 = vpop.f32.mrb[0].mxu0
  %v1729 = vadd.f32 0.0, %v1728
  %v1730 = vpop.f32.mrb[0].mxu0
  %v1731 = vadd.f32 0.0, %v1730
  %1732 = vmatprep.mubr.f32.mxu0 %v858
  %1733 = vmatmul.mubr.f32.gmra.mrb[0].mxu0 %v857
  %v1734 = vpop.f32.mrb[0].mxu0
  %v1735 = vadd.f32 0.0, %v1734
  %v1736 = vpop.f32.mrb[0].mxu0
  %v1737 = vadd.f32 0.0, %v1736
  %1738 = vmatprep.mubr.f32.mxu0 %v864
  %1739 = vmatmul.mubr.f32.gmra.mrb[0].mxu0 %v863
  %v1740 = vpop.f32.mrb[0].mxu0
  %v1741 = vadd.f32 0.0, %v1740
  %v1742 = vpop.f32.mrb[0].mxu0
  %v1743 = vadd.f32 0.0, %v1742
  %1744 = vmatprep.mubr.f32.mxu0 %v870
  %1745 = vmatmul.mubr.f32.gmra.mrb[0].mxu0 %v869
  %v1746 = vpop.f32.mrb[0].mxu0
  %v1747 = vadd.f32 0.0, %v1746
  %v1748 = vpop.f32.mrb[0].mxu0
  %v1749 = vadd.f32 0.0, %v1748
  %1750 = vmatprep.mubr.f32.mxu0 %v876
  %1751 = vmatmul.mubr.f32.gmra.mrb[0].mxu0 %v875
  %v1752 = vpop.f32.mrb[0].mxu0
  %v1753 = vadd.f32 0.0, %v1752
  %v1754 = vpop.f32.mrb[0].mxu0
  %v1755 = vadd.f32 0.0, %v1754
  %1756 = vmatprep.mubr.f32.mxu0 %v882
  %1757 = vmatmul.mubr.f32.gmra.mrb[0].mxu0 %v881
  %v1758 = vpop.f32.mrb[0].mxu0
  %v1759 = vadd.f32 0.0, %v1758
  %v1760 = vpop.f32.mrb[0].mxu0
  %v1761 = vadd.f32 0.0, %v1760
  %1762 = vmatprep.mubr.f32.mxu0 %v888
  %1763 = vmatmul.mubr.f32.gmra.mrb[0].mxu0 %v887
  %v1764 = vpop.f32.mrb[0].mxu0
  %v1765 = vadd.f32 0.0, %v1764
  %v1766 = vpop.f32.mrb[0].mxu0
  %v1767 = vadd.f32 0.0, %v1766
  %1768 = vmatprep.mubr.f32.mxu0 %v894
  %1769 = vmatmul.mubr.f32.gmra.mrb[0].mxu0 %v893
  %v1770 = vpop.f32.mrb[0].mxu0
  %v1771 = vadd.f32 0.0, %v1770
  %v1772 = vpop.f32.mrb[0].mxu0
  %v1773 = vadd.f32 0.0, %v1772
  %1774 = vmatprep.mubr.f32.mxu0 %v900
  %1775 = vmatmul.mubr.f32.gmra.mrb[0].mxu0 %v899
  %v1776 = vpop.f32.mrb[0].mxu0
  %v1777 = vadd.f32 0.0, %v1776
  %v1778 = vpop.f32.mrb[0].mxu0
  %v1779 = vadd.f32 0.0, %v1778
  %1780 = vmatprep.mubr.f32.mxu0 %v906
  %1781 = vmatmul.mubr.f32.gmra.mrb[0].mxu0 %v905
  %v1782 = vpop.f32.mrb[0].mxu0
  %v1783 = vadd.f32 0.0, %v1782
  %v1784 = vpop.f32.mrb[0].mxu0
  %v1785 = vadd.f32 0.0, %v1784
  %1786 = vmatprep.mubr.f32.mxu0 %v912
  %1787 = vmatmul.mubr.f32.gmra.mrb[0].mxu0 %v911
  %v1788 = vpop.f32.mrb[0].mxu0
  %v1789 = vadd.f32 0.0, %v1788
  %v1790 = vpop.f32.mrb[0].mxu0
  %v1791 = vadd.f32 0.0, %v1790
  %1792 = vmatprep.mubr.f32.mxu0 %v918
  %1793 = vmatmul.mubr.f32.gmra.mrb[0].mxu0 %v917
  %v1794 = vpop.f32.mrb[0].mxu0
  %v1795 = vadd.f32 0.0, %v1794
  %v1796 = vpop.f32.mrb[0].mxu0
  %v1797 = vadd.f32 0.0, %v1796
  %1798 = vmatprep.mubr.f32.mxu0 %v924
  %1799 = vmatmul.mubr.f32.gmra.mrb[0].mxu0 %v923
  %v1800 = vpop.f32.mrb[0].mxu0
  %v1801 = vadd.f32 0.0, %v1800
  %v1802 = vpop.f32.mrb[0].mxu0
  %v1803 = vadd.f32 0.0, %v1802
  %1804 = vmatprep.mubr.f32.mxu0 %v930
  %1805 = vmatmul.mubr.f32.gmra.mrb[0].mxu0 %v929
  %v1806 = vpop.f32.mrb[0].mxu0
  %v1807 = vadd.f32 0.0, %v1806
  %v1808 = vpop.f32.mrb[0].mxu0
  %v1809 = vadd.f32 0.0, %v1808
  %1810 = vmatprep.mubr.f32.mxu0 %v936
  %1811 = vmatmul.mubr.f32.gmra.mrb[0].mxu0 %v935
  %v1812 = vpop.f32.mrb[0].mxu0
  %v1813 = vadd.f32 0.0, %v1812
  %v1814 = vpop.f32.mrb[0].mxu0
  %v1815 = vadd.f32 0.0, %v1814
  %1816 = vmatprep.mubr.f32.mxu0 %v942
  %1817 = vmatmul.mubr.f32.gmra.mrb[0].mxu0 %v941
  %v1818 = vpop.f32.mrb[0].mxu0
  %v1819 = vadd.f32 0.0, %v1818
  %v1820 = vpop.f32.mrb[0].mxu0
  %v1821 = vadd.f32 0.0, %v1820
  %1822 = vmatprep.mubr.f32.mxu0 %v948
  %1823 = vmatmul.mubr.f32.gmra.mrb[0].mxu0 %v947
  %v1824 = vpop.f32.mrb[0].mxu0
  %v1825 = vadd.f32 0.0, %v1824
  %v1826 = vpop.f32.mrb[0].mxu0
  %v1827 = vadd.f32 0.0, %v1826
  %1828 = vmatprep.mubr.f32.mxu0 %v954
  %1829 = vmatmul.mubr.f32.gmra.mrb[0].mxu0 %v953
  %v1830 = vpop.f32.mrb[0].mxu0
  %v1831 = vadd.f32 0.0, %v1830
  %v1832 = vpop.f32.mrb[0].mxu0
  %v1833 = vadd.f32 0.0, %v1832
  %1834 = vmatprep.mubr.f32.mxu0 %v960
  %1835 = vmatmul.mubr.f32.gmra.mrb[0].mxu0 %v959
  %v1836 = vpop.f32.mrb[0].mxu0
  %v1837 = vadd.f32 0.0, %v1836
  %v1838 = vpop.f32.mrb[0].mxu0
  %v1839 = vadd.f32 0.0, %v1838
  %1840 = vmatprep.mubr.f32.mxu0 %v966
  %1841 = vmatmul.mubr.f32.gmra.mrb[0].mxu0 %v965
  %v1842 = vpop.f32.mrb[0].mxu0
  %v1843 = vadd.f32 0.0, %v1842
  %v1844 = vpop.f32.mrb[0].mxu0
  %v1845 = vadd.f32 0.0, %v1844
  %1846 = vmatprep.mubr.f32.mxu0 %v972
  %1847 = vmatmul.mubr.f32.gmra.mrb[0].mxu0 %v971
  %v1848 = vpop.f32.mrb[0].mxu0
  %v1849 = vadd.f32 0.0, %v1848
  %v1850 = vpop.f32.mrb[0].mxu0
  %v1851 = vadd.f32 0.0, %v1850
  %1852 = vmatprep.mubr.f32.mxu0 %v978
  %1853 = vmatmul.mubr.f32.gmra.mrb[0].mxu0 %v977
  %v1854 = vpop.f32.mrb[0].mxu0
  %v1855 = vadd.f32 0.0, %v1854
  %v1856 = vpop.f32.mrb[0].mxu0
  %v1857 = vadd.f32 0.0, %v1856
  %1858 = vmatprep.mubr.f32.mxu0 %v984
  %1859 = vmatmul.mubr.f32.gmra.mrb[0].mxu0 %v983
  %v1860 = vpop.f32.mrb[0].mxu0
  %v1861 = vadd.f32 0.0, %v1860
  %v1862 = vpop.f32.mrb[0].mxu0
  %v1863 = vadd.f32 0.0, %v1862
  %1864 = vmatprep.mubr.f32.mxu0 %v990
  %1865 = vmatmul.mubr.f32.gmra.mrb[0].mxu0 %v989
  %v1866 = vpop.f32.mrb[0].mxu0
  %v1867 = vadd.f32 0.0, %v1866
  %v1868 = vpop.f32.mrb[0].mxu0
  %v1869 = vadd.f32 0.0, %v1868
  %1870 = vmatprep.mubr.f32.mxu0 %v996
  %1871 = vmatmul.mubr.f32.gmra.mrb[0].mxu0 %v995
  %v1872 = vpop.f32.mrb[0].mxu0
  %v1873 = vadd.f32 0.0, %v1872
  %v1874 = vpop.f32.mrb[0].mxu0
  %v1875 = vadd.f32 0.0, %v1874
  %1876 = vmatprep.mubr.f32.mxu0 %v1002
  %1877 = vmatmul.mubr.f32.gmra.mrb[0].mxu0 %v1001
  %v1878 = vpop.f32.mrb[0].mxu0
  %v1879 = vadd.f32 0.0, %v1878
  %v1880 = vpop.f32.mrb[0].mxu0
  %v1881 = vadd.f32 0.0, %v1880
  %1882 = vmatprep.mubr.f32.mxu0 %v1008
  %1883 = vmatmul.mubr.f32.gmra.mrb[0].mxu0 %v1007
  %v1884 = vpop.f32.mrb[0].mxu0
  %v1885 = vadd.f32 0.0, %v1884
  %v1886 = vpop.f32.mrb[0].mxu0
  %v1887 = vadd.f32 0.0, %v1886
  %1888 = vmatprep.mubr.f32.mxu0 %v1014
  %1889 = vmatmul.mubr.f32.gmra.mrb[0].mxu0 %v1013
  %v1890 = vpop.f32.mrb[0].mxu0
  %v1891 = vadd.f32 0.0, %v1890
  %v1892 = vpop.f32.mrb[0].mxu0
  %v1893 = vadd.f32 0.0, %v1892
  %1894 = vmatprep.mubr.f32.mxu0 %v1020
  %1895 = vmatmul.mubr.f32.gmra.mrb[0].mxu0 %v1019
  %v1896 = vpop.f32.mrb[0].mxu0
  %v1897 = vadd.f32 0.0, %v1896
  %v1898 = vpop.f32.mrb[0].mxu0
  %v1899 = vadd.f32 0.0, %v1898
  %1900 = vmatprep.mubr.f32.mxu0 %v1026
  %1901 = vmatmul.mubr.f32.gmra.mrb[0].mxu0 %v1025
  %v1902 = vpop.f32.mrb[0].mxu0
  %v1903 = vadd.f32 0.0, %v1902
  %v1904 = vpop.f32.mrb[0].mxu0
  %v1905 = vadd.f32 0.0, %v1904
  %1906 = vmatprep.mubr.f32.mxu0 %v1032
  %1907 = vmatmul.mubr.f32.gmra.mrb[0].mxu0 %v1031
  %v1908 = vpop.f32.mrb[0].mxu0
  %v1909 = vadd.f32 0.0, %v1908
  %v1910 = vpop.f32.mrb[0].mxu0
  %v1911 = vadd.f32 0.0, %v1910
  %1912 = vmatprep.mubr.f32.mxu0 %v1038
  %1913 = vmatmul.mubr.f32.gmra.mrb[0].mxu0 %v1037
  %v1914 = vpop.f32.mrb[0].mxu0
  %v1915 = vadd.f32 0.0, %v1914
  %v1916 = vpop.f32.mrb[0].mxu0
  %v1917 = vadd.f32 0.0, %v1916
  %1918 = vmatprep.mubr.f32.mxu0 %v1044
  %1919 = vmatmul.mubr.f32.gmra.mrb[0].mxu0 %v1043
  %v1920 = vpop.f32.mrb[0].mxu0
  %v1921 = vadd.f32 0.0, %v1920
  %v1922 = vpop.f32.mrb[0].mxu0
  %v1923 = vadd.f32 0.0, %v1922
  %1924 = vmatprep.mubr.f32.mxu0 %v1050
  %1925 = vmatmul.mubr.f32.gmra.mrb[0].mxu0 %v1049
  %v1926 = vpop.f32.mrb[0].mxu0
  %v1927 = vadd.f32 0.0, %v1926
  %v1928 = vpop.f32.mrb[0].mxu0
  %v1929 = vadd.f32 0.0, %v1928
  %1930 = vmatprep.mubr.f32.mxu0 %v1056
  %1931 = vmatmul.mubr.f32.gmra.mrb[0].mxu0 %v1055
  %v1932 = vpop.f32.mrb[0].mxu0
  %v1933 = vadd.f32 0.0, %v1932
  %v1934 = vpop.f32.mrb[0].mxu0
  %v1935 = vadd.f32 0.0, %v1934
  %1936 = vmatprep.mubr.f32.mxu0 %v1062
  %1937 = vmatmul.mubr.f32.gmra.mrb[0].mxu0 %v1061
  %v1938 = vpop.f32.mrb[0].mxu0
  %v1939 = vadd.f32 0.0, %v1938
  %v1940 = vpop.f32.mrb[0].mxu0
  %v1941 = vadd.f32 0.0, %v1940
  %1942 = vmatprep.mubr.f32.mxu0 %v1068
  %1943 = vmatmul.mubr.f32.gmra.mrb[0].mxu0 %v1067
  %v1944 = vpop.f32.mrb[0].mxu0
  %v1945 = vadd.f32 0.0, %v1944
  %v1946 = vpop.f32.mrb[0].mxu0
  %v1947 = vadd.f32 0.0, %v1946
  %1948 = vmatprep.mubr.f32.mxu0 %v1074
  %1949 = vmatmul.mubr.f32.gmra.mrb[0].mxu0 %v1073
  %v1950 = vpop.f32.mrb[0].mxu0
  %v1951 = vadd.f32 0.0, %v1950
  %v1952 = vpop.f32.mrb[0].mxu0
  %v1953 = vadd.f32 0.0, %v1952
  %1954 = vmatprep.mubr.f32.mxu0 %v1080
  %1955 = vmatmul.mubr.f32.gmra.mrb[0].mxu0 %v1079
  %v1956 = vpop.f32.mrb[0].mxu0
  %v1957 = vadd.f32 0.0, %v1956
  %v1958 = vpop.f32.mrb[0].mxu0
  %v1959 = vadd.f32 0.0, %v1958
  %1960 = vmatprep.mubr.f32.mxu0 %v1086
  %1961 = vmatmul.mubr.f32.gmra.mrb[0].mxu0 %v1085
  %v1962 = vpop.f32.mrb[0].mxu0
  %v1963 = vadd.f32 0.0, %v1962
  %v1964 = vpop.f32.mrb[0].mxu0
  %v1965 = vadd.f32 0.0, %v1964
  %1966 = vmatprep.mubr.f32.mxu0 %v1092
  %1967 = vmatmul.mubr.f32.gmra.mrb[0].mxu0 %v1091
  %v1968 = vpop.f32.mrb[0].mxu0
  %v1969 = vadd.f32 0.0, %v1968
  %v1970 = vpop.f32.mrb[0].mxu0
  %v1971 = vadd.f32 0.0, %v1970
  %1972 = vmatprep.mubr.f32.mxu0 %v1098
  %1973 = vmatmul.mubr.f32.gmra.mrb[0].mxu0 %v1097
  %v1974 = vpop.f32.mrb[0].mxu0
  %v1975 = vadd.f32 0.0, %v1974
  %v1976 = vpop.f32.mrb[0].mxu0
  %v1977 = vadd.f32 0.0, %v1976
  %1978 = vmatprep.mubr.f32.mxu0 %v1104
  %1979 = vmatmul.mubr.f32.gmra.mrb[0].mxu0 %v1103
  %v1980 = vpop.f32.mrb[0].mxu0
  %v1981 = vadd.f32 0.0, %v1980
  %v1982 = vpop.f32.mrb[0].mxu0
  %v1983 = vadd.f32 0.0, %v1982
  %1984 = vmatprep.mubr.f32.mxu0 %v1110
  %1985 = vmatmul.mubr.f32.gmra.mrb[0].mxu0 %v1109
  %v1986 = vpop.f32.mrb[0].mxu0
  %v1987 = vadd.f32 0.0, %v1986
  %v1988 = vpop.f32.mrb[0].mxu0
  %v1989 = vadd.f32 0.0, %v1988
  %1990 = vmatprep.mubr.f32.mxu0 %v1116
  %1991 = vmatmul.mubr.f32.gmra.mrb[0].mxu0 %v1115
  %v1992 = vpop.f32.mrb[0].mxu0
  %v1993 = vadd.f32 0.0, %v1992
  %v1994 = vpop.f32.mrb[0].mxu0
  %v1995 = vadd.f32 0.0, %v1994
  %1996 = vmatprep.mubr.f32.mxu0 %v1122
  %1997 = vmatmul.mubr.f32.gmra.mrb[0].mxu0 %v1121
  %v1998 = vpop.f32.mrb[0].mxu0
  %v1999 = vadd.f32 0.0, %v1998
  %v2000 = vpop.f32.mrb[0].mxu0
  %v2001 = vadd.f32 0.0, %v2000
  %2002 = vmatprep.mubr.f32.mxu0 %v1128
  %2003 = vmatmul.mubr.f32.gmra.mrb[0].mxu0 %v1127
  %v2004 = vpop.f32.mrb[0].mxu0
  %v2005 = vadd.f32 0.0, %v2004
  %v2006 = vpop.f32.mrb[0].mxu0
  %v2007 = vadd.f32 0.0, %v2006
  %2008 = vmatprep.mubr.f32.mxu0 %v1134
  %2009 = vmatmul.mubr.f32.gmra.mrb[0].mxu0 %v1133
  %v2010 = vpop.f32.mrb[0].mxu0
  %v2011 = vadd.f32 0.0, %v2010
  %v2012 = vpop.f32.mrb[0].mxu0
  %v2013 = vadd.f32 0.0, %v2012
  %2014 = vmatprep.mubr.f32.mxu0 %v1140
  %2015 = vmatmul.mubr.f32.gmra.mrb[0].mxu0 %v1139
  %v2016 = vpop.f32.mrb[0].mxu0
  %v2017 = vadd.f32 0.0, %v2016
  %v2018 = vpop.f32.mrb[0].mxu0
  %v2019 = vadd.f32 0.0, %v2018
  %2020 = vmatprep.mubr.f32.mxu0 %v1146
  %2021 = vmatmul.mubr.f32.gmra.mrb[0].mxu0 %v1145
  %v2022 = vpop.f32.mrb[0].mxu0
  %v2023 = vadd.f32 0.0, %v2022
  %v2024 = vpop.f32.mrb[0].mxu0
  %v2025 = vadd.f32 0.0, %v2024
  %2026 = vmatprep.mubr.f32.mxu0 %v1152
  %2027 = vmatmul.mubr.f32.gmra.mrb[0].mxu0 %v1151
  %v2028 = vpop.f32.mrb[0].mxu0
  %v2029 = vadd.f32 0.0, %v2028
  %v2030 = vpop.f32.mrb[0].mxu0
  %v2031 = vadd.f32 0.0, %v2030
  %2032 = vmatprep.mubr.f32.mxu0 %v1158
  %2033 = vmatmul.mubr.f32.gmra.mrb[0].mxu0 %v1157
  %v2034 = vpop.f32.mrb[0].mxu0
  %v2035 = vadd.f32 0.0, %v2034
  %v2036 = vpop.f32.mrb[0].mxu0
  %v2037 = vadd.f32 0.0, %v2036
  %2038 = vmatprep.mubr.f32.mxu0 %v1164
  %2039 = vmatmul.mubr.f32.gmra.mrb[0].mxu0 %v1163
  %v2040 = vpop.f32.mrb[0].mxu0
  %v2041 = vadd.f32 0.0, %v2040
  %v2042 = vpop.f32.mrb[0].mxu0
  %v2043 = vadd.f32 0.0, %v2042
  %2044 = vmatprep.mubr.f32.mxu0 %v1170
  %2045 = vmatmul.mubr.f32.gmra.mrb[0].mxu0 %v1169
  %v2046 = vpop.f32.mrb[0].mxu0
  %v2047 = vadd.f32 0.0, %v2046
  %v2048 = vpop.f32.mrb[0].mxu0
  %v2049 = vadd.f32 0.0, %v2048
  %2050 = vmatprep.mubr.f32.mxu0 %v1176
  %2051 = vmatmul.mubr.f32.gmra.mrb[0].mxu0 %v1175
  %v2052 = vpop.f32.mrb[0].mxu0
  %v2053 = vadd.f32 0.0, %v2052
  %v2054 = vpop.f32.mrb[0].mxu0
  %v2055 = vadd.f32 0.0, %v2054
  %2056 = vmatprep.mubr.f32.mxu0 %v1182
  %2057 = vmatmul.mubr.f32.gmra.mrb[0].mxu0 %v1181
  %v2058 = vpop.f32.mrb[0].mxu0
  %v2059 = vadd.f32 0.0, %v2058
  %v2060 = vpop.f32.mrb[0].mxu0
  %v2061 = vadd.f32 0.0, %v2060
  %2062 = vmatprep.mubr.f32.mxu0 %v1188
  %2063 = vmatmul.mubr.f32.gmra.mrb[0].mxu0 %v1187
  %v2064 = vpop.f32.mrb[0].mxu0
  %v2065 = vadd.f32 0.0, %v2064
  %v2066 = vpop.f32.mrb[0].mxu0
  %v2067 = vadd.f32 0.0, %v2066
  %2068 = vmatprep.mubr.f32.mxu0 %v1194
  %2069 = vmatmul.mubr.f32.gmra.mrb[0].mxu0 %v1193
  %v2070 = vpop.f32.mrb[0].mxu0
  %v2071 = vadd.f32 0.0, %v2070
  %v2072 = vpop.f32.mrb[0].mxu0
  %v2073 = vadd.f32 0.0, %v2072
  %2074 = vmatprep.mubr.f32.mxu0 %v1200
  %2075 = vmatmul.mubr.f32.gmra.mrb[0].mxu0 %v1199
  %v2076 = vpop.f32.mrb[0].mxu0
  %v2077 = vadd.f32 0.0, %v2076
  %v2078 = vpop.f32.mrb[0].mxu0
  %v2079 = vadd.f32 0.0, %v2078
  %2080 = vmatprep.mubr.f32.mxu0 %v1206
  %2081 = vmatmul.mubr.f32.gmra.mrb[0].mxu0 %v1205
  %v2082 = vpop.f32.mrb[0].mxu0
  %v2083 = vadd.f32 0.0, %v2082
  %v2084 = vpop.f32.mrb[0].mxu0
  %v2085 = vadd.f32 0.0, %v2084
  %2086 = vmatprep.mubr.f32.mxu0 %v1212
  %2087 = vmatmul.mubr.f32.gmra.mrb[0].mxu0 %v1211
  %v2088 = vpop.f32.mrb[0].mxu0
  %v2089 = vadd.f32 0.0, %v2088
  %v2090 = vpop.f32.mrb[0].mxu0
  %v2091 = vadd.f32 0.0, %v2090
  %2092 = vmatprep.mubr.f32.mxu0 %v1218
  %2093 = vmatmul.mubr.f32.gmra.mrb[0].mxu0 %v1217
  %v2094 = vpop.f32.mrb[0].mxu0
  %v2095 = vadd.f32 0.0, %v2094
  %v2096 = vpop.f32.mrb[0].mxu0
  %v2097 = vadd.f32 0.0, %v2096
  %2098 = vmatprep.mubr.f32.mxu0 %v1224
  %2099 = vmatmul.mubr.f32.gmra.mrb[0].mxu0 %v1223
  %v2100 = vpop.f32.mrb[0].mxu0
  %v2101 = vadd.f32 0.0, %v2100
  %v2102 = vpop.f32.mrb[0].mxu0
  %v2103 = vadd.f32 0.0, %v2102
  %2104 = vmatprep.mubr.f32.mxu0 %v1230
  %2105 = vmatmul.mubr.f32.gmra.mrb[0].mxu0 %v1229
  %v2106 = vpop.f32.mrb[0].mxu0
  %v2107 = vadd.f32 0.0, %v2106
  %v2108 = vpop.f32.mrb[0].mxu0
  %v2109 = vadd.f32 0.0, %v2108
  %2110 = vmatprep.mubr.f32.mxu0 %v1236
  %2111 = vmatmul.mubr.f32.gmra.mrb[0].mxu0 %v1235
  %v2112 = vpop.f32.mrb[0].mxu0
  %v2113 = vadd.f32 0.0, %v2112
  %v2114 = vpop.f32.mrb[0].mxu0
  %v2115 = vadd.f32 0.0, %v2114
  %2116 = vmatprep.mubr.f32.mxu0 %v1242
  %2117 = vmatmul.mubr.f32.gmra.mrb[0].mxu0 %v1241
  %v2118 = vpop.f32.mrb[0].mxu0
  %v2119 = vadd.f32 0.0, %v2118
  %v2120 = vpop.f32.mrb[0].mxu0
  %v2121 = vadd.f32 0.0, %v2120
  %2122 = vmatprep.mubr.f32.mxu0 %v1248
  %2123 = vmatmul.mubr.f32.gmra.mrb[0].mxu0 %v1247
  %v2124 = vpop.f32.mrb[0].mxu0
  %v2125 = vadd.f32 0.0, %v2124
  %v2126 = vpop.f32.mrb[0].mxu0
  %v2127 = vadd.f32 0.0, %v2126
  %2128 = vmatprep.mubr.f32.mxu0 %v1254
  %2129 = vmatmul.mubr.f32.gmra.mrb[0].mxu0 %v1253
  %v2130 = vpop.f32.mrb[0].mxu0
  %v2131 = vadd.f32 0.0, %v2130
  %v2132 = vpop.f32.mrb[0].mxu0
  %v2133 = vadd.f32 0.0, %v2132
  %2134 = vmatprep.mubr.f32.mxu0 %v1260
  %2135 = vmatmul.mubr.f32.gmra.mrb[0].mxu0 %v1259
  %v2136 = vpop.f32.mrb[0].mxu0
  %v2137 = vadd.f32 0.0, %v2136
  %v2138 = vpop.f32.mrb[0].mxu0
  %v2139 = vadd.f32 0.0, %v2138
  %2140 = vmatprep.mubr.f32.mxu0 %v1266
  %2141 = vmatmul.mubr.f32.gmra.mrb[0].mxu0 %v1265
  %v2142 = vpop.f32.mrb[0].mxu0
  %v2143 = vadd.f32 0.0, %v2142
  %v2144 = vpop.f32.mrb[0].mxu0
  %v2145 = vadd.f32 0.0, %v2144
  %2146 = vmatprep.mubr.f32.mxu0 %v1272
  %2147 = vmatmul.mubr.f32.gmra.mrb[0].mxu0 %v1271
  %v2148 = vpop.f32.mrb[0].mxu0
  %v2149 = vadd.f32 0.0, %v2148
  %v2150 = vpop.f32.mrb[0].mxu0
  %v2151 = vadd.f32 0.0, %v2150
  %2152 = vdwg.mxu0
  %2153 = vmatprep.subr.mxu0 %v622
  %2154 = vmatpush1.msra.mxu0 %v621
  %2155 = vmatprep.subr.mxu0 %v624
  %2156 = vmatpush1.msra.mxu0 %v623
  %2157 = vmatprep.subr.mxu0 %v626
  %2158 = vmatpush1.msra.mxu0 %v625
  %2159 = vmatprep.subr.mxu0 %v628
  %2160 = vmatpush1.msra.mxu0 %v627
  %2161 = vmatprep.subr.mxu0 %v630
  %2162 = vmatpush1.msra.mxu0 %v629
  %2163 = vmatprep.subr.mxu0 %v632
  %2164 = vmatpush1.msra.mxu0 %v631
  %2165 = vmatprep.subr.mxu0 %v634
  %2166 = vmatpush1.msra.mxu0 %v633
  %2167 = vmatprep.subr.mxu0 %v636
  %2168 = vmatpush1.msra.mxu0 %v635
  %2169 = vmatprep.subr.mxu0 %v638
  %2170 = vmatpush1.msra.mxu0 %v637
  %2171 = vmatprep.subr.mxu0 %v640
  %2172 = vmatpush1.msra.mxu0 %v639
  %2173 = vmatprep.subr.mxu0 %v642
  %2174 = vmatpush1.msra.mxu0 %v641
  %2175 = vmatprep.subr.mxu0 %v644
  %2176 = vmatpush1.msra.mxu0 %v643
  %2177 = vmatprep.subr.mxu0 %v646
  %2178 = vmatpush1.msra.mxu0 %v645
  %2179 = vmatprep.subr.mxu0 %v648
  %2180 = vmatpush1.msra.mxu0 %v647
  %2181 = vmatprep.subr.mxu0 %v650
  %2182 = vmatpush1.msra.mxu0 %v649
  %2183 = vmatprep.subr.mxu0 %v652
  %2184 = vmatpush1.msra.mxu0 %v651
  %2185 = vmatprep.subr.mxu0 %v654
  %2186 = vmatpush1.msra.mxu0 %v653
  %2187 = vmatprep.subr.mxu0 %v656
  %2188 = vmatpush1.msra.mxu0 %v655
  %2189 = vmatprep.subr.mxu0 %v658
  %2190 = vmatpush1.msra.mxu0 %v657
  %2191 = vmatprep.subr.mxu0 %v660
  %2192 = vmatpush1.msra.mxu0 %v659
  %2193 = vmatprep.subr.mxu0 %v662
  %2194 = vmatpush1.msra.mxu0 %v661
  %2195 = vmatprep.subr.mxu0 %v664
  %2196 = vmatpush1.msra.mxu0 %v663
  %2197 = vmatprep.subr.mxu0 %v666
  %2198 = vmatpush1.msra.mxu0 %v665
  %2199 = vmatprep.subr.mxu0 %v668
  %2200 = vmatpush1.msra.mxu0 %v667
  %2201 = vmatprep.subr.mxu0 %v670
  %2202 = vmatpush1.msra.mxu0 %v669
  %2203 = vmatprep.subr.mxu0 %v672
  %2204 = vmatpush1.msra.mxu0 %v671
  %2205 = vmatprep.subr.mxu0 %v674
  %2206 = vmatpush1.msra.mxu0 %v673
  %2207 = vmatprep.subr.mxu0 %v676
  %2208 = vmatpush1.msra.mxu0 %v675
  %2209 = vmatprep.subr.mxu0 %v678
  %2210 = vmatpush1.msra.mxu0 %v677
  %2211 = vmatprep.subr.mxu0 %v680
  %2212 = vmatpush1.msra.mxu0 %v679
  %2213 = vmatprep.subr.mxu0 %v682
  %2214 = vmatpush1.msra.mxu0 %v681
  %2215 = vmatprep.subr.mxu0 %v684
  %2216 = vmatpush1.msra.mxu0 %v683
  %2217 = vmatprep.mubr.f32.mxu0 %v740
  %2218 = vmatmul.mubr.f32.gmra.mrb[0].mxu0 %v739
  %v2219 = vpop.f32.mrb[0].mxu0
  %v2220 = vadd.f32 %v1615, %v2219
  %v2221 = vpop.f32.mrb[0].mxu0
  %v2222 = vadd.f32 %v1617, %v2221
  %2223 = vmatprep.mubr.f32.mxu0 %v746
  %2224 = vmatmul.mubr.f32.gmra.mrb[0].mxu0 %v745
  %v2225 = vpop.f32.mrb[0].mxu0
  %v2226 = vadd.f32 %v1621, %v2225
  %v2227 = vpop.f32.mrb[0].mxu0
  %v2228 = vadd.f32 %v1623, %v2227
  %2229 = vmatprep.mubr.f32.mxu0 %v752
  %2230 = vmatmul.mubr.f32.gmra.mrb[0].mxu0 %v751
  %v2231 = vpop.f32.mrb[0].mxu0
  %v2232 = vadd.f32 %v1627, %v2231
  %v2233 = vpop.f32.mrb[0].mxu0
  %v2234 = vadd.f32 %v1629, %v2233
  %2235 = vmatprep.mubr.f32.mxu0 %v758
  %2236 = vmatmul.mubr.f32.gmra.mrb[0].mxu0 %v757
  %v2237 = vpop.f32.mrb[0].mxu0
  %v2238 = vadd.f32 %v1633, %v2237
  %v2239 = vpop.f32.mrb[0].mxu0
  %v2240 = vadd.f32 %v1635, %v2239
  %2241 = vmatprep.mubr.f32.mxu0 %v764
  %2242 = vmatmul.mubr.f32.gmra.mrb[0].mxu0 %v763
  %v2243 = vpop.f32.mrb[0].mxu0
  %v2244 = vadd.f32 %v1639, %v2243
  %v2245 = vpop.f32.mrb[0].mxu0
  %v2246 = vadd.f32 %v1641, %v2245
  %2247 = vmatprep.mubr.f32.mxu0 %v770
  %2248 = vmatmul.mubr.f32.gmra.mrb[0].mxu0 %v769
  %v2249 = vpop.f32.mrb[0].mxu0
  %v2250 = vadd.f32 %v1645, %v2249
  %v2251 = vpop.f32.mrb[0].mxu0
  %v2252 = vadd.f32 %v1647, %v2251
  %2253 = vmatprep.mubr.f32.mxu0 %v776
  %2254 = vmatmul.mubr.f32.gmra.mrb[0].mxu0 %v775
  %v2255 = vpop.f32.mrb[0].mxu0
  %v2256 = vadd.f32 %v1651, %v2255
  %v2257 = vpop.f32.mrb[0].mxu0
  %v2258 = vadd.f32 %v1653, %v2257
  %2259 = vmatprep.mubr.f32.mxu0 %v782
  %2260 = vmatmul.mubr.f32.gmra.mrb[0].mxu0 %v781
  %v2261 = vpop.f32.mrb[0].mxu0
  %v2262 = vadd.f32 %v1657, %v2261
  %v2263 = vpop.f32.mrb[0].mxu0
  %v2264 = vadd.f32 %v1659, %v2263
  %2265 = vmatprep.mubr.f32.mxu0 %v788
  %2266 = vmatmul.mubr.f32.gmra.mrb[0].mxu0 %v787
  %v2267 = vpop.f32.mrb[0].mxu0
  %v2268 = vadd.f32 %v1663, %v2267
  %v2269 = vpop.f32.mrb[0].mxu0
  %v2270 = vadd.f32 %v1665, %v2269
  %2271 = vmatprep.mubr.f32.mxu0 %v794
  %2272 = vmatmul.mubr.f32.gmra.mrb[0].mxu0 %v793
  %v2273 = vpop.f32.mrb[0].mxu0
  %v2274 = vadd.f32 %v1669, %v2273
  %v2275 = vpop.f32.mrb[0].mxu0
  %v2276 = vadd.f32 %v1671, %v2275
  %2277 = vmatprep.mubr.f32.mxu0 %v800
  %2278 = vmatmul.mubr.f32.gmra.mrb[0].mxu0 %v799
  %v2279 = vpop.f32.mrb[0].mxu0
  %v2280 = vadd.f32 %v1675, %v2279
  %v2281 = vpop.f32.mrb[0].mxu0
  %v2282 = vadd.f32 %v1677, %v2281
  %2283 = vmatprep.mubr.f32.mxu0 %v806
  %2284 = vmatmul.mubr.f32.gmra.mrb[0].mxu0 %v805
  %v2285 = vpop.f32.mrb[0].mxu0
  %v2286 = vadd.f32 %v1681, %v2285
  %v2287 = vpop.f32.mrb[0].mxu0
  %v2288 = vadd.f32 %v1683, %v2287
  %2289 = vmatprep.mubr.f32.mxu0 %v812
  %2290 = vmatmul.mubr.f32.gmra.mrb[0].mxu0 %v811
  %v2291 = vpop.f32.mrb[0].mxu0
  %v2292 = vadd.f32 %v1687, %v2291
  %v2293 = vpop.f32.mrb[0].mxu0
  %v2294 = vadd.f32 %v1689, %v2293
  %2295 = vmatprep.mubr.f32.mxu0 %v818
  %2296 = vmatmul.mubr.f32.gmra.mrb[0].mxu0 %v817
  %v2297 = vpop.f32.mrb[0].mxu0
  %v2298 = vadd.f32 %v1693, %v2297
  %v2299 = vpop.f32.mrb[0].mxu0
  %v2300 = vadd.f32 %v1695, %v2299
  %2301 = vmatprep.mubr.f32.mxu0 %v824
  %2302 = vmatmul.mubr.f32.gmra.mrb[0].mxu0 %v823
  %v2303 = vpop.f32.mrb[0].mxu0
  %v2304 = vadd.f32 %v1699, %v2303
  %v2305 = vpop.f32.mrb[0].mxu0
  %v2306 = vadd.f32 %v1701, %v2305
  %2307 = vmatprep.mubr.f32.mxu0 %v830
  %2308 = vmatmul.mubr.f32.gmra.mrb[0].mxu0 %v829
  %v2309 = vpop.f32.mrb[0].mxu0
  %v2310 = vadd.f32 %v1705, %v2309
  %v2311 = vpop.f32.mrb[0].mxu0
  %v2312 = vadd.f32 %v1707, %v2311
  %2313 = vmatprep.mubr.f32.mxu0 %v836
  %2314 = vmatmul.mubr.f32.gmra.mrb[0].mxu0 %v835
  %v2315 = vpop.f32.mrb[0].mxu0
  %v2316 = vadd.f32 %v1711, %v2315
  %v2317 = vpop.f32.mrb[0].mxu0
  %v2318 = vadd.f32 %v1713, %v2317
  %2319 = vmatprep.mubr.f32.mxu0 %v842
  %2320 = vmatmul.mubr.f32.gmra.mrb[0].mxu0 %v841
  %v2321 = vpop.f32.mrb[0].mxu0
  %v2322 = vadd.f32 %v1717, %v2321
  %v2323 = vpop.f32.mrb[0].mxu0
  %v2324 = vadd.f32 %v1719, %v2323
  %2325 = vmatprep.mubr.f32.mxu0 %v848
  %2326 = vmatmul.mubr.f32.gmra.mrb[0].mxu0 %v847
  %v2327 = vpop.f32.mrb[0].mxu0
  %v2328 = vadd.f32 %v1723, %v2327
  %v2329 = vpop.f32.mrb[0].mxu0
  %v2330 = vadd.f32 %v1725, %v2329
  %2331 = vmatprep.mubr.f32.mxu0 %v854
  %2332 = vmatmul.mubr.f32.gmra.mrb[0].mxu0 %v853
  %v2333 = vpop.f32.mrb[0].mxu0
  %v2334 = vadd.f32 %v1729, %v2333
  %v2335 = vpop.f32.mrb[0].mxu0
  %v2336 = vadd.f32 %v1731, %v2335
  %2337 = vmatprep.mubr.f32.mxu0 %v860
  %2338 = vmatmul.mubr.f32.gmra.mrb[0].mxu0 %v859
  %v2339 = vpop.f32.mrb[0].mxu0
  %v2340 = vadd.f32 %v1735, %v2339
  %v2341 = vpop.f32.mrb[0].mxu0
  %v2342 = vadd.f32 %v1737, %v2341
  %2343 = vmatprep.mubr.f32.mxu0 %v866
  %2344 = vmatmul.mubr.f32.gmra.mrb[0].mxu0 %v865
  %v2345 = vpop.f32.mrb[0].mxu0
  %v2346 = vadd.f32 %v1741, %v2345
  %v2347 = vpop.f32.mrb[0].mxu0
  %v2348 = vadd.f32 %v1743, %v2347
  %2349 = vmatprep.mubr.f32.mxu0 %v872
  %2350 = vmatmul.mubr.f32.gmra.mrb[0].mxu0 %v871
  %v2351 = vpop.f32.mrb[0].mxu0
  %v2352 = vadd.f32 %v1747, %v2351
  %v2353 = vpop.f32.mrb[0].mxu0
  %v2354 = vadd.f32 %v1749, %v2353
  %2355 = vmatprep.mubr.f32.mxu0 %v878
  %2356 = vmatmul.mubr.f32.gmra.mrb[0].mxu0 %v877
  %v2357 = vpop.f32.mrb[0].mxu0
  %v2358 = vadd.f32 %v1753, %v2357
  %v2359 = vpop.f32.mrb[0].mxu0
  %v2360 = vadd.f32 %v1755, %v2359
  %2361 = vmatprep.mubr.f32.mxu0 %v884
  %2362 = vmatmul.mubr.f32.gmra.mrb[0].mxu0 %v883
  %v2363 = vpop.f32.mrb[0].mxu0
  %v2364 = vadd.f32 %v1759, %v2363
  %v2365 = vpop.f32.mrb[0].mxu0
  %v2366 = vadd.f32 %v1761, %v2365
  %2367 = vmatprep.mubr.f32.mxu0 %v890
  %2368 = vmatmul.mubr.f32.gmra.mrb[0].mxu0 %v889
  %v2369 = vpop.f32.mrb[0].mxu0
  %v2370 = vadd.f32 %v1765, %v2369
  %v2371 = vpop.f32.mrb[0].mxu0
  %v2372 = vadd.f32 %v1767, %v2371
  %2373 = vmatprep.mubr.f32.mxu0 %v896
  %2374 = vmatmul.mubr.f32.gmra.mrb[0].mxu0 %v895
  %v2375 = vpop.f32.mrb[0].mxu0
  %v2376 = vadd.f32 %v1771, %v2375
  %v2377 = vpop.f32.mrb[0].mxu0
  %v2378 = vadd.f32 %v1773, %v2377
  %2379 = vmatprep.mubr.f32.mxu0 %v902
  %2380 = vmatmul.mubr.f32.gmra.mrb[0].mxu0 %v901
  %v2381 = vpop.f32.mrb[0].mxu0
  %v2382 = vadd.f32 %v1777, %v2381
  %v2383 = vpop.f32.mrb[0].mxu0
  %v2384 = vadd.f32 %v1779, %v2383
  %2385 = vmatprep.mubr.f32.mxu0 %v908
  %2386 = vmatmul.mubr.f32.gmra.mrb[0].mxu0 %v907
  %v2387 = vpop.f32.mrb[0].mxu0
  %v2388 = vadd.f32 %v1783, %v2387
  %v2389 = vpop.f32.mrb[0].mxu0
  %v2390 = vadd.f32 %v1785, %v2389
  %2391 = vmatprep.mubr.f32.mxu0 %v914
  %2392 = vmatmul.mubr.f32.gmra.mrb[0].mxu0 %v913
  %v2393 = vpop.f32.mrb[0].mxu0
  %v2394 = vadd.f32 %v1789, %v2393
  %v2395 = vpop.f32.mrb[0].mxu0
  %v2396 = vadd.f32 %v1791, %v2395
  %2397 = vmatprep.mubr.f32.mxu0 %v920
  %2398 = vmatmul.mubr.f32.gmra.mrb[0].mxu0 %v919
  %v2399 = vpop.f32.mrb[0].mxu0
  %v2400 = vadd.f32 %v1795, %v2399
  %v2401 = vpop.f32.mrb[0].mxu0
  %v2402 = vadd.f32 %v1797, %v2401
  %2403 = vmatprep.mubr.f32.mxu0 %v926
  %2404 = vmatmul.mubr.f32.gmra.mrb[0].mxu0 %v925
  %v2405 = vpop.f32.mrb[0].mxu0
  %v2406 = vadd.f32 %v1801, %v2405
  %v2407 = vpop.f32.mrb[0].mxu0
  %v2408 = vadd.f32 %v1803, %v2407
  %2409 = vmatprep.mubr.f32.mxu0 %v932
  %2410 = vmatmul.mubr.f32.gmra.mrb[0].mxu0 %v931
  %v2411 = vpop.f32.mrb[0].mxu0
  %v2412 = vadd.f32 %v1807, %v2411
  %v2413 = vpop.f32.mrb[0].mxu0
  %v2414 = vadd.f32 %v1809, %v2413
  %2415 = vmatprep.mubr.f32.mxu0 %v938
  %2416 = vmatmul.mubr.f32.gmra.mrb[0].mxu0 %v937
  %v2417 = vpop.f32.mrb[0].mxu0
  %v2418 = vadd.f32 %v1813, %v2417
  %v2419 = vpop.f32.mrb[0].mxu0
  %v2420 = vadd.f32 %v1815, %v2419
  %2421 = vmatprep.mubr.f32.mxu0 %v944
  %2422 = vmatmul.mubr.f32.gmra.mrb[0].mxu0 %v943
  %v2423 = vpop.f32.mrb[0].mxu0
  %v2424 = vadd.f32 %v1819, %v2423
  %v2425 = vpop.f32.mrb[0].mxu0
  %v2426 = vadd.f32 %v1821, %v2425
  %2427 = vmatprep.mubr.f32.mxu0 %v950
  %2428 = vmatmul.mubr.f32.gmra.mrb[0].mxu0 %v949
  %v2429 = vpop.f32.mrb[0].mxu0
  %v2430 = vadd.f32 %v1825, %v2429
  %v2431 = vpop.f32.mrb[0].mxu0
  %v2432 = vadd.f32 %v1827, %v2431
  %2433 = vmatprep.mubr.f32.mxu0 %v956
  %2434 = vmatmul.mubr.f32.gmra.mrb[0].mxu0 %v955
  %v2435 = vpop.f32.mrb[0].mxu0
  %v2436 = vadd.f32 %v1831, %v2435
  %v2437 = vpop.f32.mrb[0].mxu0
  %v2438 = vadd.f32 %v1833, %v2437
  %2439 = vmatprep.mubr.f32.mxu0 %v962
  %2440 = vmatmul.mubr.f32.gmra.mrb[0].mxu0 %v961
  %v2441 = vpop.f32.mrb[0].mxu0
  %v2442 = vadd.f32 %v1837, %v2441
  %v2443 = vpop.f32.mrb[0].mxu0
  %v2444 = vadd.f32 %v1839, %v2443
  %2445 = vmatprep.mubr.f32.mxu0 %v968
  %2446 = vmatmul.mubr.f32.gmra.mrb[0].mxu0 %v967
  %v2447 = vpop.f32.mrb[0].mxu0
  %v2448 = vadd.f32 %v1843, %v2447
  %v2449 = vpop.f32.mrb[0].mxu0
  %v2450 = vadd.f32 %v1845, %v2449
  %2451 = vmatprep.mubr.f32.mxu0 %v974
  %2452 = vmatmul.mubr.f32.gmra.mrb[0].mxu0 %v973
  %v2453 = vpop.f32.mrb[0].mxu0
  %v2454 = vadd.f32 %v1849, %v2453
  %v2455 = vpop.f32.mrb[0].mxu0
  %v2456 = vadd.f32 %v1851, %v2455
  %2457 = vmatprep.mubr.f32.mxu0 %v980
  %2458 = vmatmul.mubr.f32.gmra.mrb[0].mxu0 %v979
  %v2459 = vpop.f32.mrb[0].mxu0
  %v2460 = vadd.f32 %v1855, %v2459
  %v2461 = vpop.f32.mrb[0].mxu0
  %v2462 = vadd.f32 %v1857, %v2461
  %2463 = vmatprep.mubr.f32.mxu0 %v986
  %2464 = vmatmul.mubr.f32.gmra.mrb[0].mxu0 %v985
  %v2465 = vpop.f32.mrb[0].mxu0
  %v2466 = vadd.f32 %v1861, %v2465
  %v2467 = vpop.f32.mrb[0].mxu0
  %v2468 = vadd.f32 %v1863, %v2467
  %2469 = vmatprep.mubr.f32.mxu0 %v992
  %2470 = vmatmul.mubr.f32.gmra.mrb[0].mxu0 %v991
  %v2471 = vpop.f32.mrb[0].mxu0
  %v2472 = vadd.f32 %v1867, %v2471
  %v2473 = vpop.f32.mrb[0].mxu0
  %v2474 = vadd.f32 %v1869, %v2473
  %2475 = vmatprep.mubr.f32.mxu0 %v998
  %2476 = vmatmul.mubr.f32.gmra.mrb[0].mxu0 %v997
  %v2477 = vpop.f32.mrb[0].mxu0
  %v2478 = vadd.f32 %v1873, %v2477
  %v2479 = vpop.f32.mrb[0].mxu0
  %v2480 = vadd.f32 %v1875, %v2479
  %2481 = vmatprep.mubr.f32.mxu0 %v1004
  %2482 = vmatmul.mubr.f32.gmra.mrb[0].mxu0 %v1003
  %v2483 = vpop.f32.mrb[0].mxu0
  %v2484 = vadd.f32 %v1879, %v2483
  %v2485 = vpop.f32.mrb[0].mxu0
  %v2486 = vadd.f32 %v1881, %v2485
  %2487 = vmatprep.mubr.f32.mxu0 %v1010
  %2488 = vmatmul.mubr.f32.gmra.mrb[0].mxu0 %v1009
  %v2489 = vpop.f32.mrb[0].mxu0
  %v2490 = vadd.f32 %v1885, %v2489
  %v2491 = vpop.f32.mrb[0].mxu0
  %v2492 = vadd.f32 %v1887, %v2491
  %2493 = vmatprep.mubr.f32.mxu0 %v1016
  %2494 = vmatmul.mubr.f32.gmra.mrb[0].mxu0 %v1015
  %v2495 = vpop.f32.mrb[0].mxu0
  %v2496 = vadd.f32 %v1891, %v2495
  %v2497 = vpop.f32.mrb[0].mxu0
  %v2498 = vadd.f32 %v1893, %v2497
  %2499 = vmatprep.mubr.f32.mxu0 %v1022
  %2500 = vmatmul.mubr.f32.gmra.mrb[0].mxu0 %v1021
  %v2501 = vpop.f32.mrb[0].mxu0
  %v2502 = vadd.f32 %v1897, %v2501
  %v2503 = vpop.f32.mrb[0].mxu0
  %v2504 = vadd.f32 %v1899, %v2503
  %2505 = vmatprep.mubr.f32.mxu0 %v1028
  %2506 = vmatmul.mubr.f32.gmra.mrb[0].mxu0 %v1027
  %v2507 = vpop.f32.mrb[0].mxu0
  %v2508 = vadd.f32 %v1903, %v2507
  %v2509 = vpop.f32.mrb[0].mxu0
  %v2510 = vadd.f32 %v1905, %v2509
  %2511 = vmatprep.mubr.f32.mxu0 %v1034
  %2512 = vmatmul.mubr.f32.gmra.mrb[0].mxu0 %v1033
  %v2513 = vpop.f32.mrb[0].mxu0
  %v2514 = vadd.f32 %v1909, %v2513
  %v2515 = vpop.f32.mrb[0].mxu0
  %v2516 = vadd.f32 %v1911, %v2515
  %2517 = vmatprep.mubr.f32.mxu0 %v1040
  %2518 = vmatmul.mubr.f32.gmra.mrb[0].mxu0 %v1039
  %v2519 = vpop.f32.mrb[0].mxu0
  %v2520 = vadd.f32 %v1915, %v2519
  %v2521 = vpop.f32.mrb[0].mxu0
  %v2522 = vadd.f32 %v1917, %v2521
  %2523 = vmatprep.mubr.f32.mxu0 %v1046
  %2524 = vmatmul.mubr.f32.gmra.mrb[0].mxu0 %v1045
  %v2525 = vpop.f32.mrb[0].mxu0
  %v2526 = vadd.f32 %v1921, %v2525
  %v2527 = vpop.f32.mrb[0].mxu0
  %v2528 = vadd.f32 %v1923, %v2527
  %2529 = vmatprep.mubr.f32.mxu0 %v1052
  %2530 = vmatmul.mubr.f32.gmra.mrb[0].mxu0 %v1051
  %v2531 = vpop.f32.mrb[0].mxu0
  %v2532 = vadd.f32 %v1927, %v2531
  %v2533 = vpop.f32.mrb[0].mxu0
  %v2534 = vadd.f32 %v1929, %v2533
  %2535 = vmatprep.mubr.f32.mxu0 %v1058
  %2536 = vmatmul.mubr.f32.gmra.mrb[0].mxu0 %v1057
  %v2537 = vpop.f32.mrb[0].mxu0
  %v2538 = vadd.f32 %v1933, %v2537
  %v2539 = vpop.f32.mrb[0].mxu0
  %v2540 = vadd.f32 %v1935, %v2539
  %2541 = vmatprep.mubr.f32.mxu0 %v1064
  %2542 = vmatmul.mubr.f32.gmra.mrb[0].mxu0 %v1063
  %v2543 = vpop.f32.mrb[0].mxu0
  %v2544 = vadd.f32 %v1939, %v2543
  %v2545 = vpop.f32.mrb[0].mxu0
  %v2546 = vadd.f32 %v1941, %v2545
  %2547 = vmatprep.mubr.f32.mxu0 %v1070
  %2548 = vmatmul.mubr.f32.gmra.mrb[0].mxu0 %v1069
  %v2549 = vpop.f32.mrb[0].mxu0
  %v2550 = vadd.f32 %v1945, %v2549
  %v2551 = vpop.f32.mrb[0].mxu0
  %v2552 = vadd.f32 %v1947, %v2551
  %2553 = vmatprep.mubr.f32.mxu0 %v1076
  %2554 = vmatmul.mubr.f32.gmra.mrb[0].mxu0 %v1075
  %v2555 = vpop.f32.mrb[0].mxu0
  %v2556 = vadd.f32 %v1951, %v2555
  %v2557 = vpop.f32.mrb[0].mxu0
  %v2558 = vadd.f32 %v1953, %v2557
  %2559 = vmatprep.mubr.f32.mxu0 %v1082
  %2560 = vmatmul.mubr.f32.gmra.mrb[0].mxu0 %v1081
  %v2561 = vpop.f32.mrb[0].mxu0
  %v2562 = vadd.f32 %v1957, %v2561
  %v2563 = vpop.f32.mrb[0].mxu0
  %v2564 = vadd.f32 %v1959, %v2563
  %2565 = vmatprep.mubr.f32.mxu0 %v1088
  %2566 = vmatmul.mubr.f32.gmra.mrb[0].mxu0 %v1087
  %v2567 = vpop.f32.mrb[0].mxu0
  %v2568 = vadd.f32 %v1963, %v2567
  %v2569 = vpop.f32.mrb[0].mxu0
  %v2570 = vadd.f32 %v1965, %v2569
  %2571 = vmatprep.mubr.f32.mxu0 %v1094
  %2572 = vmatmul.mubr.f32.gmra.mrb[0].mxu0 %v1093
  %v2573 = vpop.f32.mrb[0].mxu0
  %v2574 = vadd.f32 %v1969, %v2573
  %v2575 = vpop.f32.mrb[0].mxu0
  %v2576 = vadd.f32 %v1971, %v2575
  %2577 = vmatprep.mubr.f32.mxu0 %v1100
  %2578 = vmatmul.mubr.f32.gmra.mrb[0].mxu0 %v1099
  %v2579 = vpop.f32.mrb[0].mxu0
  %v2580 = vadd.f32 %v1975, %v2579
  %v2581 = vpop.f32.mrb[0].mxu0
  %v2582 = vadd.f32 %v1977, %v2581
  %2583 = vmatprep.mubr.f32.mxu0 %v1106
  %2584 = vmatmul.mubr.f32.gmra.mrb[0].mxu0 %v1105
  %v2585 = vpop.f32.mrb[0].mxu0
  %v2586 = vadd.f32 %v1981, %v2585
  %v2587 = vpop.f32.mrb[0].mxu0
  %v2588 = vadd.f32 %v1983, %v2587
  %2589 = vmatprep.mubr.f32.mxu0 %v1112
  %2590 = vmatmul.mubr.f32.gmra.mrb[0].mxu0 %v1111
  %v2591 = vpop.f32.mrb[0].mxu0
  %v2592 = vadd.f32 %v1987, %v2591
  %v2593 = vpop.f32.mrb[0].mxu0
  %v2594 = vadd.f32 %v1989, %v2593
  %2595 = vmatprep.mubr.f32.mxu0 %v1118
  %2596 = vmatmul.mubr.f32.gmra.mrb[0].mxu0 %v1117
  %v2597 = vpop.f32.mrb[0].mxu0
  %v2598 = vadd.f32 %v1993, %v2597
  %v2599 = vpop.f32.mrb[0].mxu0
  %v2600 = vadd.f32 %v1995, %v2599
  %2601 = vmatprep.mubr.f32.mxu0 %v1124
  %2602 = vmatmul.mubr.f32.gmra.mrb[0].mxu0 %v1123
  %v2603 = vpop.f32.mrb[0].mxu0
  %v2604 = vadd.f32 %v1999, %v2603
  %v2605 = vpop.f32.mrb[0].mxu0
  %v2606 = vadd.f32 %v2001, %v2605
  %2607 = vmatprep.mubr.f32.mxu0 %v1130
  %2608 = vmatmul.mubr.f32.gmra.mrb[0].mxu0 %v1129
  %v2609 = vpop.f32.mrb[0].mxu0
  %v2610 = vadd.f32 %v2005, %v2609
  %v2611 = vpop.f32.mrb[0].mxu0
  %v2612 = vadd.f32 %v2007, %v2611
  %2613 = vmatprep.mubr.f32.mxu0 %v1136
  %2614 = vmatmul.mubr.f32.gmra.mrb[0].mxu0 %v1135
  %v2615 = vpop.f32.mrb[0].mxu0
  %v2616 = vadd.f32 %v2011, %v2615
  %v2617 = vpop.f32.mrb[0].mxu0
  %v2618 = vadd.f32 %v2013, %v2617
  %2619 = vmatprep.mubr.f32.mxu0 %v1142
  %2620 = vmatmul.mubr.f32.gmra.mrb[0].mxu0 %v1141
  %v2621 = vpop.f32.mrb[0].mxu0
  %v2622 = vadd.f32 %v2017, %v2621
  %v2623 = vpop.f32.mrb[0].mxu0
  %v2624 = vadd.f32 %v2019, %v2623
  %2625 = vmatprep.mubr.f32.mxu0 %v1148
  %2626 = vmatmul.mubr.f32.gmra.mrb[0].mxu0 %v1147
  %v2627 = vpop.f32.mrb[0].mxu0
  %v2628 = vadd.f32 %v2023, %v2627
  %v2629 = vpop.f32.mrb[0].mxu0
  %v2630 = vadd.f32 %v2025, %v2629
  %2631 = vmatprep.mubr.f32.mxu0 %v1154
  %2632 = vmatmul.mubr.f32.gmra.mrb[0].mxu0 %v1153
  %v2633 = vpop.f32.mrb[0].mxu0
  %v2634 = vadd.f32 %v2029, %v2633
  %v2635 = vpop.f32.mrb[0].mxu0
  %v2636 = vadd.f32 %v2031, %v2635
  %2637 = vmatprep.mubr.f32.mxu0 %v1160
  %2638 = vmatmul.mubr.f32.gmra.mrb[0].mxu0 %v1159
  %v2639 = vpop.f32.mrb[0].mxu0
  %v2640 = vadd.f32 %v2035, %v2639
  %v2641 = vpop.f32.mrb[0].mxu0
  %v2642 = vadd.f32 %v2037, %v2641
  %2643 = vmatprep.mubr.f32.mxu0 %v1166
  %2644 = vmatmul.mubr.f32.gmra.mrb[0].mxu0 %v1165
  %v2645 = vpop.f32.mrb[0].mxu0
  %v2646 = vadd.f32 %v2041, %v2645
  %v2647 = vpop.f32.mrb[0].mxu0
  %v2648 = vadd.f32 %v2043, %v2647
  %2649 = vmatprep.mubr.f32.mxu0 %v1172
  %2650 = vmatmul.mubr.f32.gmra.mrb[0].mxu0 %v1171
  %v2651 = vpop.f32.mrb[0].mxu0
  %v2652 = vadd.f32 %v2047, %v2651
  %v2653 = vpop.f32.mrb[0].mxu0
  %v2654 = vadd.f32 %v2049, %v2653
  %2655 = vmatprep.mubr.f32.mxu0 %v1178
  %2656 = vmatmul.mubr.f32.gmra.mrb[0].mxu0 %v1177
  %v2657 = vpop.f32.mrb[0].mxu0
  %v2658 = vadd.f32 %v2053, %v2657
  %v2659 = vpop.f32.mrb[0].mxu0
  %v2660 = vadd.f32 %v2055, %v2659
  %2661 = vmatprep.mubr.f32.mxu0 %v1184
  %2662 = vmatmul.mubr.f32.gmra.mrb[0].mxu0 %v1183
  %v2663 = vpop.f32.mrb[0].mxu0
  %v2664 = vadd.f32 %v2059, %v2663
  %v2665 = vpop.f32.mrb[0].mxu0
  %v2666 = vadd.f32 %v2061, %v2665
  %2667 = vmatprep.mubr.f32.mxu0 %v1190
  %2668 = vmatmul.mubr.f32.gmra.mrb[0].mxu0 %v1189
  %v2669 = vpop.f32.mrb[0].mxu0
  %v2670 = vadd.f32 %v2065, %v2669
  %v2671 = vpop.f32.mrb[0].mxu0
  %v2672 = vadd.f32 %v2067, %v2671
  %2673 = vmatprep.mubr.f32.mxu0 %v1196
  %2674 = vmatmul.mubr.f32.gmra.mrb[0].mxu0 %v1195
  %v2675 = vpop.f32.mrb[0].mxu0
  %v2676 = vadd.f32 %v2071, %v2675
  %v2677 = vpop.f32.mrb[0].mxu0
  %v2678 = vadd.f32 %v2073, %v2677
  %2679 = vmatprep.mubr.f32.mxu0 %v1202
  %2680 = vmatmul.mubr.f32.gmra.mrb[0].mxu0 %v1201
  %v2681 = vpop.f32.mrb[0].mxu0
  %v2682 = vadd.f32 %v2077, %v2681
  %v2683 = vpop.f32.mrb[0].mxu0
  %v2684 = vadd.f32 %v2079, %v2683
  %2685 = vmatprep.mubr.f32.mxu0 %v1208
  %2686 = vmatmul.mubr.f32.gmra.mrb[0].mxu0 %v1207
  %v2687 = vpop.f32.mrb[0].mxu0
  %v2688 = vadd.f32 %v2083, %v2687
  %v2689 = vpop.f32.mrb[0].mxu0
  %v2690 = vadd.f32 %v2085, %v2689
  %2691 = vmatprep.mubr.f32.mxu0 %v1214
  %2692 = vmatmul.mubr.f32.gmra.mrb[0].mxu0 %v1213
  %v2693 = vpop.f32.mrb[0].mxu0
  %v2694 = vadd.f32 %v2089, %v2693
  %v2695 = vpop.f32.mrb[0].mxu0
  %v2696 = vadd.f32 %v2091, %v2695
  %2697 = vmatprep.mubr.f32.mxu0 %v1220
  %2698 = vmatmul.mubr.f32.gmra.mrb[0].mxu0 %v1219
  %v2699 = vpop.f32.mrb[0].mxu0
  %v2700 = vadd.f32 %v2095, %v2699
  %v2701 = vpop.f32.mrb[0].mxu0
  %v2702 = vadd.f32 %v2097, %v2701
  %2703 = vmatprep.mubr.f32.mxu0 %v1226
  %2704 = vmatmul.mubr.f32.gmra.mrb[0].mxu0 %v1225
  %v2705 = vpop.f32.mrb[0].mxu0
  %v2706 = vadd.f32 %v2101, %v2705
  %v2707 = vpop.f32.mrb[0].mxu0
  %v2708 = vadd.f32 %v2103, %v2707
  %2709 = vmatprep.mubr.f32.mxu0 %v1232
  %2710 = vmatmul.mubr.f32.gmra.mrb[0].mxu0 %v1231
  %v2711 = vpop.f32.mrb[0].mxu0
  %v2712 = vadd.f32 %v2107, %v2711
  %v2713 = vpop.f32.mrb[0].mxu0
  %v2714 = vadd.f32 %v2109, %v2713
  %2715 = vmatprep.mubr.f32.mxu0 %v1238
  %2716 = vmatmul.mubr.f32.gmra.mrb[0].mxu0 %v1237
  %v2717 = vpop.f32.mrb[0].mxu0
  %v2718 = vadd.f32 %v2113, %v2717
  %v2719 = vpop.f32.mrb[0].mxu0
  %v2720 = vadd.f32 %v2115, %v2719
  %2721 = vmatprep.mubr.f32.mxu0 %v1244
  %2722 = vmatmul.mubr.f32.gmra.mrb[0].mxu0 %v1243
  %v2723 = vpop.f32.mrb[0].mxu0
  %v2724 = vadd.f32 %v2119, %v2723
  %v2725 = vpop.f32.mrb[0].mxu0
  %v2726 = vadd.f32 %v2121, %v2725
  %2727 = vmatprep.mubr.f32.mxu0 %v1250
  %2728 = vmatmul.mubr.f32.gmra.mrb[0].mxu0 %v1249
  %v2729 = vpop.f32.mrb[0].mxu0
  %v2730 = vadd.f32 %v2125, %v2729
  %v2731 = vpop.f32.mrb[0].mxu0
  %v2732 = vadd.f32 %v2127, %v2731
  %2733 = vmatprep.mubr.f32.mxu0 %v1256
  %2734 = vmatmul.mubr.f32.gmra.mrb[0].mxu0 %v1255
  %v2735 = vpop.f32.mrb[0].mxu0
  %v2736 = vadd.f32 %v2131, %v2735
  %v2737 = vpop.f32.mrb[0].mxu0
  %v2738 = vadd.f32 %v2133, %v2737
  %2739 = vmatprep.mubr.f32.mxu0 %v1262
  %2740 = vmatmul.mubr.f32.gmra.mrb[0].mxu0 %v1261
  %v2741 = vpop.f32.mrb[0].mxu0
  %v2742 = vadd.f32 %v2137, %v2741
  %v2743 = vpop.f32.mrb[0].mxu0
  %v2744 = vadd.f32 %v2139, %v2743
  %2745 = vmatprep.mubr.f32.mxu0 %v1268
  %2746 = vmatmul.mubr.f32.gmra.mrb[0].mxu0 %v1267
  %v2747 = vpop.f32.mrb[0].mxu0
  %v2748 = vadd.f32 %v2143, %v2747
  %v2749 = vpop.f32.mrb[0].mxu0
  %v2750 = vadd.f32 %v2145, %v2749
  %2751 = vmatprep.mubr.f32.mxu0 %v1274
  %2752 = vmatmul.mubr.f32.gmra.mrb[0].mxu0 %v1273
  %v2753 = vpop.f32.mrb[0].mxu0
  %v2754 = vadd.f32 %v2149, %v2753
  %v2755 = vpop.f32.mrb[0].mxu0
  %v2756 = vadd.f32 %v2151, %v2755
  %2757 = vdwg.mxu0
  %2758 = vmatprep.subr.mxu0 %v686
  %2759 = vmatpush1.msra.mxu0 %v685
  %2760 = vmatprep.subr.mxu0 %v688
  %2761 = vmatpush1.msra.mxu0 %v687
  %2762 = vmatprep.subr.mxu0 %v690
  %2763 = vmatpush1.msra.mxu0 %v689
  %2764 = vmatprep.subr.mxu0 %v692
  %2765 = vmatpush1.msra.mxu0 %v691
  %2766 = vmatprep.subr.mxu0 %v694
  %2767 = vmatpush1.msra.mxu0 %v693
  %2768 = vmatprep.subr.mxu0 %v696
  %2769 = vmatpush1.msra.mxu0 %v695
  %2770 = vmatprep.subr.mxu0 %v698
  %2771 = vmatpush1.msra.mxu0 %v697
  %2772 = vmatprep.subr.mxu0 %v700
  %2773 = vmatpush1.msra.mxu0 %v699
  %2774 = vmatprep.subr.mxu0 %v702
  %2775 = vmatpush1.msra.mxu0 %v701
  %2776 = vmatprep.subr.mxu0 %v704
  %2777 = vmatpush1.msra.mxu0 %v703
  %2778 = vmatprep.subr.mxu0 %v706
  %2779 = vmatpush1.msra.mxu0 %v705
  %2780 = vmatprep.subr.mxu0 %v708
  %2781 = vmatpush1.msra.mxu0 %v707
  %2782 = vmatprep.subr.mxu0 %v710
  %2783 = vmatpush1.msra.mxu0 %v709
  %2784 = vmatprep.subr.mxu0 %v712
  %2785 = vmatpush1.msra.mxu0 %v711
  %2786 = vmatprep.subr.mxu0 %v714
  %2787 = vmatpush1.msra.mxu0 %v713
  %2788 = vmatprep.subr.mxu0 %v716
  %2789 = vmatpush1.msra.mxu0 %v715
  %2790 = vmatprep.subr.mxu0 %v718
  %2791 = vmatpush1.msra.mxu0 %v717
  %2792 = vmatprep.subr.mxu0 %v720
  %2793 = vmatpush1.msra.mxu0 %v719
  %2794 = vmatprep.subr.mxu0 %v722
  %2795 = vmatpush1.msra.mxu0 %v721
  %2796 = vmatprep.subr.mxu0 %v724
  %2797 = vmatpush1.msra.mxu0 %v723
  %2798 = vmatprep.subr.mxu0 %v726
  %2799 = vmatpush1.msra.mxu0 %v725
  %2800 = vmatprep.subr.mxu0 %v728
  %2801 = vmatpush1.msra.mxu0 %v727
  %2802 = vmatprep.subr.mxu0 %v730
  %2803 = vmatpush1.msra.mxu0 %v729
  %2804 = vmatprep.subr.mxu0 %v732
  %2805 = vmatpush1.msra.mxu0 %v731
  %2806 = vmatprep.subr.mxu0 %v734
  %2807 = vmatpush1.msra.mxu0 %v733
  %2808 = vmatprep.subr.mxu0 %v736
  %2809 = vmatpush1.msra.mxu0 %v735
  %2810 = vmatprep.subr.mxu0 0.0
  %2811 = vmatpush1.msra.mxu0 0.0
  %2812 = vmatprep.subr.mxu0 0.0
  %2813 = vmatpush1.msra.mxu0 0.0
  %2814 = vmatprep.subr.mxu0 0.0
  %2815 = vmatpush1.msra.mxu0 0.0
  %2816 = vmatprep.subr.mxu0 0.0
  %2817 = vmatpush1.msra.mxu0 0.0
  %2818 = vmatprep.subr.mxu0 0.0
  %2819 = vmatpush1.msra.mxu0 0.0
  %2820 = vmatprep.subr.mxu0 0.0
  %2821 = vmatpush1.msra.mxu0 0.0
  %2822 = vmatprep.mubr.f32.mxu0 %v1279
  %2823 = vmatmul.mubr.f32.gmra.mrb[0].mxu0 %v741
  %v2824 = vpop.f32.mrb[0].mxu0
  %v2825 = vadd.f32 %v2220, %v2824
  %v2826 = vpop.f32.mrb[0].mxu0
  %v2827 = vadd.f32 %v2222, %v2826
  %2828 = vmatprep.mubr.f32.mxu0 %v1282
  %2829 = vmatmul.mubr.f32.gmra.mrb[0].mxu0 %v747
  %v2830 = vpop.f32.mrb[0].mxu0
  %v2831 = vadd.f32 %v2226, %v2830
  %v2832 = vpop.f32.mrb[0].mxu0
  %v2833 = vadd.f32 %v2228, %v2832
  %2834 = vmatprep.mubr.f32.mxu0 %v1285
  %2835 = vmatmul.mubr.f32.gmra.mrb[0].mxu0 %v753
  %v2836 = vpop.f32.mrb[0].mxu0
  %v2837 = vadd.f32 %v2232, %v2836
  %v2838 = vpop.f32.mrb[0].mxu0
  %v2839 = vadd.f32 %v2234, %v2838
  %2840 = vmatprep.mubr.f32.mxu0 %v1288
  %2841 = vmatmul.mubr.f32.gmra.mrb[0].mxu0 %v759
  %v2842 = vpop.f32.mrb[0].mxu0
  %v2843 = vadd.f32 %v2238, %v2842
  %v2844 = vpop.f32.mrb[0].mxu0
  %v2845 = vadd.f32 %v2240, %v2844
  %2846 = vmatprep.mubr.f32.mxu0 %v1291
  %2847 = vmatmul.mubr.f32.gmra.mrb[0].mxu0 %v765
  %v2848 = vpop.f32.mrb[0].mxu0
  %v2849 = vadd.f32 %v2244, %v2848
  %v2850 = vpop.f32.mrb[0].mxu0
  %v2851 = vadd.f32 %v2246, %v2850
  %2852 = vmatprep.mubr.f32.mxu0 %v1294
  %2853 = vmatmul.mubr.f32.gmra.mrb[0].mxu0 %v771
  %v2854 = vpop.f32.mrb[0].mxu0
  %v2855 = vadd.f32 %v2250, %v2854
  %v2856 = vpop.f32.mrb[0].mxu0
  %v2857 = vadd.f32 %v2252, %v2856
  %2858 = vmatprep.mubr.f32.mxu0 %v1297
  %2859 = vmatmul.mubr.f32.gmra.mrb[0].mxu0 %v777
  %v2860 = vpop.f32.mrb[0].mxu0
  %v2861 = vadd.f32 %v2256, %v2860
  %v2862 = vpop.f32.mrb[0].mxu0
  %v2863 = vadd.f32 %v2258, %v2862
  %2864 = vmatprep.mubr.f32.mxu0 %v1300
  %2865 = vmatmul.mubr.f32.gmra.mrb[0].mxu0 %v783
  %v2866 = vpop.f32.mrb[0].mxu0
  %v2867 = vadd.f32 %v2262, %v2866
  %v2868 = vpop.f32.mrb[0].mxu0
  %v2869 = vadd.f32 %v2264, %v2868
  %2870 = vmatprep.mubr.f32.mxu0 %v1303
  %2871 = vmatmul.mubr.f32.gmra.mrb[0].mxu0 %v789
  %v2872 = vpop.f32.mrb[0].mxu0
  %v2873 = vadd.f32 %v2268, %v2872
  %v2874 = vpop.f32.mrb[0].mxu0
  %v2875 = vadd.f32 %v2270, %v2874
  %2876 = vmatprep.mubr.f32.mxu0 %v1306
  %2877 = vmatmul.mubr.f32.gmra.mrb[0].mxu0 %v795
  %v2878 = vpop.f32.mrb[0].mxu0
  %v2879 = vadd.f32 %v2274, %v2878
  %v2880 = vpop.f32.mrb[0].mxu0
  %v2881 = vadd.f32 %v2276, %v2880
  %2882 = vmatprep.mubr.f32.mxu0 %v1309
  %2883 = vmatmul.mubr.f32.gmra.mrb[0].mxu0 %v801
  %v2884 = vpop.f32.mrb[0].mxu0
  %v2885 = vadd.f32 %v2280, %v2884
  %v2886 = vpop.f32.mrb[0].mxu0
  %v2887 = vadd.f32 %v2282, %v2886
  %2888 = vmatprep.mubr.f32.mxu0 %v1312
  %2889 = vmatmul.mubr.f32.gmra.mrb[0].mxu0 %v807
  %v2890 = vpop.f32.mrb[0].mxu0
  %v2891 = vadd.f32 %v2286, %v2890
  %v2892 = vpop.f32.mrb[0].mxu0
  %v2893 = vadd.f32 %v2288, %v2892
  %2894 = vmatprep.mubr.f32.mxu0 %v1315
  %2895 = vmatmul.mubr.f32.gmra.mrb[0].mxu0 %v813
  %v2896 = vpop.f32.mrb[0].mxu0
  %v2897 = vadd.f32 %v2292, %v2896
  %v2898 = vpop.f32.mrb[0].mxu0
  %v2899 = vadd.f32 %v2294, %v2898
  %2900 = vmatprep.mubr.f32.mxu0 %v1318
  %2901 = vmatmul.mubr.f32.gmra.mrb[0].mxu0 %v819
  %v2902 = vpop.f32.mrb[0].mxu0
  %v2903 = vadd.f32 %v2298, %v2902
  %v2904 = vpop.f32.mrb[0].mxu0
  %v2905 = vadd.f32 %v2300, %v2904
  %2906 = vmatprep.mubr.f32.mxu0 %v1321
  %2907 = vmatmul.mubr.f32.gmra.mrb[0].mxu0 %v825
  %v2908 = vpop.f32.mrb[0].mxu0
  %v2909 = vadd.f32 %v2304, %v2908
  %v2910 = vpop.f32.mrb[0].mxu0
  %v2911 = vadd.f32 %v2306, %v2910
  %2912 = vmatprep.mubr.f32.mxu0 %v1324
  %2913 = vmatmul.mubr.f32.gmra.mrb[0].mxu0 %v831
  %v2914 = vpop.f32.mrb[0].mxu0
  %v2915 = vadd.f32 %v2310, %v2914
  %v2916 = vpop.f32.mrb[0].mxu0
  %v2917 = vadd.f32 %v2312, %v2916
  %2918 = vmatprep.mubr.f32.mxu0 %v1327
  %2919 = vmatmul.mubr.f32.gmra.mrb[0].mxu0 %v837
  %v2920 = vpop.f32.mrb[0].mxu0
  %v2921 = vadd.f32 %v2316, %v2920
  %v2922 = vpop.f32.mrb[0].mxu0
  %v2923 = vadd.f32 %v2318, %v2922
  %2924 = vmatprep.mubr.f32.mxu0 %v1330
  %2925 = vmatmul.mubr.f32.gmra.mrb[0].mxu0 %v843
  %v2926 = vpop.f32.mrb[0].mxu0
  %v2927 = vadd.f32 %v2322, %v2926
  %v2928 = vpop.f32.mrb[0].mxu0
  %v2929 = vadd.f32 %v2324, %v2928
  %2930 = vmatprep.mubr.f32.mxu0 %v1333
  %2931 = vmatmul.mubr.f32.gmra.mrb[0].mxu0 %v849
  %v2932 = vpop.f32.mrb[0].mxu0
  %v2933 = vadd.f32 %v2328, %v2932
  %v2934 = vpop.f32.mrb[0].mxu0
  %v2935 = vadd.f32 %v2330, %v2934
  %2936 = vmatprep.mubr.f32.mxu0 %v1336
  %2937 = vmatmul.mubr.f32.gmra.mrb[0].mxu0 %v855
  %v2938 = vpop.f32.mrb[0].mxu0
  %v2939 = vadd.f32 %v2334, %v2938
  %v2940 = vpop.f32.mrb[0].mxu0
  %v2941 = vadd.f32 %v2336, %v2940
  %2942 = vmatprep.mubr.f32.mxu0 %v1339
  %2943 = vmatmul.mubr.f32.gmra.mrb[0].mxu0 %v861
  %v2944 = vpop.f32.mrb[0].mxu0
  %v2945 = vadd.f32 %v2340, %v2944
  %v2946 = vpop.f32.mrb[0].mxu0
  %v2947 = vadd.f32 %v2342, %v2946
  %2948 = vmatprep.mubr.f32.mxu0 %v1342
  %2949 = vmatmul.mubr.f32.gmra.mrb[0].mxu0 %v867
  %v2950 = vpop.f32.mrb[0].mxu0
  %v2951 = vadd.f32 %v2346, %v2950
  %v2952 = vpop.f32.mrb[0].mxu0
  %v2953 = vadd.f32 %v2348, %v2952
  %2954 = vmatprep.mubr.f32.mxu0 %v1345
  %2955 = vmatmul.mubr.f32.gmra.mrb[0].mxu0 %v873
  %v2956 = vpop.f32.mrb[0].mxu0
  %v2957 = vadd.f32 %v2352, %v2956
  %v2958 = vpop.f32.mrb[0].mxu0
  %v2959 = vadd.f32 %v2354, %v2958
  %2960 = vmatprep.mubr.f32.mxu0 %v1348
  %2961 = vmatmul.mubr.f32.gmra.mrb[0].mxu0 %v879
  %v2962 = vpop.f32.mrb[0].mxu0
  %v2963 = vadd.f32 %v2358, %v2962
  %v2964 = vpop.f32.mrb[0].mxu0
  %v2965 = vadd.f32 %v2360, %v2964
  %2966 = vmatprep.mubr.f32.mxu0 %v1351
  %2967 = vmatmul.mubr.f32.gmra.mrb[0].mxu0 %v885
  %v2968 = vpop.f32.mrb[0].mxu0
  %v2969 = vadd.f32 %v2364, %v2968
  %v2970 = vpop.f32.mrb[0].mxu0
  %v2971 = vadd.f32 %v2366, %v2970
  %2972 = vmatprep.mubr.f32.mxu0 %v1354
  %2973 = vmatmul.mubr.f32.gmra.mrb[0].mxu0 %v891
  %v2974 = vpop.f32.mrb[0].mxu0
  %v2975 = vadd.f32 %v2370, %v2974
  %v2976 = vpop.f32.mrb[0].mxu0
  %v2977 = vadd.f32 %v2372, %v2976
  %2978 = vmatprep.mubr.f32.mxu0 %v1357
  %2979 = vmatmul.mubr.f32.gmra.mrb[0].mxu0 %v897
  %v2980 = vpop.f32.mrb[0].mxu0
  %v2981 = vadd.f32 %v2376, %v2980
  %v2982 = vpop.f32.mrb[0].mxu0
  %v2983 = vadd.f32 %v2378, %v2982
  %2984 = vmatprep.mubr.f32.mxu0 %v1360
  %2985 = vmatmul.mubr.f32.gmra.mrb[0].mxu0 %v903
  %v2986 = vpop.f32.mrb[0].mxu0
  %v2987 = vadd.f32 %v2382, %v2986
  %v2988 = vpop.f32.mrb[0].mxu0
  %v2989 = vadd.f32 %v2384, %v2988
  %2990 = vmatprep.mubr.f32.mxu0 %v1363
  %2991 = vmatmul.mubr.f32.gmra.mrb[0].mxu0 %v909
  %v2992 = vpop.f32.mrb[0].mxu0
  %v2993 = vadd.f32 %v2388, %v2992
  %v2994 = vpop.f32.mrb[0].mxu0
  %v2995 = vadd.f32 %v2390, %v2994
  %2996 = vmatprep.mubr.f32.mxu0 %v1366
  %2997 = vmatmul.mubr.f32.gmra.mrb[0].mxu0 %v915
  %v2998 = vpop.f32.mrb[0].mxu0
  %v2999 = vadd.f32 %v2394, %v2998
  %v3000 = vpop.f32.mrb[0].mxu0
  %v3001 = vadd.f32 %v2396, %v3000
  %3002 = vmatprep.mubr.f32.mxu0 %v1369
  %3003 = vmatmul.mubr.f32.gmra.mrb[0].mxu0 %v921
  %v3004 = vpop.f32.mrb[0].mxu0
  %v3005 = vadd.f32 %v2400, %v3004
  %v3006 = vpop.f32.mrb[0].mxu0
  %v3007 = vadd.f32 %v2402, %v3006
  %3008 = vmatprep.mubr.f32.mxu0 %v1372
  %3009 = vmatmul.mubr.f32.gmra.mrb[0].mxu0 %v927
  %v3010 = vpop.f32.mrb[0].mxu0
  %v3011 = vadd.f32 %v2406, %v3010
  %v3012 = vpop.f32.mrb[0].mxu0
  %v3013 = vadd.f32 %v2408, %v3012
  %3014 = vmatprep.mubr.f32.mxu0 %v1375
  %3015 = vmatmul.mubr.f32.gmra.mrb[0].mxu0 %v933
  %v3016 = vpop.f32.mrb[0].mxu0
  %v3017 = vadd.f32 %v2412, %v3016
  %v3018 = vpop.f32.mrb[0].mxu0
  %v3019 = vadd.f32 %v2414, %v3018
  %3020 = vmatprep.mubr.f32.mxu0 %v1378
  %3021 = vmatmul.mubr.f32.gmra.mrb[0].mxu0 %v939
  %v3022 = vpop.f32.mrb[0].mxu0
  %v3023 = vadd.f32 %v2418, %v3022
  %v3024 = vpop.f32.mrb[0].mxu0
  %v3025 = vadd.f32 %v2420, %v3024
  %3026 = vmatprep.mubr.f32.mxu0 %v1381
  %3027 = vmatmul.mubr.f32.gmra.mrb[0].mxu0 %v945
  %v3028 = vpop.f32.mrb[0].mxu0
  %v3029 = vadd.f32 %v2424, %v3028
  %v3030 = vpop.f32.mrb[0].mxu0
  %v3031 = vadd.f32 %v2426, %v3030
  %3032 = vmatprep.mubr.f32.mxu0 %v1384
  %3033 = vmatmul.mubr.f32.gmra.mrb[0].mxu0 %v951
  %v3034 = vpop.f32.mrb[0].mxu0
  %v3035 = vadd.f32 %v2430, %v3034
  %v3036 = vpop.f32.mrb[0].mxu0
  %v3037 = vadd.f32 %v2432, %v3036
  %3038 = vmatprep.mubr.f32.mxu0 %v1387
  %3039 = vmatmul.mubr.f32.gmra.mrb[0].mxu0 %v957
  %v3040 = vpop.f32.mrb[0].mxu0
  %v3041 = vadd.f32 %v2436, %v3040
  %v3042 = vpop.f32.mrb[0].mxu0
  %v3043 = vadd.f32 %v2438, %v3042
  %3044 = vmatprep.mubr.f32.mxu0 %v1390
  %3045 = vmatmul.mubr.f32.gmra.mrb[0].mxu0 %v963
  %v3046 = vpop.f32.mrb[0].mxu0
  %v3047 = vadd.f32 %v2442, %v3046
  %v3048 = vpop.f32.mrb[0].mxu0
  %v3049 = vadd.f32 %v2444, %v3048
  %3050 = vmatprep.mubr.f32.mxu0 %v1393
  %3051 = vmatmul.mubr.f32.gmra.mrb[0].mxu0 %v969
  %v3052 = vpop.f32.mrb[0].mxu0
  %v3053 = vadd.f32 %v2448, %v3052
  %v3054 = vpop.f32.mrb[0].mxu0
  %v3055 = vadd.f32 %v2450, %v3054
  %3056 = vmatprep.mubr.f32.mxu0 %v1396
  %3057 = vmatmul.mubr.f32.gmra.mrb[0].mxu0 %v975
  %v3058 = vpop.f32.mrb[0].mxu0
  %v3059 = vadd.f32 %v2454, %v3058
  %v3060 = vpop.f32.mrb[0].mxu0
  %v3061 = vadd.f32 %v2456, %v3060
  %3062 = vmatprep.mubr.f32.mxu0 %v1399
  %3063 = vmatmul.mubr.f32.gmra.mrb[0].mxu0 %v981
  %v3064 = vpop.f32.mrb[0].mxu0
  %v3065 = vadd.f32 %v2460, %v3064
  %v3066 = vpop.f32.mrb[0].mxu0
  %v3067 = vadd.f32 %v2462, %v3066
  %3068 = vmatprep.mubr.f32.mxu0 %v1402
  %3069 = vmatmul.mubr.f32.gmra.mrb[0].mxu0 %v987
  %v3070 = vpop.f32.mrb[0].mxu0
  %v3071 = vadd.f32 %v2466, %v3070
  %v3072 = vpop.f32.mrb[0].mxu0
  %v3073 = vadd.f32 %v2468, %v3072
  %3074 = vmatprep.mubr.f32.mxu0 %v1405
  %3075 = vmatmul.mubr.f32.gmra.mrb[0].mxu0 %v993
  %v3076 = vpop.f32.mrb[0].mxu0
  %v3077 = vadd.f32 %v2472, %v3076
  %v3078 = vpop.f32.mrb[0].mxu0
  %v3079 = vadd.f32 %v2474, %v3078
  %3080 = vmatprep.mubr.f32.mxu0 %v1408
  %3081 = vmatmul.mubr.f32.gmra.mrb[0].mxu0 %v999
  %v3082 = vpop.f32.mrb[0].mxu0
  %v3083 = vadd.f32 %v2478, %v3082
  %v3084 = vpop.f32.mrb[0].mxu0
  %v3085 = vadd.f32 %v2480, %v3084
  %3086 = vmatprep.mubr.f32.mxu0 %v1411
  %3087 = vmatmul.mubr.f32.gmra.mrb[0].mxu0 %v1005
  %v3088 = vpop.f32.mrb[0].mxu0
  %v3089 = vadd.f32 %v2484, %v3088
  %v3090 = vpop.f32.mrb[0].mxu0
  %v3091 = vadd.f32 %v2486, %v3090
  %3092 = vmatprep.mubr.f32.mxu0 %v1414
  %3093 = vmatmul.mubr.f32.gmra.mrb[0].mxu0 %v1011
  %v3094 = vpop.f32.mrb[0].mxu0
  %v3095 = vadd.f32 %v2490, %v3094
  %v3096 = vpop.f32.mrb[0].mxu0
  %v3097 = vadd.f32 %v2492, %v3096
  %3098 = vmatprep.mubr.f32.mxu0 %v1417
  %3099 = vmatmul.mubr.f32.gmra.mrb[0].mxu0 %v1017
  %v3100 = vpop.f32.mrb[0].mxu0
  %v3101 = vadd.f32 %v2496, %v3100
  %v3102 = vpop.f32.mrb[0].mxu0
  %v3103 = vadd.f32 %v2498, %v3102
  %3104 = vmatprep.mubr.f32.mxu0 %v1420
  %3105 = vmatmul.mubr.f32.gmra.mrb[0].mxu0 %v1023
  %v3106 = vpop.f32.mrb[0].mxu0
  %v3107 = vadd.f32 %v2502, %v3106
  %v3108 = vpop.f32.mrb[0].mxu0
  %v3109 = vadd.f32 %v2504, %v3108
  %3110 = vmatprep.mubr.f32.mxu0 %v1423
  %3111 = vmatmul.mubr.f32.gmra.mrb[0].mxu0 %v1029
  %v3112 = vpop.f32.mrb[0].mxu0
  %v3113 = vadd.f32 %v2508, %v3112
  %v3114 = vpop.f32.mrb[0].mxu0
  %v3115 = vadd.f32 %v2510, %v3114
  %3116 = vmatprep.mubr.f32.mxu0 %v1426
  %3117 = vmatmul.mubr.f32.gmra.mrb[0].mxu0 %v1035
  %v3118 = vpop.f32.mrb[0].mxu0
  %v3119 = vadd.f32 %v2514, %v3118
  %v3120 = vpop.f32.mrb[0].mxu0
  %v3121 = vadd.f32 %v2516, %v3120
  %3122 = vmatprep.mubr.f32.mxu0 %v1429
  %3123 = vmatmul.mubr.f32.gmra.mrb[0].mxu0 %v1041
  %v3124 = vpop.f32.mrb[0].mxu0
  %v3125 = vadd.f32 %v2520, %v3124
  %v3126 = vpop.f32.mrb[0].mxu0
  %v3127 = vadd.f32 %v2522, %v3126
  %3128 = vmatprep.mubr.f32.mxu0 %v1432
  %3129 = vmatmul.mubr.f32.gmra.mrb[0].mxu0 %v1047
  %v3130 = vpop.f32.mrb[0].mxu0
  %v3131 = vadd.f32 %v2526, %v3130
  %v3132 = vpop.f32.mrb[0].mxu0
  %v3133 = vadd.f32 %v2528, %v3132
  %3134 = vmatprep.mubr.f32.mxu0 %v1435
  %3135 = vmatmul.mubr.f32.gmra.mrb[0].mxu0 %v1053
  %v3136 = vpop.f32.mrb[0].mxu0
  %v3137 = vadd.f32 %v2532, %v3136
  %v3138 = vpop.f32.mrb[0].mxu0
  %v3139 = vadd.f32 %v2534, %v3138
  %3140 = vmatprep.mubr.f32.mxu0 %v1438
  %3141 = vmatmul.mubr.f32.gmra.mrb[0].mxu0 %v1059
  %v3142 = vpop.f32.mrb[0].mxu0
  %v3143 = vadd.f32 %v2538, %v3142
  %v3144 = vpop.f32.mrb[0].mxu0
  %v3145 = vadd.f32 %v2540, %v3144
  %3146 = vmatprep.mubr.f32.mxu0 %v1441
  %3147 = vmatmul.mubr.f32.gmra.mrb[0].mxu0 %v1065
  %v3148 = vpop.f32.mrb[0].mxu0
  %v3149 = vadd.f32 %v2544, %v3148
  %v3150 = vpop.f32.mrb[0].mxu0
  %v3151 = vadd.f32 %v2546, %v3150
  %3152 = vmatprep.mubr.f32.mxu0 %v1444
  %3153 = vmatmul.mubr.f32.gmra.mrb[0].mxu0 %v1071
  %v3154 = vpop.f32.mrb[0].mxu0
  %v3155 = vadd.f32 %v2550, %v3154
  %v3156 = vpop.f32.mrb[0].mxu0
  %v3157 = vadd.f32 %v2552, %v3156
  %3158 = vmatprep.mubr.f32.mxu0 %v1447
  %3159 = vmatmul.mubr.f32.gmra.mrb[0].mxu0 %v1077
  %v3160 = vpop.f32.mrb[0].mxu0
  %v3161 = vadd.f32 %v2556, %v3160
  %v3162 = vpop.f32.mrb[0].mxu0
  %v3163 = vadd.f32 %v2558, %v3162
  %3164 = vmatprep.mubr.f32.mxu0 %v1450
  %3165 = vmatmul.mubr.f32.gmra.mrb[0].mxu0 %v1083
  %v3166 = vpop.f32.mrb[0].mxu0
  %v3167 = vadd.f32 %v2562, %v3166
  %v3168 = vpop.f32.mrb[0].mxu0
  %v3169 = vadd.f32 %v2564, %v3168
  %3170 = vmatprep.mubr.f32.mxu0 %v1453
  %3171 = vmatmul.mubr.f32.gmra.mrb[0].mxu0 %v1089
  %v3172 = vpop.f32.mrb[0].mxu0
  %v3173 = vadd.f32 %v2568, %v3172
  %v3174 = vpop.f32.mrb[0].mxu0
  %v3175 = vadd.f32 %v2570, %v3174
  %3176 = vmatprep.mubr.f32.mxu0 %v1456
  %3177 = vmatmul.mubr.f32.gmra.mrb[0].mxu0 %v1095
  %v3178 = vpop.f32.mrb[0].mxu0
  %v3179 = vadd.f32 %v2574, %v3178
  %v3180 = vpop.f32.mrb[0].mxu0
  %v3181 = vadd.f32 %v2576, %v3180
  %3182 = vmatprep.mubr.f32.mxu0 %v1459
  %3183 = vmatmul.mubr.f32.gmra.mrb[0].mxu0 %v1101
  %v3184 = vpop.f32.mrb[0].mxu0
  %v3185 = vadd.f32 %v2580, %v3184
  %v3186 = vpop.f32.mrb[0].mxu0
  %v3187 = vadd.f32 %v2582, %v3186
  %3188 = vmatprep.mubr.f32.mxu0 %v1462
  %3189 = vmatmul.mubr.f32.gmra.mrb[0].mxu0 %v1107
  %v3190 = vpop.f32.mrb[0].mxu0
  %v3191 = vadd.f32 %v2586, %v3190
  %v3192 = vpop.f32.mrb[0].mxu0
  %v3193 = vadd.f32 %v2588, %v3192
  %3194 = vmatprep.mubr.f32.mxu0 %v1465
  %3195 = vmatmul.mubr.f32.gmra.mrb[0].mxu0 %v1113
  %v3196 = vpop.f32.mrb[0].mxu0
  %v3197 = vadd.f32 %v2592, %v3196
  %v3198 = vpop.f32.mrb[0].mxu0
  %v3199 = vadd.f32 %v2594, %v3198
  %3200 = vmatprep.mubr.f32.mxu0 %v1468
  %3201 = vmatmul.mubr.f32.gmra.mrb[0].mxu0 %v1119
  %v3202 = vpop.f32.mrb[0].mxu0
  %v3203 = vadd.f32 %v2598, %v3202
  %v3204 = vpop.f32.mrb[0].mxu0
  %v3205 = vadd.f32 %v2600, %v3204
  %3206 = vmatprep.mubr.f32.mxu0 %v1471
  %3207 = vmatmul.mubr.f32.gmra.mrb[0].mxu0 %v1125
  %v3208 = vpop.f32.mrb[0].mxu0
  %v3209 = vadd.f32 %v2604, %v3208
  %v3210 = vpop.f32.mrb[0].mxu0
  %v3211 = vadd.f32 %v2606, %v3210
  %3212 = vmatprep.mubr.f32.mxu0 %v1474
  %3213 = vmatmul.mubr.f32.gmra.mrb[0].mxu0 %v1131
  %v3214 = vpop.f32.mrb[0].mxu0
  %v3215 = vadd.f32 %v2610, %v3214
  %v3216 = vpop.f32.mrb[0].mxu0
  %v3217 = vadd.f32 %v2612, %v3216
  %3218 = vmatprep.mubr.f32.mxu0 %v1477
  %3219 = vmatmul.mubr.f32.gmra.mrb[0].mxu0 %v1137
  %v3220 = vpop.f32.mrb[0].mxu0
  %v3221 = vadd.f32 %v2616, %v3220
  %v3222 = vpop.f32.mrb[0].mxu0
  %v3223 = vadd.f32 %v2618, %v3222
  %3224 = vmatprep.mubr.f32.mxu0 %v1480
  %3225 = vmatmul.mubr.f32.gmra.mrb[0].mxu0 %v1143
  %v3226 = vpop.f32.mrb[0].mxu0
  %v3227 = vadd.f32 %v2622, %v3226
  %v3228 = vpop.f32.mrb[0].mxu0
  %v3229 = vadd.f32 %v2624, %v3228
  %3230 = vmatprep.mubr.f32.mxu0 %v1483
  %3231 = vmatmul.mubr.f32.gmra.mrb[0].mxu0 %v1149
  %v3232 = vpop.f32.mrb[0].mxu0
  %v3233 = vadd.f32 %v2628, %v3232
  %v3234 = vpop.f32.mrb[0].mxu0
  %v3235 = vadd.f32 %v2630, %v3234
  %3236 = vmatprep.mubr.f32.mxu0 %v1486
  %3237 = vmatmul.mubr.f32.gmra.mrb[0].mxu0 %v1155
  %v3238 = vpop.f32.mrb[0].mxu0
  %v3239 = vadd.f32 %v2634, %v3238
  %v3240 = vpop.f32.mrb[0].mxu0
  %v3241 = vadd.f32 %v2636, %v3240
  %3242 = vmatprep.mubr.f32.mxu0 %v1489
  %3243 = vmatmul.mubr.f32.gmra.mrb[0].mxu0 %v1161
  %v3244 = vpop.f32.mrb[0].mxu0
  %v3245 = vadd.f32 %v2640, %v3244
  %v3246 = vpop.f32.mrb[0].mxu0
  %v3247 = vadd.f32 %v2642, %v3246
  %3248 = vmatprep.mubr.f32.mxu0 %v1492
  %3249 = vmatmul.mubr.f32.gmra.mrb[0].mxu0 %v1167
  %v3250 = vpop.f32.mrb[0].mxu0
  %v3251 = vadd.f32 %v2646, %v3250
  %v3252 = vpop.f32.mrb[0].mxu0
  %v3253 = vadd.f32 %v2648, %v3252
  %3254 = vmatprep.mubr.f32.mxu0 %v1495
  %3255 = vmatmul.mubr.f32.gmra.mrb[0].mxu0 %v1173
  %v3256 = vpop.f32.mrb[0].mxu0
  %v3257 = vadd.f32 %v2652, %v3256
  %v3258 = vpop.f32.mrb[0].mxu0
  %v3259 = vadd.f32 %v2654, %v3258
  %3260 = vmatprep.mubr.f32.mxu0 %v1498
  %3261 = vmatmul.mubr.f32.gmra.mrb[0].mxu0 %v1179
  %v3262 = vpop.f32.mrb[0].mxu0
  %v3263 = vadd.f32 %v2658, %v3262
  %v3264 = vpop.f32.mrb[0].mxu0
  %v3265 = vadd.f32 %v2660, %v3264
  %3266 = vmatprep.mubr.f32.mxu0 %v1501
  %3267 = vmatmul.mubr.f32.gmra.mrb[0].mxu0 %v1185
  %v3268 = vpop.f32.mrb[0].mxu0
  %v3269 = vadd.f32 %v2664, %v3268
  %v3270 = vpop.f32.mrb[0].mxu0
  %v3271 = vadd.f32 %v2666, %v3270
  %3272 = vmatprep.mubr.f32.mxu0 %v1504
  %3273 = vmatmul.mubr.f32.gmra.mrb[0].mxu0 %v1191
  %v3274 = vpop.f32.mrb[0].mxu0
  %v3275 = vadd.f32 %v2670, %v3274
  %v3276 = vpop.f32.mrb[0].mxu0
  %v3277 = vadd.f32 %v2672, %v3276
  %3278 = vmatprep.mubr.f32.mxu0 %v1507
  %3279 = vmatmul.mubr.f32.gmra.mrb[0].mxu0 %v1197
  %v3280 = vpop.f32.mrb[0].mxu0
  %v3281 = vadd.f32 %v2676, %v3280
  %v3282 = vpop.f32.mrb[0].mxu0
  %v3283 = vadd.f32 %v2678, %v3282
  %3284 = vmatprep.mubr.f32.mxu0 %v1510
  %3285 = vmatmul.mubr.f32.gmra.mrb[0].mxu0 %v1203
  %v3286 = vpop.f32.mrb[0].mxu0
  %v3287 = vadd.f32 %v2682, %v3286
  %v3288 = vpop.f32.mrb[0].mxu0
  %v3289 = vadd.f32 %v2684, %v3288
  %3290 = vmatprep.mubr.f32.mxu0 %v1513
  %3291 = vmatmul.mubr.f32.gmra.mrb[0].mxu0 %v1209
  %v3292 = vpop.f32.mrb[0].mxu0
  %v3293 = vadd.f32 %v2688, %v3292
  %v3294 = vpop.f32.mrb[0].mxu0
  %v3295 = vadd.f32 %v2690, %v3294
  %3296 = vmatprep.mubr.f32.mxu0 %v1516
  %3297 = vmatmul.mubr.f32.gmra.mrb[0].mxu0 %v1215
  %v3298 = vpop.f32.mrb[0].mxu0
  %v3299 = vadd.f32 %v2694, %v3298
  %v3300 = vpop.f32.mrb[0].mxu0
  %v3301 = vadd.f32 %v2696, %v3300
  %3302 = vmatprep.mubr.f32.mxu0 %v1519
  %3303 = vmatmul.mubr.f32.gmra.mrb[0].mxu0 %v1221
  %v3304 = vpop.f32.mrb[0].mxu0
  %v3305 = vadd.f32 %v2700, %v3304
  %v3306 = vpop.f32.mrb[0].mxu0
  %v3307 = vadd.f32 %v2702, %v3306
  %3308 = vmatprep.mubr.f32.mxu0 %v1522
  %3309 = vmatmul.mubr.f32.gmra.mrb[0].mxu0 %v1227
  %v3310 = vpop.f32.mrb[0].mxu0
  %v3311 = vadd.f32 %v2706, %v3310
  %v3312 = vpop.f32.mrb[0].mxu0
  %v3313 = vadd.f32 %v2708, %v3312
  %3314 = vmatprep.mubr.f32.mxu0 %v1525
  %3315 = vmatmul.mubr.f32.gmra.mrb[0].mxu0 %v1233
  %v3316 = vpop.f32.mrb[0].mxu0
  %v3317 = vadd.f32 %v2712, %v3316
  %v3318 = vpop.f32.mrb[0].mxu0
  %v3319 = vadd.f32 %v2714, %v3318
  %3320 = vmatprep.mubr.f32.mxu0 %v1528
  %3321 = vmatmul.mubr.f32.gmra.mrb[0].mxu0 %v1239
  %v3322 = vpop.f32.mrb[0].mxu0
  %v3323 = vadd.f32 %v2718, %v3322
  %v3324 = vpop.f32.mrb[0].mxu0
  %v3325 = vadd.f32 %v2720, %v3324
  %3326 = vmatprep.mubr.f32.mxu0 %v1531
  %3327 = vmatmul.mubr.f32.gmra.mrb[0].mxu0 %v1245
  %v3328 = vpop.f32.mrb[0].mxu0
  %v3329 = vadd.f32 %v2724, %v3328
  %v3330 = vpop.f32.mrb[0].mxu0
  %v3331 = vadd.f32 %v2726, %v3330
  %3332 = vmatprep.mubr.f32.mxu0 %v1534
  %3333 = vmatmul.mubr.f32.gmra.mrb[0].mxu0 %v1251
  %v3334 = vpop.f32.mrb[0].mxu0
  %v3335 = vadd.f32 %v2730, %v3334
  %v3336 = vpop.f32.mrb[0].mxu0
  %v3337 = vadd.f32 %v2732, %v3336
  %3338 = vmatprep.mubr.f32.mxu0 %v1537
  %3339 = vmatmul.mubr.f32.gmra.mrb[0].mxu0 %v1257
  %v3340 = vpop.f32.mrb[0].mxu0
  %v3341 = vadd.f32 %v2736, %v3340
  %v3342 = vpop.f32.mrb[0].mxu0
  %v3343 = vadd.f32 %v2738, %v3342
  %3344 = vmatprep.mubr.f32.mxu0 %v1540
  %3345 = vmatmul.mubr.f32.gmra.mrb[0].mxu0 %v1263
  %v3346 = vpop.f32.mrb[0].mxu0
  %v3347 = vadd.f32 %v2742, %v3346
  %v3348 = vpop.f32.mrb[0].mxu0
  %v3349 = vadd.f32 %v2744, %v3348
  %3350 = vmatprep.mubr.f32.mxu0 %v1543
  %3351 = vmatmul.mubr.f32.gmra.mrb[0].mxu0 %v1269
  %v3352 = vpop.f32.mrb[0].mxu0
  %v3353 = vadd.f32 %v2748, %v3352
  %v3354 = vpop.f32.mrb[0].mxu0
  %v3355 = vadd.f32 %v2750, %v3354
  %3356 = vmatprep.mubr.f32.mxu0 %v1546
  %3357 = vmatmul.mubr.f32.gmra.mrb[0].mxu0 %v1275
  %v3358 = vpop.f32.mrb[0].mxu0
  %v3359 = vadd.f32 %v2754, %v3358
  %v3360 = vpop.f32.mrb[0].mxu0
  %v3361 = vadd.f32 %v2756, %v3360
  %3362 = vdwg.mxu0
  %vm3363 = vcmask 556032
  %v3364 = vsel %vm3363, %v2827, 0.0
  %v3365 = vadd.f32 %v2825, %v3364
  %3366 = vadd.xlane.f32.xlu0 %v3365
  %v3367 = vpop.xlane.xlu0 %3366
  %v3368 = vsel %vm3363, %v2833, 0.0
  %v3369 = vadd.f32 %v2831, %v3368
  %3370 = vadd.xlane.f32.xlu0 %v3369
  %v3371 = vpop.xlane.xlu0 %3370
  %v3372 = vsel %vm3363, %v2839, 0.0
  %v3373 = vadd.f32 %v2837, %v3372
  %3374 = vadd.xlane.f32.xlu0 %v3373
  %v3375 = vpop.xlane.xlu0 %3374
  %v3376 = vsel %vm3363, %v2845, 0.0
  %v3377 = vadd.f32 %v2843, %v3376
  %3378 = vadd.xlane.f32.xlu0 %v3377
  %v3379 = vpop.xlane.xlu0 %3378
  %v3380 = vsel %vm3363, %v2851, 0.0
  %v3381 = vadd.f32 %v2849, %v3380
  %3382 = vadd.xlane.f32.xlu0 %v3381
  %v3383 = vpop.xlane.xlu0 %3382
  %v3384 = vsel %vm3363, %v2857, 0.0
  %v3385 = vadd.f32 %v2855, %v3384
  %3386 = vadd.xlane.f32.xlu0 %v3385
  %v3387 = vpop.xlane.xlu0 %3386
  %v3388 = vsel %vm3363, %v2863, 0.0
  %v3389 = vadd.f32 %v2861, %v3388
  %3390 = vadd.xlane.f32.xlu0 %v3389
  %v3391 = vpop.xlane.xlu0 %3390
  %v3392 = vsel %vm3363, %v2869, 0.0
  %v3393 = vadd.f32 %v2867, %v3392
  %3394 = vadd.xlane.f32.xlu0 %v3393
  %v3395 = vpop.xlane.xlu0 %3394
  %v3396 = vsel %vm3363, %v2875, 0.0
  %v3397 = vadd.f32 %v2873, %v3396
  %3398 = vadd.xlane.f32.xlu0 %v3397
  %v3399 = vpop.xlane.xlu0 %3398
  %v3400 = vsel %vm3363, %v2881, 0.0
  %v3401 = vadd.f32 %v2879, %v3400
  %3402 = vadd.xlane.f32.xlu0 %v3401
  %v3403 = vpop.xlane.xlu0 %3402
  %v3404 = vsel %vm3363, %v2887, 0.0
  %v3405 = vadd.f32 %v2885, %v3404
  %3406 = vadd.xlane.f32.xlu0 %v3405
  %v3407 = vpop.xlane.xlu0 %3406
  %v3408 = vsel %vm3363, %v2893, 0.0
  %v3409 = vadd.f32 %v2891, %v3408
  %3410 = vadd.xlane.f32.xlu0 %v3409
  %v3411 = vpop.xlane.xlu0 %3410
  %v3412 = vsel %vm3363, %v2899, 0.0
  %v3413 = vadd.f32 %v2897, %v3412
  %3414 = vadd.xlane.f32.xlu0 %v3413
  %v3415 = vpop.xlane.xlu0 %3414
  %v3416 = vsel %vm3363, %v2905, 0.0
  %v3417 = vadd.f32 %v2903, %v3416
  %3418 = vadd.xlane.f32.xlu0 %v3417
  %v3419 = vpop.xlane.xlu0 %3418
  %v3420 = vsel %vm3363, %v2911, 0.0
  %v3421 = vadd.f32 %v2909, %v3420
  %3422 = vadd.xlane.f32.xlu0 %v3421
  %v3423 = vpop.xlane.xlu0 %3422
  %v3424 = vsel %vm3363, %v2917, 0.0
  %v3425 = vadd.f32 %v2915, %v3424
  %3426 = vadd.xlane.f32.xlu0 %v3425
  %v3427 = vpop.xlane.xlu0 %3426
  %v3428 = vsel %vm3363, %v2923, 0.0
  %v3429 = vadd.f32 %v2921, %v3428
  %3430 = vadd.xlane.f32.xlu0 %v3429
  %v3431 = vpop.xlane.xlu0 %3430
  %v3432 = vsel %vm3363, %v2929, 0.0
  %v3433 = vadd.f32 %v2927, %v3432
  %3434 = vadd.xlane.f32.xlu0 %v3433
  %v3435 = vpop.xlane.xlu0 %3434
  %v3436 = vsel %vm3363, %v2935, 0.0
  %v3437 = vadd.f32 %v2933, %v3436
  %3438 = vadd.xlane.f32.xlu0 %v3437
  %v3439 = vpop.xlane.xlu0 %3438
  %v3440 = vsel %vm3363, %v2941, 0.0
  %v3441 = vadd.f32 %v2939, %v3440
  %3442 = vadd.xlane.f32.xlu0 %v3441
  %v3443 = vpop.xlane.xlu0 %3442
  %v3444 = vsel %vm3363, %v2947, 0.0
  %v3445 = vadd.f32 %v2945, %v3444
  %3446 = vadd.xlane.f32.xlu0 %v3445
  %v3447 = vpop.xlane.xlu0 %3446
  %v3448 = vsel %vm3363, %v2953, 0.0
  %v3449 = vadd.f32 %v2951, %v3448
  %3450 = vadd.xlane.f32.xlu0 %v3449
  %v3451 = vpop.xlane.xlu0 %3450
  %v3452 = vsel %vm3363, %v2959, 0.0
  %v3453 = vadd.f32 %v2957, %v3452
  %3454 = vadd.xlane.f32.xlu0 %v3453
  %v3455 = vpop.xlane.xlu0 %3454
  %v3456 = vsel %vm3363, %v2965, 0.0
  %v3457 = vadd.f32 %v2963, %v3456
  %3458 = vadd.xlane.f32.xlu0 %v3457
  %v3459 = vpop.xlane.xlu0 %3458
  %v3460 = vsel %vm3363, %v2971, 0.0
  %v3461 = vadd.f32 %v2969, %v3460
  %3462 = vadd.xlane.f32.xlu0 %v3461
  %v3463 = vpop.xlane.xlu0 %3462
  %v3464 = vsel %vm3363, %v2977, 0.0
  %v3465 = vadd.f32 %v2975, %v3464
  %3466 = vadd.xlane.f32.xlu0 %v3465
  %v3467 = vpop.xlane.xlu0 %3466
  %v3468 = vsel %vm3363, %v2983, 0.0
  %v3469 = vadd.f32 %v2981, %v3468
  %3470 = vadd.xlane.f32.xlu0 %v3469
  %v3471 = vpop.xlane.xlu0 %3470
  %v3472 = vsel %vm3363, %v2989, 0.0
  %v3473 = vadd.f32 %v2987, %v3472
  %3474 = vadd.xlane.f32.xlu0 %v3473
  %v3475 = vpop.xlane.xlu0 %3474
  %v3476 = vsel %vm3363, %v2995, 0.0
  %v3477 = vadd.f32 %v2993, %v3476
  %3478 = vadd.xlane.f32.xlu0 %v3477
  %v3479 = vpop.xlane.xlu0 %3478
  %v3480 = vsel %vm3363, %v3001, 0.0
  %v3481 = vadd.f32 %v2999, %v3480
  %3482 = vadd.xlane.f32.xlu0 %v3481
  %v3483 = vpop.xlane.xlu0 %3482
  %v3484 = vsel %vm3363, %v3007, 0.0
  %v3485 = vadd.f32 %v3005, %v3484
  %3486 = vadd.xlane.f32.xlu0 %v3485
  %v3487 = vpop.xlane.xlu0 %3486
  %v3488 = vsel %vm3363, %v3013, 0.0
  %v3489 = vadd.f32 %v3011, %v3488
  %3490 = vadd.xlane.f32.xlu0 %v3489
  %v3491 = vpop.xlane.xlu0 %3490
  %v3492 = vsel %vm3363, %v3019, 0.0
  %v3493 = vadd.f32 %v3017, %v3492
  %3494 = vadd.xlane.f32.xlu0 %v3493
  %v3495 = vpop.xlane.xlu0 %3494
  %v3496 = vsel %vm3363, %v3025, 0.0
  %v3497 = vadd.f32 %v3023, %v3496
  %3498 = vadd.xlane.f32.xlu0 %v3497
  %v3499 = vpop.xlane.xlu0 %3498
  %v3500 = vsel %vm3363, %v3031, 0.0
  %v3501 = vadd.f32 %v3029, %v3500
  %3502 = vadd.xlane.f32.xlu0 %v3501
  %v3503 = vpop.xlane.xlu0 %3502
  %v3504 = vsel %vm3363, %v3037, 0.0
  %v3505 = vadd.f32 %v3035, %v3504
  %3506 = vadd.xlane.f32.xlu0 %v3505
  %v3507 = vpop.xlane.xlu0 %3506
  %v3508 = vsel %vm3363, %v3043, 0.0
  %v3509 = vadd.f32 %v3041, %v3508
  %3510 = vadd.xlane.f32.xlu0 %v3509
  %v3511 = vpop.xlane.xlu0 %3510
  %v3512 = vsel %vm3363, %v3049, 0.0
  %v3513 = vadd.f32 %v3047, %v3512
  %3514 = vadd.xlane.f32.xlu0 %v3513
  %v3515 = vpop.xlane.xlu0 %3514
  %v3516 = vsel %vm3363, %v3055, 0.0
  %v3517 = vadd.f32 %v3053, %v3516
  %3518 = vadd.xlane.f32.xlu0 %v3517
  %v3519 = vpop.xlane.xlu0 %3518
  %v3520 = vsel %vm3363, %v3061, 0.0
  %v3521 = vadd.f32 %v3059, %v3520
  %3522 = vadd.xlane.f32.xlu0 %v3521
  %v3523 = vpop.xlane.xlu0 %3522
  %v3524 = vsel %vm3363, %v3067, 0.0
  %v3525 = vadd.f32 %v3065, %v3524
  %3526 = vadd.xlane.f32.xlu0 %v3525
  %v3527 = vpop.xlane.xlu0 %3526
  %v3528 = vsel %vm3363, %v3073, 0.0
  %v3529 = vadd.f32 %v3071, %v3528
  %3530 = vadd.xlane.f32.xlu0 %v3529
  %v3531 = vpop.xlane.xlu0 %3530
  %v3532 = vsel %vm3363, %v3079, 0.0
  %v3533 = vadd.f32 %v3077, %v3532
  %3534 = vadd.xlane.f32.xlu0 %v3533
  %v3535 = vpop.xlane.xlu0 %3534
  %v3536 = vsel %vm3363, %v3085, 0.0
  %v3537 = vadd.f32 %v3083, %v3536
  %3538 = vadd.xlane.f32.xlu0 %v3537
  %v3539 = vpop.xlane.xlu0 %3538
  %v3540 = vsel %vm3363, %v3091, 0.0
  %v3541 = vadd.f32 %v3089, %v3540
  %3542 = vadd.xlane.f32.xlu0 %v3541
  %v3543 = vpop.xlane.xlu0 %3542
  %v3544 = vsel %vm3363, %v3097, 0.0
  %v3545 = vadd.f32 %v3095, %v3544
  %3546 = vadd.xlane.f32.xlu0 %v3545
  %v3547 = vpop.xlane.xlu0 %3546
  %v3548 = vsel %vm3363, %v3103, 0.0
  %v3549 = vadd.f32 %v3101, %v3548
  %3550 = vadd.xlane.f32.xlu0 %v3549
  %v3551 = vpop.xlane.xlu0 %3550
  %v3552 = vsel %vm3363, %v3109, 0.0
  %v3553 = vadd.f32 %v3107, %v3552
  %3554 = vadd.xlane.f32.xlu0 %v3553
  %v3555 = vpop.xlane.xlu0 %3554
  %v3556 = vsel %vm3363, %v3115, 0.0
  %v3557 = vadd.f32 %v3113, %v3556
  %3558 = vadd.xlane.f32.xlu0 %v3557
  %v3559 = vpop.xlane.xlu0 %3558
  %v3560 = vsel %vm3363, %v3121, 0.0
  %v3561 = vadd.f32 %v3119, %v3560
  %3562 = vadd.xlane.f32.xlu0 %v3561
  %v3563 = vpop.xlane.xlu0 %3562
  %v3564 = vsel %vm3363, %v3127, 0.0
  %v3565 = vadd.f32 %v3125, %v3564
  %3566 = vadd.xlane.f32.xlu0 %v3565
  %v3567 = vpop.xlane.xlu0 %3566
  %v3568 = vsel %vm3363, %v3133, 0.0
  %v3569 = vadd.f32 %v3131, %v3568
  %3570 = vadd.xlane.f32.xlu0 %v3569
  %v3571 = vpop.xlane.xlu0 %3570
  %v3572 = vsel %vm3363, %v3139, 0.0
  %v3573 = vadd.f32 %v3137, %v3572
  %3574 = vadd.xlane.f32.xlu0 %v3573
  %v3575 = vpop.xlane.xlu0 %3574
  %v3576 = vsel %vm3363, %v3145, 0.0
  %v3577 = vadd.f32 %v3143, %v3576
  %3578 = vadd.xlane.f32.xlu0 %v3577
  %v3579 = vpop.xlane.xlu0 %3578
  %v3580 = vsel %vm3363, %v3151, 0.0
  %v3581 = vadd.f32 %v3149, %v3580
  %3582 = vadd.xlane.f32.xlu0 %v3581
  %v3583 = vpop.xlane.xlu0 %3582
  %v3584 = vsel %vm3363, %v3157, 0.0
  %v3585 = vadd.f32 %v3155, %v3584
  %3586 = vadd.xlane.f32.xlu0 %v3585
  %v3587 = vpop.xlane.xlu0 %3586
  %v3588 = vsel %vm3363, %v3163, 0.0
  %v3589 = vadd.f32 %v3161, %v3588
  %3590 = vadd.xlane.f32.xlu0 %v3589
  %v3591 = vpop.xlane.xlu0 %3590
  %v3592 = vsel %vm3363, %v3169, 0.0
  %v3593 = vadd.f32 %v3167, %v3592
  %3594 = vadd.xlane.f32.xlu0 %v3593
  %v3595 = vpop.xlane.xlu0 %3594
  %v3596 = vsel %vm3363, %v3175, 0.0
  %v3597 = vadd.f32 %v3173, %v3596
  %3598 = vadd.xlane.f32.xlu0 %v3597
  %v3599 = vpop.xlane.xlu0 %3598
  %v3600 = vsel %vm3363, %v3181, 0.0
  %v3601 = vadd.f32 %v3179, %v3600
  %3602 = vadd.xlane.f32.xlu0 %v3601
  %v3603 = vpop.xlane.xlu0 %3602
  %v3604 = vsel %vm3363, %v3187, 0.0
  %v3605 = vadd.f32 %v3185, %v3604
  %3606 = vadd.xlane.f32.xlu0 %v3605
  %v3607 = vpop.xlane.xlu0 %3606
  %v3608 = vsel %vm3363, %v3193, 0.0
  %v3609 = vadd.f32 %v3191, %v3608
  %3610 = vadd.xlane.f32.xlu0 %v3609
  %v3611 = vpop.xlane.xlu0 %3610
  %v3612 = vsel %vm3363, %v3199, 0.0
  %v3613 = vadd.f32 %v3197, %v3612
  %3614 = vadd.xlane.f32.xlu0 %v3613
  %v3615 = vpop.xlane.xlu0 %3614
  %v3616 = vsel %vm3363, %v3205, 0.0
  %v3617 = vadd.f32 %v3203, %v3616
  %3618 = vadd.xlane.f32.xlu0 %v3617
  %v3619 = vpop.xlane.xlu0 %3618
  %v3620 = vsel %vm3363, %v3211, 0.0
  %v3621 = vadd.f32 %v3209, %v3620
  %3622 = vadd.xlane.f32.xlu0 %v3621
  %v3623 = vpop.xlane.xlu0 %3622
  %v3624 = vsel %vm3363, %v3217, 0.0
  %v3625 = vadd.f32 %v3215, %v3624
  %3626 = vadd.xlane.f32.xlu0 %v3625
  %v3627 = vpop.xlane.xlu0 %3626
  %v3628 = vsel %vm3363, %v3223, 0.0
  %v3629 = vadd.f32 %v3221, %v3628
  %3630 = vadd.xlane.f32.xlu0 %v3629
  %v3631 = vpop.xlane.xlu0 %3630
  %v3632 = vsel %vm3363, %v3229, 0.0
  %v3633 = vadd.f32 %v3227, %v3632
  %3634 = vadd.xlane.f32.xlu0 %v3633
  %v3635 = vpop.xlane.xlu0 %3634
  %v3636 = vsel %vm3363, %v3235, 0.0
  %v3637 = vadd.f32 %v3233, %v3636
  %3638 = vadd.xlane.f32.xlu0 %v3637
  %v3639 = vpop.xlane.xlu0 %3638
  %v3640 = vsel %vm3363, %v3241, 0.0
  %v3641 = vadd.f32 %v3239, %v3640
  %3642 = vadd.xlane.f32.xlu0 %v3641
  %v3643 = vpop.xlane.xlu0 %3642
  %v3644 = vsel %vm3363, %v3247, 0.0
  %v3645 = vadd.f32 %v3245, %v3644
  %3646 = vadd.xlane.f32.xlu0 %v3645
  %v3647 = vpop.xlane.xlu0 %3646
  %v3648 = vsel %vm3363, %v3253, 0.0
  %v3649 = vadd.f32 %v3251, %v3648
  %3650 = vadd.xlane.f32.xlu0 %v3649
  %v3651 = vpop.xlane.xlu0 %3650
  %v3652 = vsel %vm3363, %v3259, 0.0
  %v3653 = vadd.f32 %v3257, %v3652
  %3654 = vadd.xlane.f32.xlu0 %v3653
  %v3655 = vpop.xlane.xlu0 %3654
  %v3656 = vsel %vm3363, %v3265, 0.0
  %v3657 = vadd.f32 %v3263, %v3656
  %3658 = vadd.xlane.f32.xlu0 %v3657
  %v3659 = vpop.xlane.xlu0 %3658
  %v3660 = vsel %vm3363, %v3271, 0.0
  %v3661 = vadd.f32 %v3269, %v3660
  %3662 = vadd.xlane.f32.xlu0 %v3661
  %v3663 = vpop.xlane.xlu0 %3662
  %v3664 = vsel %vm3363, %v3277, 0.0
  %v3665 = vadd.f32 %v3275, %v3664
  %3666 = vadd.xlane.f32.xlu0 %v3665
  %v3667 = vpop.xlane.xlu0 %3666
  %v3668 = vsel %vm3363, %v3283, 0.0
  %v3669 = vadd.f32 %v3281, %v3668
  %3670 = vadd.xlane.f32.xlu0 %v3669
  %v3671 = vpop.xlane.xlu0 %3670
  %v3672 = vsel %vm3363, %v3289, 0.0
  %v3673 = vadd.f32 %v3287, %v3672
  %3674 = vadd.xlane.f32.xlu0 %v3673
  %v3675 = vpop.xlane.xlu0 %3674
  %v3676 = vsel %vm3363, %v3295, 0.0
  %v3677 = vadd.f32 %v3293, %v3676
  %3678 = vadd.xlane.f32.xlu0 %v3677
  %v3679 = vpop.xlane.xlu0 %3678
  %v3680 = vsel %vm3363, %v3301, 0.0
  %v3681 = vadd.f32 %v3299, %v3680
  %3682 = vadd.xlane.f32.xlu0 %v3681
  %v3683 = vpop.xlane.xlu0 %3682
  %v3684 = vsel %vm3363, %v3307, 0.0
  %v3685 = vadd.f32 %v3305, %v3684
  %3686 = vadd.xlane.f32.xlu0 %v3685
  %v3687 = vpop.xlane.xlu0 %3686
  %v3688 = vsel %vm3363, %v3313, 0.0
  %v3689 = vadd.f32 %v3311, %v3688
  %3690 = vadd.xlane.f32.xlu0 %v3689
  %v3691 = vpop.xlane.xlu0 %3690
  %v3692 = vsel %vm3363, %v3319, 0.0
  %v3693 = vadd.f32 %v3317, %v3692
  %3694 = vadd.xlane.f32.xlu0 %v3693
  %v3695 = vpop.xlane.xlu0 %3694
  %v3696 = vsel %vm3363, %v3325, 0.0
  %v3697 = vadd.f32 %v3323, %v3696
  %3698 = vadd.xlane.f32.xlu0 %v3697
  %v3699 = vpop.xlane.xlu0 %3698
  %v3700 = vsel %vm3363, %v3331, 0.0
  %v3701 = vadd.f32 %v3329, %v3700
  %3702 = vadd.xlane.f32.xlu0 %v3701
  %v3703 = vpop.xlane.xlu0 %3702
  %v3704 = vsel %vm3363, %v3337, 0.0
  %v3705 = vadd.f32 %v3335, %v3704
  %3706 = vadd.xlane.f32.xlu0 %v3705
  %v3707 = vpop.xlane.xlu0 %3706
  %v3708 = vsel %vm3363, %v3343, 0.0
  %v3709 = vadd.f32 %v3341, %v3708
  %3710 = vadd.xlane.f32.xlu0 %v3709
  %v3711 = vpop.xlane.xlu0 %3710
  %v3712 = vsel %vm3363, %v3349, 0.0
  %v3713 = vadd.f32 %v3347, %v3712
  %3714 = vadd.xlane.f32.xlu0 %v3713
  %v3715 = vpop.xlane.xlu0 %3714
  %v3716 = vsel %vm3363, %v3355, 0.0
  %v3717 = vadd.f32 %v3353, %v3716
  %3718 = vadd.xlane.f32.xlu0 %v3717
  %v3719 = vpop.xlane.xlu0 %3718
  %v3720 = vsel %vm3363, %v3361, 0.0
  %v3721 = vadd.f32 %v3359, %v3720
  %3722 = vadd.xlane.f32.xlu0 %v3721
  %v3723 = vpop.xlane.xlu0 %3722
  %v3724 = vmul.f32 %v3367, 0.0051020407
  %v3725 = vmul.f32 %v3371, 0.0051020407
  %v3726 = vmul.f32 %v3375, 0.0051020407
  %v3727 = vmul.f32 %v3379, 0.0051020407
  %v3728 = vmul.f32 %v3383, 0.0051020407
  %v3729 = vmul.f32 %v3387, 0.0051020407
  %v3730 = vmul.f32 %v3391, 0.0051020407
  %v3731 = vmul.f32 %v3395, 0.0051020407
  %v3732 = vmul.f32 %v3399, 0.0051020407
  %v3733 = vmul.f32 %v3403, 0.0051020407
  %v3734 = vmul.f32 %v3407, 0.0051020407
  %v3735 = vmul.f32 %v3411, 0.0051020407
  %v3736 = vmul.f32 %v3415, 0.0051020407
  %v3737 = vmul.f32 %v3419, 0.0051020407
  %v3738 = vmul.f32 %v3423, 0.0051020407
  %v3739 = vmul.f32 %v3427, 0.0051020407
  %v3740 = vmul.f32 %v3431, 0.0051020407
  %v3741 = vmul.f32 %v3435, 0.0051020407
  %v3742 = vmul.f32 %v3439, 0.0051020407
  %v3743 = vmul.f32 %v3443, 0.0051020407
  %v3744 = vmul.f32 %v3447, 0.0051020407
  %v3745 = vmul.f32 %v3451, 0.0051020407
  %v3746 = vmul.f32 %v3455, 0.0051020407
  %v3747 = vmul.f32 %v3459, 0.0051020407
  %v3748 = vmul.f32 %v3463, 0.0051020407
  %v3749 = vmul.f32 %v3467, 0.0051020407
  %v3750 = vmul.f32 %v3471, 0.0051020407
  %v3751 = vmul.f32 %v3475, 0.0051020407
  %v3752 = vmul.f32 %v3479, 0.0051020407
  %v3753 = vmul.f32 %v3483, 0.0051020407
  %v3754 = vmul.f32 %v3487, 0.0051020407
  %v3755 = vmul.f32 %v3491, 0.0051020407
  %v3756 = vmul.f32 %v3495, 0.0051020407
  %v3757 = vmul.f32 %v3499, 0.0051020407
  %v3758 = vmul.f32 %v3503, 0.0051020407
  %v3759 = vmul.f32 %v3507, 0.0051020407
  %v3760 = vmul.f32 %v3511, 0.0051020407
  %v3761 = vmul.f32 %v3515, 0.0051020407
  %v3762 = vmul.f32 %v3519, 0.0051020407
  %v3763 = vmul.f32 %v3523, 0.0051020407
  %v3764 = vmul.f32 %v3527, 0.0051020407
  %v3765 = vmul.f32 %v3531, 0.0051020407
  %v3766 = vmul.f32 %v3535, 0.0051020407
  %v3767 = vmul.f32 %v3539, 0.0051020407
  %v3768 = vmul.f32 %v3543, 0.0051020407
  %v3769 = vmul.f32 %v3547, 0.0051020407
  %v3770 = vmul.f32 %v3551, 0.0051020407
  %v3771 = vmul.f32 %v3555, 0.0051020407
  %v3772 = vmul.f32 %v3559, 0.0051020407
  %v3773 = vmul.f32 %v3563, 0.0051020407
  %v3774 = vmul.f32 %v3567, 0.0051020407
  %v3775 = vmul.f32 %v3571, 0.0051020407
  %v3776 = vmul.f32 %v3575, 0.0051020407
  %v3777 = vmul.f32 %v3579, 0.0051020407
  %v3778 = vmul.f32 %v3583, 0.0051020407
  %v3779 = vmul.f32 %v3587, 0.0051020407
  %v3780 = vmul.f32 %v3591, 0.0051020407
  %v3781 = vmul.f32 %v3595, 0.0051020407
  %v3782 = vmul.f32 %v3599, 0.0051020407
  %v3783 = vmul.f32 %v3603, 0.0051020407
  %v3784 = vmul.f32 %v3607, 0.0051020407
  %v3785 = vmul.f32 %v3611, 0.0051020407
  %v3786 = vmul.f32 %v3615, 0.0051020407
  %v3787 = vmul.f32 %v3619, 0.0051020407
  %v3788 = vmul.f32 %v3623, 0.0051020407
  %v3789 = vmul.f32 %v3627, 0.0051020407
  %v3790 = vmul.f32 %v3631, 0.0051020407
  %v3791 = vmul.f32 %v3635, 0.0051020407
  %v3792 = vmul.f32 %v3639, 0.0051020407
  %v3793 = vmul.f32 %v3643, 0.0051020407
  %v3794 = vmul.f32 %v3647, 0.0051020407
  %v3795 = vmul.f32 %v3651, 0.0051020407
  %v3796 = vmul.f32 %v3655, 0.0051020407
  %v3797 = vmul.f32 %v3659, 0.0051020407
  %v3798 = vmul.f32 %v3663, 0.0051020407
  %v3799 = vmul.f32 %v3667, 0.0051020407
  %v3800 = vmul.f32 %v3671, 0.0051020407
  %v3801 = vmul.f32 %v3675, 0.0051020407
  %v3802 = vmul.f32 %v3679, 0.0051020407
  %v3803 = vmul.f32 %v3683, 0.0051020407
  %v3804 = vmul.f32 %v3687, 0.0051020407
  %v3805 = vmul.f32 %v3691, 0.0051020407
  %v3806 = vmul.f32 %v3695, 0.0051020407
  %v3807 = vmul.f32 %v3699, 0.0051020407
  %v3808 = vmul.f32 %v3703, 0.0051020407
  %v3809 = vmul.f32 %v3707, 0.0051020407
  %v3810 = vmul.f32 %v3711, 0.0051020407
  %v3811 = vmul.f32 %v3715, 0.0051020407
  %v3812 = vmul.f32 %v3719, 0.0051020407
  %v3813 = vmul.f32 %v3723, 0.0051020407
  %v3814 = vsub.f32 %v2825, %v3724
  %v3815 = vsub.f32 %v2827, %v3724
  %v3816 = vsub.f32 %v2831, %v3725
  %v3817 = vsub.f32 %v2833, %v3725
  %v3818 = vsub.f32 %v2837, %v3726
  %v3819 = vsub.f32 %v2839, %v3726
  %v3820 = vsub.f32 %v2843, %v3727
  %v3821 = vsub.f32 %v2845, %v3727
  %v3822 = vsub.f32 %v2849, %v3728
  %v3823 = vsub.f32 %v2851, %v3728
  %v3824 = vsub.f32 %v2855, %v3729
  %v3825 = vsub.f32 %v2857, %v3729
  %v3826 = vsub.f32 %v2861, %v3730
  %v3827 = vsub.f32 %v2863, %v3730
  %v3828 = vsub.f32 %v2867, %v3731
  %v3829 = vsub.f32 %v2869, %v3731
  %v3830 = vsub.f32 %v2873, %v3732
  %v3831 = vsub.f32 %v2875, %v3732
  %v3832 = vsub.f32 %v2879, %v3733
  %v3833 = vsub.f32 %v2881, %v3733
  %v3834 = vsub.f32 %v2885, %v3734
  %v3835 = vsub.f32 %v2887, %v3734
  %v3836 = vsub.f32 %v2891, %v3735
  %v3837 = vsub.f32 %v2893, %v3735
  %v3838 = vsub.f32 %v2897, %v3736
  %v3839 = vsub.f32 %v2899, %v3736
  %v3840 = vsub.f32 %v2903, %v3737
  %v3841 = vsub.f32 %v2905, %v3737
  %v3842 = vsub.f32 %v2909, %v3738
  %v3843 = vsub.f32 %v2911, %v3738
  %v3844 = vsub.f32 %v2915, %v3739
  %v3845 = vsub.f32 %v2917, %v3739
  %v3846 = vsub.f32 %v2921, %v3740
  %v3847 = vsub.f32 %v2923, %v3740
  %v3848 = vsub.f32 %v2927, %v3741
  %v3849 = vsub.f32 %v2929, %v3741
  %v3850 = vsub.f32 %v2933, %v3742
  %v3851 = vsub.f32 %v2935, %v3742
  %v3852 = vsub.f32 %v2939, %v3743
  %v3853 = vsub.f32 %v2941, %v3743
  %v3854 = vsub.f32 %v2945, %v3744
  %v3855 = vsub.f32 %v2947, %v3744
  %v3856 = vsub.f32 %v2951, %v3745
  %v3857 = vsub.f32 %v2953, %v3745
  %v3858 = vsub.f32 %v2957, %v3746
  %v3859 = vsub.f32 %v2959, %v3746
  %v3860 = vsub.f32 %v2963, %v3747
  %v3861 = vsub.f32 %v2965, %v3747
  %v3862 = vsub.f32 %v2969, %v3748
  %v3863 = vsub.f32 %v2971, %v3748
  %v3864 = vsub.f32 %v2975, %v3749
  %v3865 = vsub.f32 %v2977, %v3749
  %v3866 = vsub.f32 %v2981, %v3750
  %v3867 = vsub.f32 %v2983, %v3750
  %v3868 = vsub.f32 %v2987, %v3751
  %v3869 = vsub.f32 %v2989, %v3751
  %v3870 = vsub.f32 %v2993, %v3752
  %v3871 = vsub.f32 %v2995, %v3752
  %v3872 = vsub.f32 %v2999, %v3753
  %v3873 = vsub.f32 %v3001, %v3753
  %v3874 = vsub.f32 %v3005, %v3754
  %v3875 = vsub.f32 %v3007, %v3754
  %v3876 = vsub.f32 %v3011, %v3755
  %v3877 = vsub.f32 %v3013, %v3755
  %v3878 = vsub.f32 %v3017, %v3756
  %v3879 = vsub.f32 %v3019, %v3756
  %v3880 = vsub.f32 %v3023, %v3757
  %v3881 = vsub.f32 %v3025, %v3757
  %v3882 = vsub.f32 %v3029, %v3758
  %v3883 = vsub.f32 %v3031, %v3758
  %v3884 = vsub.f32 %v3035, %v3759
  %v3885 = vsub.f32 %v3037, %v3759
  %v3886 = vsub.f32 %v3041, %v3760
  %v3887 = vsub.f32 %v3043, %v3760
  %v3888 = vsub.f32 %v3047, %v3761
  %v3889 = vsub.f32 %v3049, %v3761
  %v3890 = vsub.f32 %v3053, %v3762
  %v3891 = vsub.f32 %v3055, %v3762
  %v3892 = vsub.f32 %v3059, %v3763
  %v3893 = vsub.f32 %v3061, %v3763
  %v3894 = vsub.f32 %v3065, %v3764
  %v3895 = vsub.f32 %v3067, %v3764
  %v3896 = vsub.f32 %v3071, %v3765
  %v3897 = vsub.f32 %v3073, %v3765
  %v3898 = vsub.f32 %v3077, %v3766
  %v3899 = vsub.f32 %v3079, %v3766
  %v3900 = vsub.f32 %v3083, %v3767
  %v3901 = vsub.f32 %v3085, %v3767
  %v3902 = vsub.f32 %v3089, %v3768
  %v3903 = vsub.f32 %v3091, %v3768
  %v3904 = vsub.f32 %v3095, %v3769
  %v3905 = vsub.f32 %v3097, %v3769
  %v3906 = vsub.f32 %v3101, %v3770
  %v3907 = vsub.f32 %v3103, %v3770
  %v3908 = vsub.f32 %v3107, %v3771
  %v3909 = vsub.f32 %v3109, %v3771
  %v3910 = vsub.f32 %v3113, %v3772
  %v3911 = vsub.f32 %v3115, %v3772
  %v3912 = vsub.f32 %v3119, %v3773
  %v3913 = vsub.f32 %v3121, %v3773
  %v3914 = vsub.f32 %v3125, %v3774
  %v3915 = vsub.f32 %v3127, %v3774
  %v3916 = vsub.f32 %v3131, %v3775
  %v3917 = vsub.f32 %v3133, %v3775
  %v3918 = vsub.f32 %v3137, %v3776
  %v3919 = vsub.f32 %v3139, %v3776
  %v3920 = vsub.f32 %v3143, %v3777
  %v3921 = vsub.f32 %v3145, %v3777
  %v3922 = vsub.f32 %v3149, %v3778
  %v3923 = vsub.f32 %v3151, %v3778
  %v3924 = vsub.f32 %v3155, %v3779
  %v3925 = vsub.f32 %v3157, %v3779
  %v3926 = vsub.f32 %v3161, %v3780
  %v3927 = vsub.f32 %v3163, %v3780
  %v3928 = vsub.f32 %v3167, %v3781
  %v3929 = vsub.f32 %v3169, %v3781
  %v3930 = vsub.f32 %v3173, %v3782
  %v3931 = vsub.f32 %v3175, %v3782
  %v3932 = vsub.f32 %v3179, %v3783
  %v3933 = vsub.f32 %v3181, %v3783
  %v3934 = vsub.f32 %v3185, %v3784
  %v3935 = vsub.f32 %v3187, %v3784
  %v3936 = vsub.f32 %v3191, %v3785
  %v3937 = vsub.f32 %v3193, %v3785
  %v3938 = vsub.f32 %v3197, %v3786
  %v3939 = vsub.f32 %v3199, %v3786
  %v3940 = vsub.f32 %v3203, %v3787
  %v3941 = vsub.f32 %v3205, %v3787
  %v3942 = vsub.f32 %v3209, %v3788
  %v3943 = vsub.f32 %v3211, %v3788
  %v3944 = vsub.f32 %v3215, %v3789
  %v3945 = vsub.f32 %v3217, %v3789
  %v3946 = vsub.f32 %v3221, %v3790
  %v3947 = vsub.f32 %v3223, %v3790
  %v3948 = vsub.f32 %v3227, %v3791
  %v3949 = vsub.f32 %v3229, %v3791
  %v3950 = vsub.f32 %v3233, %v3792
  %v3951 = vsub.f32 %v3235, %v3792
  %v3952 = vsub.f32 %v3239, %v3793
  %v3953 = vsub.f32 %v3241, %v3793
  %v3954 = vsub.f32 %v3245, %v3794
  %v3955 = vsub.f32 %v3247, %v3794
  %v3956 = vsub.f32 %v3251, %v3795
  %v3957 = vsub.f32 %v3253, %v3795
  %v3958 = vsub.f32 %v3257, %v3796
  %v3959 = vsub.f32 %v3259, %v3796
  %v3960 = vsub.f32 %v3263, %v3797
  %v3961 = vsub.f32 %v3265, %v3797
  %v3962 = vsub.f32 %v3269, %v3798
  %v3963 = vsub.f32 %v3271, %v3798
  %v3964 = vsub.f32 %v3275, %v3799
  %v3965 = vsub.f32 %v3277, %v3799
  %v3966 = vsub.f32 %v3281, %v3800
  %v3967 = vsub.f32 %v3283, %v3800
  %v3968 = vsub.f32 %v3287, %v3801
  %v3969 = vsub.f32 %v3289, %v3801
  %v3970 = vsub.f32 %v3293, %v3802
  %v3971 = vsub.f32 %v3295, %v3802
  %v3972 = vsub.f32 %v3299, %v3803
  %v3973 = vsub.f32 %v3301, %v3803
  %v3974 = vsub.f32 %v3305, %v3804
  %v3975 = vsub.f32 %v3307, %v3804
  %v3976 = vsub.f32 %v3311, %v3805
  %v3977 = vsub.f32 %v3313, %v3805
  %v3978 = vsub.f32 %v3317, %v3806
  %v3979 = vsub.f32 %v3319, %v3806
  %v3980 = vsub.f32 %v3323, %v3807
  %v3981 = vsub.f32 %v3325, %v3807
  %v3982 = vsub.f32 %v3329, %v3808
  %v3983 = vsub.f32 %v3331, %v3808
  %v3984 = vsub.f32 %v3335, %v3809
  %v3985 = vsub.f32 %v3337, %v3809
  %v3986 = vsub.f32 %v3341, %v3810
  %v3987 = vsub.f32 %v3343, %v3810
  %v3988 = vsub.f32 %v3347, %v3811
  %v3989 = vsub.f32 %v3349, %v3811
  %v3990 = vsub.f32 %v3353, %v3812
  %v3991 = vsub.f32 %v3355, %v3812
  %v3992 = vsub.f32 %v3359, %v3813
  %v3993 = vsub.f32 %v3361, %v3813
  %v3994 = vmul.f32 %v3814, %v3814
  %v3995 = vmul.f32 %v3815, %v3815
  %v3996 = vmul.f32 %v3816, %v3816
  %v3997 = vmul.f32 %v3817, %v3817
  %v3998 = vmul.f32 %v3818, %v3818
  %v3999 = vmul.f32 %v3819, %v3819
  %v4000 = vmul.f32 %v3820, %v3820
  %v4001 = vmul.f32 %v3821, %v3821
  %v4002 = vmul.f32 %v3822, %v3822
  %v4003 = vmul.f32 %v3823, %v3823
  %v4004 = vmul.f32 %v3824, %v3824
  %v4005 = vmul.f32 %v3825, %v3825
  %v4006 = vmul.f32 %v3826, %v3826
  %v4007 = vmul.f32 %v3827, %v3827
  %v4008 = vmul.f32 %v3828, %v3828
  %v4009 = vmul.f32 %v3829, %v3829
  %v4010 = vmul.f32 %v3830, %v3830
  %v4011 = vmul.f32 %v3831, %v3831
  %v4012 = vmul.f32 %v3832, %v3832
  %v4013 = vmul.f32 %v3833, %v3833
  %v4014 = vmul.f32 %v3834, %v3834
  %v4015 = vmul.f32 %v3835, %v3835
  %v4016 = vmul.f32 %v3836, %v3836
  %v4017 = vmul.f32 %v3837, %v3837
  %v4018 = vmul.f32 %v3838, %v3838
  %v4019 = vmul.f32 %v3839, %v3839
  %v4020 = vmul.f32 %v3840, %v3840
  %v4021 = vmul.f32 %v3841, %v3841
  %v4022 = vmul.f32 %v3842, %v3842
  %v4023 = vmul.f32 %v3843, %v3843
  %v4024 = vmul.f32 %v3844, %v3844
  %v4025 = vmul.f32 %v3845, %v3845
  %v4026 = vmul.f32 %v3846, %v3846
  %v4027 = vmul.f32 %v3847, %v3847
  %v4028 = vmul.f32 %v3848, %v3848
  %v4029 = vmul.f32 %v3849, %v3849
  %v4030 = vmul.f32 %v3850, %v3850
  %v4031 = vmul.f32 %v3851, %v3851
  %v4032 = vmul.f32 %v3852, %v3852
  %v4033 = vmul.f32 %v3853, %v3853
  %v4034 = vmul.f32 %v3854, %v3854
  %v4035 = vmul.f32 %v3855, %v3855
  %v4036 = vmul.f32 %v3856, %v3856
  %v4037 = vmul.f32 %v3857, %v3857
  %v4038 = vmul.f32 %v3858, %v3858
  %v4039 = vmul.f32 %v3859, %v3859
  %v4040 = vmul.f32 %v3860, %v3860
  %v4041 = vmul.f32 %v3861, %v3861
  %v4042 = vmul.f32 %v3862, %v3862
  %v4043 = vmul.f32 %v3863, %v3863
  %v4044 = vmul.f32 %v3864, %v3864
  %v4045 = vmul.f32 %v3865, %v3865
  %v4046 = vmul.f32 %v3866, %v3866
  %v4047 = vmul.f32 %v3867, %v3867
  %v4048 = vmul.f32 %v3868, %v3868
  %v4049 = vmul.f32 %v3869, %v3869
  %v4050 = vmul.f32 %v3870, %v3870
  %v4051 = vmul.f32 %v3871, %v3871
  %v4052 = vmul.f32 %v3872, %v3872
  %v4053 = vmul.f32 %v3873, %v3873
  %v4054 = vmul.f32 %v3874, %v3874
  %v4055 = vmul.f32 %v3875, %v3875
  %v4056 = vmul.f32 %v3876, %v3876
  %v4057 = vmul.f32 %v3877, %v3877
  %v4058 = vmul.f32 %v3878, %v3878
  %v4059 = vmul.f32 %v3879, %v3879
  %v4060 = vmul.f32 %v3880, %v3880
  %v4061 = vmul.f32 %v3881, %v3881
  %v4062 = vmul.f32 %v3882, %v3882
  %v4063 = vmul.f32 %v3883, %v3883
  %v4064 = vmul.f32 %v3884, %v3884
  %v4065 = vmul.f32 %v3885, %v3885
  %v4066 = vmul.f32 %v3886, %v3886
  %v4067 = vmul.f32 %v3887, %v3887
  %v4068 = vmul.f32 %v3888, %v3888
  %v4069 = vmul.f32 %v3889, %v3889
  %v4070 = vmul.f32 %v3890, %v3890
  %v4071 = vmul.f32 %v3891, %v3891
  %v4072 = vmul.f32 %v3892, %v3892
  %v4073 = vmul.f32 %v3893, %v3893
  %v4074 = vmul.f32 %v3894, %v3894
  %v4075 = vmul.f32 %v3895, %v3895
  %v4076 = vmul.f32 %v3896, %v3896
  %v4077 = vmul.f32 %v3897, %v3897
  %v4078 = vmul.f32 %v3898, %v3898
  %v4079 = vmul.f32 %v3899, %v3899
  %v4080 = vmul.f32 %v3900, %v3900
  %v4081 = vmul.f32 %v3901, %v3901
  %v4082 = vmul.f32 %v3902, %v3902
  %v4083 = vmul.f32 %v3903, %v3903
  %v4084 = vmul.f32 %v3904, %v3904
  %v4085 = vmul.f32 %v3905, %v3905
  %v4086 = vmul.f32 %v3906, %v3906
  %v4087 = vmul.f32 %v3907, %v3907
  %v4088 = vmul.f32 %v3908, %v3908
  %v4089 = vmul.f32 %v3909, %v3909
  %v4090 = vmul.f32 %v3910, %v3910
  %v4091 = vmul.f32 %v3911, %v3911
  %v4092 = vmul.f32 %v3912, %v3912
  %v4093 = vmul.f32 %v3913, %v3913
  %v4094 = vmul.f32 %v3914, %v3914
  %v4095 = vmul.f32 %v3915, %v3915
  %v4096 = vmul.f32 %v3916, %v3916
  %v4097 = vmul.f32 %v3917, %v3917
  %v4098 = vmul.f32 %v3918, %v3918
  %v4099 = vmul.f32 %v3919, %v3919
  %v4100 = vmul.f32 %v3920, %v3920
  %v4101 = vmul.f32 %v3921, %v3921
  %v4102 = vmul.f32 %v3922, %v3922
  %v4103 = vmul.f32 %v3923, %v3923
  %v4104 = vmul.f32 %v3924, %v3924
  %v4105 = vmul.f32 %v3925, %v3925
  %v4106 = vmul.f32 %v3926, %v3926
  %v4107 = vmul.f32 %v3927, %v3927
  %v4108 = vmul.f32 %v3928, %v3928
  %v4109 = vmul.f32 %v3929, %v3929
  %v4110 = vmul.f32 %v3930, %v3930
  %v4111 = vmul.f32 %v3931, %v3931
  %v4112 = vmul.f32 %v3932, %v3932
  %v4113 = vmul.f32 %v3933, %v3933
  %v4114 = vmul.f32 %v3934, %v3934
  %v4115 = vmul.f32 %v3935, %v3935
  %v4116 = vmul.f32 %v3936, %v3936
  %v4117 = vmul.f32 %v3937, %v3937
  %v4118 = vmul.f32 %v3938, %v3938
  %v4119 = vmul.f32 %v3939, %v3939
  %v4120 = vmul.f32 %v3940, %v3940
  %v4121 = vmul.f32 %v3941, %v3941
  %v4122 = vmul.f32 %v3942, %v3942
  %v4123 = vmul.f32 %v3943, %v3943
  %v4124 = vmul.f32 %v3944, %v3944
  %v4125 = vmul.f32 %v3945, %v3945
  %v4126 = vmul.f32 %v3946, %v3946
  %v4127 = vmul.f32 %v3947, %v3947
  %v4128 = vmul.f32 %v3948, %v3948
  %v4129 = vmul.f32 %v3949, %v3949
  %v4130 = vmul.f32 %v3950, %v3950
  %v4131 = vmul.f32 %v3951, %v3951
  %v4132 = vmul.f32 %v3952, %v3952
  %v4133 = vmul.f32 %v3953, %v3953
  %v4134 = vmul.f32 %v3954, %v3954
  %v4135 = vmul.f32 %v3955, %v3955
  %v4136 = vmul.f32 %v3956, %v3956
  %v4137 = vmul.f32 %v3957, %v3957
  %v4138 = vmul.f32 %v3958, %v3958
  %v4139 = vmul.f32 %v3959, %v3959
  %v4140 = vmul.f32 %v3960, %v3960
  %v4141 = vmul.f32 %v3961, %v3961
  %v4142 = vmul.f32 %v3962, %v3962
  %v4143 = vmul.f32 %v3963, %v3963
  %v4144 = vmul.f32 %v3964, %v3964
  %v4145 = vmul.f32 %v3965, %v3965
  %v4146 = vmul.f32 %v3966, %v3966
  %v4147 = vmul.f32 %v3967, %v3967
  %v4148 = vmul.f32 %v3968, %v3968
  %v4149 = vmul.f32 %v3969, %v3969
  %v4150 = vmul.f32 %v3970, %v3970
  %v4151 = vmul.f32 %v3971, %v3971
  %v4152 = vmul.f32 %v3972, %v3972
  %v4153 = vmul.f32 %v3973, %v3973
  %v4154 = vmul.f32 %v3974, %v3974
  %v4155 = vmul.f32 %v3975, %v3975
  %v4156 = vmul.f32 %v3976, %v3976
  %v4157 = vmul.f32 %v3977, %v3977
  %v4158 = vmul.f32 %v3978, %v3978
  %v4159 = vmul.f32 %v3979, %v3979
  %v4160 = vmul.f32 %v3980, %v3980
  %v4161 = vmul.f32 %v3981, %v3981
  %v4162 = vmul.f32 %v3982, %v3982
  %v4163 = vmul.f32 %v3983, %v3983
  %v4164 = vmul.f32 %v3984, %v3984
  %v4165 = vmul.f32 %v3985, %v3985
  %v4166 = vmul.f32 %v3986, %v3986
  %v4167 = vmul.f32 %v3987, %v3987
  %v4168 = vmul.f32 %v3988, %v3988
  %v4169 = vmul.f32 %v3989, %v3989
  %v4170 = vmul.f32 %v3990, %v3990
  %v4171 = vmul.f32 %v3991, %v3991
  %v4172 = vmul.f32 %v3992, %v3992
  %v4173 = vmul.f32 %v3993, %v3993
  %v4174 = vsel %vm3363, %v3995, 0.0
  %v4175 = vadd.f32 %v3994, %v4174
  %4176 = vadd.xlane.f32.xlu0 %v4175
  %v4177 = vpop.xlane.xlu0 %4176
  %v4178 = vsel %vm3363, %v3997, 0.0
  %v4179 = vadd.f32 %v3996, %v4178
  %4180 = vadd.xlane.f32.xlu0 %v4179
  %v4181 = vpop.xlane.xlu0 %4180
  %v4182 = vsel %vm3363, %v3999, 0.0
  %v4183 = vadd.f32 %v3998, %v4182
  %4184 = vadd.xlane.f32.xlu0 %v4183
  %v4185 = vpop.xlane.xlu0 %4184
  %v4186 = vsel %vm3363, %v4001, 0.0
  %v4187 = vadd.f32 %v4000, %v4186
  %4188 = vadd.xlane.f32.xlu0 %v4187
  %v4189 = vpop.xlane.xlu0 %4188
  %v4190 = vsel %vm3363, %v4003, 0.0
  %v4191 = vadd.f32 %v4002, %v4190
  %4192 = vadd.xlane.f32.xlu0 %v4191
  %v4193 = vpop.xlane.xlu0 %4192
  %v4194 = vsel %vm3363, %v4005, 0.0
  %v4195 = vadd.f32 %v4004, %v4194
  %4196 = vadd.xlane.f32.xlu0 %v4195
  %v4197 = vpop.xlane.xlu0 %4196
  %v4198 = vsel %vm3363, %v4007, 0.0
  %v4199 = vadd.f32 %v4006, %v4198
  %4200 = vadd.xlane.f32.xlu0 %v4199
  %v4201 = vpop.xlane.xlu0 %4200
  %v4202 = vsel %vm3363, %v4009, 0.0
  %v4203 = vadd.f32 %v4008, %v4202
  %4204 = vadd.xlane.f32.xlu0 %v4203
  %v4205 = vpop.xlane.xlu0 %4204
  %v4206 = vsel %vm3363, %v4011, 0.0
  %v4207 = vadd.f32 %v4010, %v4206
  %4208 = vadd.xlane.f32.xlu0 %v4207
  %v4209 = vpop.xlane.xlu0 %4208
  %v4210 = vsel %vm3363, %v4013, 0.0
  %v4211 = vadd.f32 %v4012, %v4210
  %4212 = vadd.xlane.f32.xlu0 %v4211
  %v4213 = vpop.xlane.xlu0 %4212
  %v4214 = vsel %vm3363, %v4015, 0.0
  %v4215 = vadd.f32 %v4014, %v4214
  %4216 = vadd.xlane.f32.xlu0 %v4215
  %v4217 = vpop.xlane.xlu0 %4216
  %v4218 = vsel %vm3363, %v4017, 0.0
  %v4219 = vadd.f32 %v4016, %v4218
  %4220 = vadd.xlane.f32.xlu0 %v4219
  %v4221 = vpop.xlane.xlu0 %4220
  %v4222 = vsel %vm3363, %v4019, 0.0
  %v4223 = vadd.f32 %v4018, %v4222
  %4224 = vadd.xlane.f32.xlu0 %v4223
  %v4225 = vpop.xlane.xlu0 %4224
  %v4226 = vsel %vm3363, %v4021, 0.0
  %v4227 = vadd.f32 %v4020, %v4226
  %4228 = vadd.xlane.f32.xlu0 %v4227
  %v4229 = vpop.xlane.xlu0 %4228
  %v4230 = vsel %vm3363, %v4023, 0.0
  %v4231 = vadd.f32 %v4022, %v4230
  %4232 = vadd.xlane.f32.xlu0 %v4231
  %v4233 = vpop.xlane.xlu0 %4232
  %v4234 = vsel %vm3363, %v4025, 0.0
  %v4235 = vadd.f32 %v4024, %v4234
  %4236 = vadd.xlane.f32.xlu0 %v4235
  %v4237 = vpop.xlane.xlu0 %4236
  %v4238 = vsel %vm3363, %v4027, 0.0
  %v4239 = vadd.f32 %v4026, %v4238
  %4240 = vadd.xlane.f32.xlu0 %v4239
  %v4241 = vpop.xlane.xlu0 %4240
  %v4242 = vsel %vm3363, %v4029, 0.0
  %v4243 = vadd.f32 %v4028, %v4242
  %4244 = vadd.xlane.f32.xlu0 %v4243
  %v4245 = vpop.xlane.xlu0 %4244
  %v4246 = vsel %vm3363, %v4031, 0.0
  %v4247 = vadd.f32 %v4030, %v4246
  %4248 = vadd.xlane.f32.xlu0 %v4247
  %v4249 = vpop.xlane.xlu0 %4248
  %v4250 = vsel %vm3363, %v4033, 0.0
  %v4251 = vadd.f32 %v4032, %v4250
  %4252 = vadd.xlane.f32.xlu0 %v4251
  %v4253 = vpop.xlane.xlu0 %4252
  %v4254 = vsel %vm3363, %v4035, 0.0
  %v4255 = vadd.f32 %v4034, %v4254
  %4256 = vadd.xlane.f32.xlu0 %v4255
  %v4257 = vpop.xlane.xlu0 %4256
  %v4258 = vsel %vm3363, %v4037, 0.0
  %v4259 = vadd.f32 %v4036, %v4258
  %4260 = vadd.xlane.f32.xlu0 %v4259
  %v4261 = vpop.xlane.xlu0 %4260
  %v4262 = vsel %vm3363, %v4039, 0.0
  %v4263 = vadd.f32 %v4038, %v4262
  %4264 = vadd.xlane.f32.xlu0 %v4263
  %v4265 = vpop.xlane.xlu0 %4264
  %v4266 = vsel %vm3363, %v4041, 0.0
  %v4267 = vadd.f32 %v4040, %v4266
  %4268 = vadd.xlane.f32.xlu0 %v4267
  %v4269 = vpop.xlane.xlu0 %4268
  %v4270 = vsel %vm3363, %v4043, 0.0
  %v4271 = vadd.f32 %v4042, %v4270
  %4272 = vadd.xlane.f32.xlu0 %v4271
  %v4273 = vpop.xlane.xlu0 %4272
  %v4274 = vsel %vm3363, %v4045, 0.0
  %v4275 = vadd.f32 %v4044, %v4274
  %4276 = vadd.xlane.f32.xlu0 %v4275
  %v4277 = vpop.xlane.xlu0 %4276
  %v4278 = vsel %vm3363, %v4047, 0.0
  %v4279 = vadd.f32 %v4046, %v4278
  %4280 = vadd.xlane.f32.xlu0 %v4279
  %v4281 = vpop.xlane.xlu0 %4280
  %v4282 = vsel %vm3363, %v4049, 0.0
  %v4283 = vadd.f32 %v4048, %v4282
  %4284 = vadd.xlane.f32.xlu0 %v4283
  %v4285 = vpop.xlane.xlu0 %4284
  %v4286 = vsel %vm3363, %v4051, 0.0
  %v4287 = vadd.f32 %v4050, %v4286
  %4288 = vadd.xlane.f32.xlu0 %v4287
  %v4289 = vpop.xlane.xlu0 %4288
  %v4290 = vsel %vm3363, %v4053, 0.0
  %v4291 = vadd.f32 %v4052, %v4290
  %4292 = vadd.xlane.f32.xlu0 %v4291
  %v4293 = vpop.xlane.xlu0 %4292
  %v4294 = vsel %vm3363, %v4055, 0.0
  %v4295 = vadd.f32 %v4054, %v4294
  %4296 = vadd.xlane.f32.xlu0 %v4295
  %v4297 = vpop.xlane.xlu0 %4296
  %v4298 = vsel %vm3363, %v4057, 0.0
  %v4299 = vadd.f32 %v4056, %v4298
  %4300 = vadd.xlane.f32.xlu0 %v4299
  %v4301 = vpop.xlane.xlu0 %4300
  %v4302 = vsel %vm3363, %v4059, 0.0
  %v4303 = vadd.f32 %v4058, %v4302
  %4304 = vadd.xlane.f32.xlu0 %v4303
  %v4305 = vpop.xlane.xlu0 %4304
  %v4306 = vsel %vm3363, %v4061, 0.0
  %v4307 = vadd.f32 %v4060, %v4306
  %4308 = vadd.xlane.f32.xlu0 %v4307
  %v4309 = vpop.xlane.xlu0 %4308
  %v4310 = vsel %vm3363, %v4063, 0.0
  %v4311 = vadd.f32 %v4062, %v4310
  %4312 = vadd.xlane.f32.xlu0 %v4311
  %v4313 = vpop.xlane.xlu0 %4312
  %v4314 = vsel %vm3363, %v4065, 0.0
  %v4315 = vadd.f32 %v4064, %v4314
  %4316 = vadd.xlane.f32.xlu0 %v4315
  %v4317 = vpop.xlane.xlu0 %4316
  %v4318 = vsel %vm3363, %v4067, 0.0
  %v4319 = vadd.f32 %v4066, %v4318
  %4320 = vadd.xlane.f32.xlu0 %v4319
  %v4321 = vpop.xlane.xlu0 %4320
  %v4322 = vsel %vm3363, %v4069, 0.0
  %v4323 = vadd.f32 %v4068, %v4322
  %4324 = vadd.xlane.f32.xlu0 %v4323
  %v4325 = vpop.xlane.xlu0 %4324
  %v4326 = vsel %vm3363, %v4071, 0.0
  %v4327 = vadd.f32 %v4070, %v4326
  %4328 = vadd.xlane.f32.xlu0 %v4327
  %v4329 = vpop.xlane.xlu0 %4328
  %v4330 = vsel %vm3363, %v4073, 0.0
  %v4331 = vadd.f32 %v4072, %v4330
  %4332 = vadd.xlane.f32.xlu0 %v4331
  %v4333 = vpop.xlane.xlu0 %4332
  %v4334 = vsel %vm3363, %v4075, 0.0
  %v4335 = vadd.f32 %v4074, %v4334
  %4336 = vadd.xlane.f32.xlu0 %v4335
  %v4337 = vpop.xlane.xlu0 %4336
  %v4338 = vsel %vm3363, %v4077, 0.0
  %v4339 = vadd.f32 %v4076, %v4338
  %4340 = vadd.xlane.f32.xlu0 %v4339
  %v4341 = vpop.xlane.xlu0 %4340
  %v4342 = vsel %vm3363, %v4079, 0.0
  %v4343 = vadd.f32 %v4078, %v4342
  %4344 = vadd.xlane.f32.xlu0 %v4343
  %v4345 = vpop.xlane.xlu0 %4344
  %v4346 = vsel %vm3363, %v4081, 0.0
  %v4347 = vadd.f32 %v4080, %v4346
  %4348 = vadd.xlane.f32.xlu0 %v4347
  %v4349 = vpop.xlane.xlu0 %4348
  %v4350 = vsel %vm3363, %v4083, 0.0
  %v4351 = vadd.f32 %v4082, %v4350
  %4352 = vadd.xlane.f32.xlu0 %v4351
  %v4353 = vpop.xlane.xlu0 %4352
  %v4354 = vsel %vm3363, %v4085, 0.0
  %v4355 = vadd.f32 %v4084, %v4354
  %4356 = vadd.xlane.f32.xlu0 %v4355
  %v4357 = vpop.xlane.xlu0 %4356
  %v4358 = vsel %vm3363, %v4087, 0.0
  %v4359 = vadd.f32 %v4086, %v4358
  %4360 = vadd.xlane.f32.xlu0 %v4359
  %v4361 = vpop.xlane.xlu0 %4360
  %v4362 = vsel %vm3363, %v4089, 0.0
  %v4363 = vadd.f32 %v4088, %v4362
  %4364 = vadd.xlane.f32.xlu0 %v4363
  %v4365 = vpop.xlane.xlu0 %4364
  %v4366 = vsel %vm3363, %v4091, 0.0
  %v4367 = vadd.f32 %v4090, %v4366
  %4368 = vadd.xlane.f32.xlu0 %v4367
  %v4369 = vpop.xlane.xlu0 %4368
  %v4370 = vsel %vm3363, %v4093, 0.0
  %v4371 = vadd.f32 %v4092, %v4370
  %4372 = vadd.xlane.f32.xlu0 %v4371
  %v4373 = vpop.xlane.xlu0 %4372
  %v4374 = vsel %vm3363, %v4095, 0.0
  %v4375 = vadd.f32 %v4094, %v4374
  %4376 = vadd.xlane.f32.xlu0 %v4375
  %v4377 = vpop.xlane.xlu0 %4376
  %v4378 = vsel %vm3363, %v4097, 0.0
  %v4379 = vadd.f32 %v4096, %v4378
  %4380 = vadd.xlane.f32.xlu0 %v4379
  %v4381 = vpop.xlane.xlu0 %4380
  %v4382 = vsel %vm3363, %v4099, 0.0
  %v4383 = vadd.f32 %v4098, %v4382
  %4384 = vadd.xlane.f32.xlu0 %v4383
  %v4385 = vpop.xlane.xlu0 %4384
  %v4386 = vsel %vm3363, %v4101, 0.0
  %v4387 = vadd.f32 %v4100, %v4386
  %4388 = vadd.xlane.f32.xlu0 %v4387
  %v4389 = vpop.xlane.xlu0 %4388
  %v4390 = vsel %vm3363, %v4103, 0.0
  %v4391 = vadd.f32 %v4102, %v4390
  %4392 = vadd.xlane.f32.xlu0 %v4391
  %v4393 = vpop.xlane.xlu0 %4392
  %v4394 = vsel %vm3363, %v4105, 0.0
  %v4395 = vadd.f32 %v4104, %v4394
  %4396 = vadd.xlane.f32.xlu0 %v4395
  %v4397 = vpop.xlane.xlu0 %4396
  %v4398 = vsel %vm3363, %v4107, 0.0
  %v4399 = vadd.f32 %v4106, %v4398
  %4400 = vadd.xlane.f32.xlu0 %v4399
  %v4401 = vpop.xlane.xlu0 %4400
  %v4402 = vsel %vm3363, %v4109, 0.0
  %v4403 = vadd.f32 %v4108, %v4402
  %4404 = vadd.xlane.f32.xlu0 %v4403
  %v4405 = vpop.xlane.xlu0 %4404
  %v4406 = vsel %vm3363, %v4111, 0.0
  %v4407 = vadd.f32 %v4110, %v4406
  %4408 = vadd.xlane.f32.xlu0 %v4407
  %v4409 = vpop.xlane.xlu0 %4408
  %v4410 = vsel %vm3363, %v4113, 0.0
  %v4411 = vadd.f32 %v4112, %v4410
  %4412 = vadd.xlane.f32.xlu0 %v4411
  %v4413 = vpop.xlane.xlu0 %4412
  %v4414 = vsel %vm3363, %v4115, 0.0
  %v4415 = vadd.f32 %v4114, %v4414
  %4416 = vadd.xlane.f32.xlu0 %v4415
  %v4417 = vpop.xlane.xlu0 %4416
  %v4418 = vsel %vm3363, %v4117, 0.0
  %v4419 = vadd.f32 %v4116, %v4418
  %4420 = vadd.xlane.f32.xlu0 %v4419
  %v4421 = vpop.xlane.xlu0 %4420
  %v4422 = vsel %vm3363, %v4119, 0.0
  %v4423 = vadd.f32 %v4118, %v4422
  %4424 = vadd.xlane.f32.xlu0 %v4423
  %v4425 = vpop.xlane.xlu0 %4424
  %v4426 = vsel %vm3363, %v4121, 0.0
  %v4427 = vadd.f32 %v4120, %v4426
  %4428 = vadd.xlane.f32.xlu0 %v4427
  %v4429 = vpop.xlane.xlu0 %4428
  %v4430 = vsel %vm3363, %v4123, 0.0
  %v4431 = vadd.f32 %v4122, %v4430
  %4432 = vadd.xlane.f32.xlu0 %v4431
  %v4433 = vpop.xlane.xlu0 %4432
  %v4434 = vsel %vm3363, %v4125, 0.0
  %v4435 = vadd.f32 %v4124, %v4434
  %4436 = vadd.xlane.f32.xlu0 %v4435
  %v4437 = vpop.xlane.xlu0 %4436
  %v4438 = vsel %vm3363, %v4127, 0.0
  %v4439 = vadd.f32 %v4126, %v4438
  %4440 = vadd.xlane.f32.xlu0 %v4439
  %v4441 = vpop.xlane.xlu0 %4440
  %v4442 = vsel %vm3363, %v4129, 0.0
  %v4443 = vadd.f32 %v4128, %v4442
  %4444 = vadd.xlane.f32.xlu0 %v4443
  %v4445 = vpop.xlane.xlu0 %4444
  %v4446 = vsel %vm3363, %v4131, 0.0
  %v4447 = vadd.f32 %v4130, %v4446
  %4448 = vadd.xlane.f32.xlu0 %v4447
  %v4449 = vpop.xlane.xlu0 %4448
  %v4450 = vsel %vm3363, %v4133, 0.0
  %v4451 = vadd.f32 %v4132, %v4450
  %4452 = vadd.xlane.f32.xlu0 %v4451
  %v4453 = vpop.xlane.xlu0 %4452
  %v4454 = vsel %vm3363, %v4135, 0.0
  %v4455 = vadd.f32 %v4134, %v4454
  %4456 = vadd.xlane.f32.xlu0 %v4455
  %v4457 = vpop.xlane.xlu0 %4456
  %v4458 = vsel %vm3363, %v4137, 0.0
  %v4459 = vadd.f32 %v4136, %v4458
  %4460 = vadd.xlane.f32.xlu0 %v4459
  %v4461 = vpop.xlane.xlu0 %4460
  %v4462 = vsel %vm3363, %v4139, 0.0
  %v4463 = vadd.f32 %v4138, %v4462
  %4464 = vadd.xlane.f32.xlu0 %v4463
  %v4465 = vpop.xlane.xlu0 %4464
  %v4466 = vsel %vm3363, %v4141, 0.0
  %v4467 = vadd.f32 %v4140, %v4466
  %4468 = vadd.xlane.f32.xlu0 %v4467
  %v4469 = vpop.xlane.xlu0 %4468
  %v4470 = vsel %vm3363, %v4143, 0.0
  %v4471 = vadd.f32 %v4142, %v4470
  %4472 = vadd.xlane.f32.xlu0 %v4471
  %v4473 = vpop.xlane.xlu0 %4472
  %v4474 = vsel %vm3363, %v4145, 0.0
  %v4475 = vadd.f32 %v4144, %v4474
  %4476 = vadd.xlane.f32.xlu0 %v4475
  %v4477 = vpop.xlane.xlu0 %4476
  %v4478 = vsel %vm3363, %v4147, 0.0
  %v4479 = vadd.f32 %v4146, %v4478
  %4480 = vadd.xlane.f32.xlu0 %v4479
  %v4481 = vpop.xlane.xlu0 %4480
  %v4482 = vsel %vm3363, %v4149, 0.0
  %v4483 = vadd.f32 %v4148, %v4482
  %4484 = vadd.xlane.f32.xlu0 %v4483
  %v4485 = vpop.xlane.xlu0 %4484
  %v4486 = vsel %vm3363, %v4151, 0.0
  %v4487 = vadd.f32 %v4150, %v4486
  %4488 = vadd.xlane.f32.xlu0 %v4487
  %v4489 = vpop.xlane.xlu0 %4488
  %v4490 = vsel %vm3363, %v4153, 0.0
  %v4491 = vadd.f32 %v4152, %v4490
  %4492 = vadd.xlane.f32.xlu0 %v4491
  %v4493 = vpop.xlane.xlu0 %4492
  %v4494 = vsel %vm3363, %v4155, 0.0
  %v4495 = vadd.f32 %v4154, %v4494
  %4496 = vadd.xlane.f32.xlu0 %v4495
  %v4497 = vpop.xlane.xlu0 %4496
  %v4498 = vsel %vm3363, %v4157, 0.0
  %v4499 = vadd.f32 %v4156, %v4498
  %4500 = vadd.xlane.f32.xlu0 %v4499
  %v4501 = vpop.xlane.xlu0 %4500
  %v4502 = vsel %vm3363, %v4159, 0.0
  %v4503 = vadd.f32 %v4158, %v4502
  %4504 = vadd.xlane.f32.xlu0 %v4503
  %v4505 = vpop.xlane.xlu0 %4504
  %v4506 = vsel %vm3363, %v4161, 0.0
  %v4507 = vadd.f32 %v4160, %v4506
  %4508 = vadd.xlane.f32.xlu0 %v4507
  %v4509 = vpop.xlane.xlu0 %4508
  %v4510 = vsel %vm3363, %v4163, 0.0
  %v4511 = vadd.f32 %v4162, %v4510
  %4512 = vadd.xlane.f32.xlu0 %v4511
  %v4513 = vpop.xlane.xlu0 %4512
  %v4514 = vsel %vm3363, %v4165, 0.0
  %v4515 = vadd.f32 %v4164, %v4514
  %4516 = vadd.xlane.f32.xlu0 %v4515
  %v4517 = vpop.xlane.xlu0 %4516
  %v4518 = vsel %vm3363, %v4167, 0.0
  %v4519 = vadd.f32 %v4166, %v4518
  %4520 = vadd.xlane.f32.xlu0 %v4519
  %v4521 = vpop.xlane.xlu0 %4520
  %v4522 = vsel %vm3363, %v4169, 0.0
  %v4523 = vadd.f32 %v4168, %v4522
  %4524 = vadd.xlane.f32.xlu0 %v4523
  %v4525 = vpop.xlane.xlu0 %4524
  %v4526 = vsel %vm3363, %v4171, 0.0
  %v4527 = vadd.f32 %v4170, %v4526
  %4528 = vadd.xlane.f32.xlu0 %v4527
  %v4529 = vpop.xlane.xlu0 %4528
  %v4530 = vsel %vm3363, %v4173, 0.0
  %v4531 = vadd.f32 %v4172, %v4530
  %4532 = vadd.xlane.f32.xlu0 %v4531
  %v4533 = vpop.xlane.xlu0 %4532
  %v4534 = vmul.f32 %v4177, 0.0051020407
  %v4535 = vmul.f32 %v4181, 0.0051020407
  %v4536 = vmul.f32 %v4185, 0.0051020407
  %v4537 = vmul.f32 %v4189, 0.0051020407
  %v4538 = vmul.f32 %v4193, 0.0051020407
  %v4539 = vmul.f32 %v4197, 0.0051020407
  %v4540 = vmul.f32 %v4201, 0.0051020407
  %v4541 = vmul.f32 %v4205, 0.0051020407
  %v4542 = vmul.f32 %v4209, 0.0051020407
  %v4543 = vmul.f32 %v4213, 0.0051020407
  %v4544 = vmul.f32 %v4217, 0.0051020407
  %v4545 = vmul.f32 %v4221, 0.0051020407
  %v4546 = vmul.f32 %v4225, 0.0051020407
  %v4547 = vmul.f32 %v4229, 0.0051020407
  %v4548 = vmul.f32 %v4233, 0.0051020407
  %v4549 = vmul.f32 %v4237, 0.0051020407
  %v4550 = vmul.f32 %v4241, 0.0051020407
  %v4551 = vmul.f32 %v4245, 0.0051020407
  %v4552 = vmul.f32 %v4249, 0.0051020407
  %v4553 = vmul.f32 %v4253, 0.0051020407
  %v4554 = vmul.f32 %v4257, 0.0051020407
  %v4555 = vmul.f32 %v4261, 0.0051020407
  %v4556 = vmul.f32 %v4265, 0.0051020407
  %v4557 = vmul.f32 %v4269, 0.0051020407
  %v4558 = vmul.f32 %v4273, 0.0051020407
  %v4559 = vmul.f32 %v4277, 0.0051020407
  %v4560 = vmul.f32 %v4281, 0.0051020407
  %v4561 = vmul.f32 %v4285, 0.0051020407
  %v4562 = vmul.f32 %v4289, 0.0051020407
  %v4563 = vmul.f32 %v4293, 0.0051020407
  %v4564 = vmul.f32 %v4297, 0.0051020407
  %v4565 = vmul.f32 %v4301, 0.0051020407
  %v4566 = vmul.f32 %v4305, 0.0051020407
  %v4567 = vmul.f32 %v4309, 0.0051020407
  %v4568 = vmul.f32 %v4313, 0.0051020407
  %v4569 = vmul.f32 %v4317, 0.0051020407
  %v4570 = vmul.f32 %v4321, 0.0051020407
  %v4571 = vmul.f32 %v4325, 0.0051020407
  %v4572 = vmul.f32 %v4329, 0.0051020407
  %v4573 = vmul.f32 %v4333, 0.0051020407
  %v4574 = vmul.f32 %v4337, 0.0051020407
  %v4575 = vmul.f32 %v4341, 0.0051020407
  %v4576 = vmul.f32 %v4345, 0.0051020407
  %v4577 = vmul.f32 %v4349, 0.0051020407
  %v4578 = vmul.f32 %v4353, 0.0051020407
  %v4579 = vmul.f32 %v4357, 0.0051020407
  %v4580 = vmul.f32 %v4361, 0.0051020407
  %v4581 = vmul.f32 %v4365, 0.0051020407
  %v4582 = vmul.f32 %v4369, 0.0051020407
  %v4583 = vmul.f32 %v4373, 0.0051020407
  %v4584 = vmul.f32 %v4377, 0.0051020407
  %v4585 = vmul.f32 %v4381, 0.0051020407
  %v4586 = vmul.f32 %v4385, 0.0051020407
  %v4587 = vmul.f32 %v4389, 0.0051020407
  %v4588 = vmul.f32 %v4393, 0.0051020407
  %v4589 = vmul.f32 %v4397, 0.0051020407
  %v4590 = vmul.f32 %v4401, 0.0051020407
  %v4591 = vmul.f32 %v4405, 0.0051020407
  %v4592 = vmul.f32 %v4409, 0.0051020407
  %v4593 = vmul.f32 %v4413, 0.0051020407
  %v4594 = vmul.f32 %v4417, 0.0051020407
  %v4595 = vmul.f32 %v4421, 0.0051020407
  %v4596 = vmul.f32 %v4425, 0.0051020407
  %v4597 = vmul.f32 %v4429, 0.0051020407
  %v4598 = vmul.f32 %v4433, 0.0051020407
  %v4599 = vmul.f32 %v4437, 0.0051020407
  %v4600 = vmul.f32 %v4441, 0.0051020407
  %v4601 = vmul.f32 %v4445, 0.0051020407
  %v4602 = vmul.f32 %v4449, 0.0051020407
  %v4603 = vmul.f32 %v4453, 0.0051020407
  %v4604 = vmul.f32 %v4457, 0.0051020407
  %v4605 = vmul.f32 %v4461, 0.0051020407
  %v4606 = vmul.f32 %v4465, 0.0051020407
  %v4607 = vmul.f32 %v4469, 0.0051020407
  %v4608 = vmul.f32 %v4473, 0.0051020407
  %v4609 = vmul.f32 %v4477, 0.0051020407
  %v4610 = vmul.f32 %v4481, 0.0051020407
  %v4611 = vmul.f32 %v4485, 0.0051020407
  %v4612 = vmul.f32 %v4489, 0.0051020407
  %v4613 = vmul.f32 %v4493, 0.0051020407
  %v4614 = vmul.f32 %v4497, 0.0051020407
  %v4615 = vmul.f32 %v4501, 0.0051020407
  %v4616 = vmul.f32 %v4505, 0.0051020407
  %v4617 = vmul.f32 %v4509, 0.0051020407
  %v4618 = vmul.f32 %v4513, 0.0051020407
  %v4619 = vmul.f32 %v4517, 0.0051020407
  %v4620 = vmul.f32 %v4521, 0.0051020407
  %v4621 = vmul.f32 %v4525, 0.0051020407
  %v4622 = vmul.f32 %v4529, 0.0051020407
  %v4623 = vmul.f32 %v4533, 0.0051020407
  %v4624 = vld [vmem:[%s3] sm:$0xff]
  %v4625 = vld [vmem:[%s3 + $0x8] sm:$0xff]
  %v4626 = vld [vmem:[%s3 + $0x10] sm:$0xff]
  %v4627 = vld [vmem:[%s3 + $0x18] sm:$0xff]
  %v4628 = vld [vmem:[%s3 + $0x20] sm:$0xff]
  %v4629 = vld [vmem:[%s3 + $0x28] sm:$0xff]
  %v4630 = vld [vmem:[%s3 + $0x30] sm:$0xff]
  %v4631 = vld [vmem:[%s3 + $0x38] sm:$0xff]
  %v4632 = vld [vmem:[%s3 + $0x40] sm:$0xff]
  %v4633 = vld [vmem:[%s3 + $0x48] sm:$0xff]
  %v4634 = vld [vmem:[%s3 + $0x50] sm:$0xff]
  %v4635 = vld [vmem:[%s3 + $0x58] sm:$0xff]
  %v4636 = vld [vmem:[%s3 + $0x60] sm:$0xff]
  %v4637 = vld [vmem:[%s3 + $0x68] sm:$0xff]
  %v4638 = vld [vmem:[%s3 + $0x70] sm:$0xff]
  %v4639 = vld [vmem:[%s3 + $0x78] sm:$0xff]
  %v4640 = vld [vmem:[%s3 + $0x80] sm:$0xff]
  %v4641 = vld [vmem:[%s3 + $0x88] sm:$0xff]
  %v4642 = vld [vmem:[%s3 + $0x90] sm:$0xff]
  %v4643 = vld [vmem:[%s3 + $0x98] sm:$0xff]
  %v4644 = vld [vmem:[%s3 + $0xa0] sm:$0xff]
  %v4645 = vld [vmem:[%s3 + $0xa8] sm:$0xff]
  %v4646 = vld [vmem:[%s3 + $0xb0] sm:$0xff]
  %v4647 = vld [vmem:[%s3 + $0xb8] sm:$0xff]
  %v4648 = vld [vmem:[%s3 + $0xc0] sm:$0xff]
  %v4649 = vld [vmem:[%s3 + $0xc8] sm:$0xff]
  %v4650 = vld [vmem:[%s3 + $0xd0] sm:$0xff]
  %v4651 = vld [vmem:[%s3 + $0xd8] sm:$0xff]
  %v4652 = vld [vmem:[%s3 + $0xe0] sm:$0xff]
  %v4653 = vld [vmem:[%s3 + $0xe8] sm:$0xff]
  %v4654 = vld [vmem:[%s3 + $0xf0] sm:$0xff]
  %v4655 = vld [vmem:[%s3 + $0xf8] sm:$0xff]
  %v4656 = vld [vmem:[%s3 + $0x100] sm:$0xff]
  %v4657 = vld [vmem:[%s3 + $0x108] sm:$0xff]
  %v4658 = vld [vmem:[%s3 + $0x110] sm:$0xff]
  %v4659 = vld [vmem:[%s3 + $0x118] sm:$0xff]
  %v4660 = vld [vmem:[%s3 + $0x120] sm:$0xff]
  %v4661 = vld [vmem:[%s3 + $0x128] sm:$0xff]
  %v4662 = vld [vmem:[%s3 + $0x130] sm:$0xff]
  %v4663 = vld [vmem:[%s3 + $0x138] sm:$0xff]
  %v4664 = vld [vmem:[%s3 + $0x140] sm:$0xff]
  %v4665 = vld [vmem:[%s3 + $0x148] sm:$0xff]
  %v4666 = vld [vmem:[%s3 + $0x150] sm:$0xff]
  %v4667 = vld [vmem:[%s3 + $0x158] sm:$0xff]
  %v4668 = vld [vmem:[%s3 + $0x160] sm:$0xff]
  %v4669 = vld [vmem:[%s3 + $0x168] sm:$0xff]
  %v4670 = vld [vmem:[%s3 + $0x170] sm:$0xff]
  %v4671 = vld [vmem:[%s3 + $0x178] sm:$0xff]
  %v4672 = vld [vmem:[%s3 + $0x180] sm:$0xff]
  %v4673 = vld [vmem:[%s3 + $0x188] sm:$0xff]
  %v4674 = vld [vmem:[%s3 + $0x190] sm:$0xff]
  %v4675 = vld [vmem:[%s3 + $0x198] sm:$0xff]
  %v4676 = vld [vmem:[%s3 + $0x1a0] sm:$0xff]
  %v4677 = vld [vmem:[%s3 + $0x1a8] sm:$0xff]
  %v4678 = vld [vmem:[%s3 + $0x1b0] sm:$0xff]
  %v4679 = vld [vmem:[%s3 + $0x1b8] sm:$0xff]
  %v4680 = vld [vmem:[%s3 + $0x1c0] sm:$0xff]
  %v4681 = vld [vmem:[%s3 + $0x1c8] sm:$0xff]
  %v4682 = vld [vmem:[%s3 + $0x1d0] sm:$0xff]
  %v4683 = vld [vmem:[%s3 + $0x1d8] sm:$0xff]
  %v4684 = vld [vmem:[%s3 + $0x1e0] sm:$0xff]
  %v4685 = vld [vmem:[%s3 + $0x1e8] sm:$0xff]
  %v4686 = vld [vmem:[%s3 + $0x1f0] sm:$0xff]
  %v4687 = vld [vmem:[%s3 + $0x1f8] sm:$0xff]
  %v4688 = vld [vmem:[%s3 + $0x200] sm:$0xff]
  %v4689 = vld [vmem:[%s3 + $0x208] sm:$0xff]
  %v4690 = vld [vmem:[%s3 + $0x210] sm:$0xff]
  %v4691 = vld [vmem:[%s3 + $0x218] sm:$0xff]
  %v4692 = vld [vmem:[%s3 + $0x220] sm:$0xff]
  %v4693 = vld [vmem:[%s3 + $0x228] sm:$0xff]
  %v4694 = vld [vmem:[%s3 + $0x230] sm:$0xff]
  %v4695 = vld [vmem:[%s3 + $0x238] sm:$0xff]
  %v4696 = vld [vmem:[%s3 + $0x240] sm:$0xff]
  %v4697 = vld [vmem:[%s3 + $0x248] sm:$0xff]
  %v4698 = vld [vmem:[%s3 + $0x250] sm:$0xff]
  %v4699 = vld [vmem:[%s3 + $0x258] sm:$0xff]
  %v4700 = vld [vmem:[%s3 + $0x260] sm:$0xff]
  %v4701 = vld [vmem:[%s3 + $0x268] sm:$0xff]
  %v4702 = vld [vmem:[%s3 + $0x270] sm:$0xff]
  %v4703 = vld [vmem:[%s3 + $0x278] sm:$0xff]
  %v4704 = vld [vmem:[%s3 + $0x280] sm:$0xff]
  %v4705 = vld [vmem:[%s3 + $0x288] sm:$0xff]
  %v4706 = vld [vmem:[%s3 + $0x290] sm:$0xff]
  %v4707 = vld [vmem:[%s3 + $0x298] sm:$0xff]
  %v4708 = vld [vmem:[%s3 + $0x2a0] sm:$0xff]
  %v4709 = vld [vmem:[%s3 + $0x2a8] sm:$0xff]
  %v4710 = vld [vmem:[%s3 + $0x2b0] sm:$0xff]
  %v4711 = vld [vmem:[%s3 + $0x2b8] sm:$0xff]
  %v4712 = vld [vmem:[%s3 + $0x2c0] sm:$0xff]
  %v4713 = vld [vmem:[%s3 + $0x2c8] sm:$0xff]
  %v4714 = vadd.f32 %v4534, 1e-05
  %v4715 = vadd.f32 %v4535, 1e-05
  %v4716 = vadd.f32 %v4536, 1e-05
  %v4717 = vadd.f32 %v4537, 1e-05
  %v4718 = vadd.f32 %v4538, 1e-05
  %v4719 = vadd.f32 %v4539, 1e-05
  %v4720 = vadd.f32 %v4540, 1e-05
  %v4721 = vadd.f32 %v4541, 1e-05
  %v4722 = vadd.f32 %v4542, 1e-05
  %v4723 = vadd.f32 %v4543, 1e-05
  %v4724 = vadd.f32 %v4544, 1e-05
  %v4725 = vadd.f32 %v4545, 1e-05
  %v4726 = vadd.f32 %v4546, 1e-05
  %v4727 = vadd.f32 %v4547, 1e-05
  %v4728 = vadd.f32 %v4548, 1e-05
  %v4729 = vadd.f32 %v4549, 1e-05
  %v4730 = vadd.f32 %v4550, 1e-05
  %v4731 = vadd.f32 %v4551, 1e-05
  %v4732 = vadd.f32 %v4552, 1e-05
  %v4733 = vadd.f32 %v4553, 1e-05
  %v4734 = vadd.f32 %v4554, 1e-05
  %v4735 = vadd.f32 %v4555, 1e-05
  %v4736 = vadd.f32 %v4556, 1e-05
  %v4737 = vadd.f32 %v4557, 1e-05
  %v4738 = vadd.f32 %v4558, 1e-05
  %v4739 = vadd.f32 %v4559, 1e-05
  %v4740 = vadd.f32 %v4560, 1e-05
  %v4741 = vadd.f32 %v4561, 1e-05
  %v4742 = vadd.f32 %v4562, 1e-05
  %v4743 = vadd.f32 %v4563, 1e-05
  %v4744 = vadd.f32 %v4564, 1e-05
  %v4745 = vadd.f32 %v4565, 1e-05
  %v4746 = vadd.f32 %v4566, 1e-05
  %v4747 = vadd.f32 %v4567, 1e-05
  %v4748 = vadd.f32 %v4568, 1e-05
  %v4749 = vadd.f32 %v4569, 1e-05
  %v4750 = vadd.f32 %v4570, 1e-05
  %v4751 = vadd.f32 %v4571, 1e-05
  %v4752 = vadd.f32 %v4572, 1e-05
  %v4753 = vadd.f32 %v4573, 1e-05
  %v4754 = vadd.f32 %v4574, 1e-05
  %v4755 = vadd.f32 %v4575, 1e-05
  %v4756 = vadd.f32 %v4576, 1e-05
  %v4757 = vadd.f32 %v4577, 1e-05
  %v4758 = vadd.f32 %v4578, 1e-05
  %v4759 = vadd.f32 %v4579, 1e-05
  %v4760 = vadd.f32 %v4580, 1e-05
  %v4761 = vadd.f32 %v4581, 1e-05
  %v4762 = vadd.f32 %v4582, 1e-05
  %v4763 = vadd.f32 %v4583, 1e-05
  %v4764 = vadd.f32 %v4584, 1e-05
  %v4765 = vadd.f32 %v4585, 1e-05
  %v4766 = vadd.f32 %v4586, 1e-05
  %v4767 = vadd.f32 %v4587, 1e-05
  %v4768 = vadd.f32 %v4588, 1e-05
  %v4769 = vadd.f32 %v4589, 1e-05
  %v4770 = vadd.f32 %v4590, 1e-05
  %v4771 = vadd.f32 %v4591, 1e-05
  %v4772 = vadd.f32 %v4592, 1e-05
  %v4773 = vadd.f32 %v4593, 1e-05
  %v4774 = vadd.f32 %v4594, 1e-05
  %v4775 = vadd.f32 %v4595, 1e-05
  %v4776 = vadd.f32 %v4596, 1e-05
  %v4777 = vadd.f32 %v4597, 1e-05
  %v4778 = vadd.f32 %v4598, 1e-05
  %v4779 = vadd.f32 %v4599, 1e-05
  %v4780 = vadd.f32 %v4600, 1e-05
  %v4781 = vadd.f32 %v4601, 1e-05
  %v4782 = vadd.f32 %v4602, 1e-05
  %v4783 = vadd.f32 %v4603, 1e-05
  %v4784 = vadd.f32 %v4604, 1e-05
  %v4785 = vadd.f32 %v4605, 1e-05
  %v4786 = vadd.f32 %v4606, 1e-05
  %v4787 = vadd.f32 %v4607, 1e-05
  %v4788 = vadd.f32 %v4608, 1e-05
  %v4789 = vadd.f32 %v4609, 1e-05
  %v4790 = vadd.f32 %v4610, 1e-05
  %v4791 = vadd.f32 %v4611, 1e-05
  %v4792 = vadd.f32 %v4612, 1e-05
  %v4793 = vadd.f32 %v4613, 1e-05
  %v4794 = vadd.f32 %v4614, 1e-05
  %v4795 = vadd.f32 %v4615, 1e-05
  %v4796 = vadd.f32 %v4616, 1e-05
  %v4797 = vadd.f32 %v4617, 1e-05
  %v4798 = vadd.f32 %v4618, 1e-05
  %v4799 = vadd.f32 %v4619, 1e-05
  %v4800 = vadd.f32 %v4620, 1e-05
  %v4801 = vadd.f32 %v4621, 1e-05
  %v4802 = vadd.f32 %v4622, 1e-05
  %v4803 = vadd.f32 %v4623, 1e-05
  %v4804 = vrsqrt.pop %v4714
  %v4805 = vrsqrt.pop %v4715
  %v4806 = vrsqrt.pop %v4716
  %v4807 = vrsqrt.pop %v4717
  %v4808 = vrsqrt.pop %v4718
  %v4809 = vrsqrt.pop %v4719
  %v4810 = vrsqrt.pop %v4720
  %v4811 = vrsqrt.pop %v4721
  %v4812 = vrsqrt.pop %v4722
  %v4813 = vrsqrt.pop %v4723
  %v4814 = vrsqrt.pop %v4724
  %v4815 = vrsqrt.pop %v4725
  %v4816 = vrsqrt.pop %v4726
  %v4817 = vrsqrt.pop %v4727
  %v4818 = vrsqrt.pop %v4728
  %v4819 = vrsqrt.pop %v4729
  %v4820 = vrsqrt.pop %v4730
  %v4821 = vrsqrt.pop %v4731
  %v4822 = vrsqrt.pop %v4732
  %v4823 = vrsqrt.pop %v4733
  %v4824 = vrsqrt.pop %v4734
  %v4825 = vrsqrt.pop %v4735
  %v4826 = vrsqrt.pop %v4736
  %v4827 = vrsqrt.pop %v4737
  %v4828 = vrsqrt.pop %v4738
  %v4829 = vrsqrt.pop %v4739
  %v4830 = vrsqrt.pop %v4740
  %v4831 = vrsqrt.pop %v4741
  %v4832 = vrsqrt.pop %v4742
  %v4833 = vrsqrt.pop %v4743
  %v4834 = vrsqrt.pop %v4744
  %v4835 = vrsqrt.pop %v4745
  %v4836 = vrsqrt.pop %v4746
  %v4837 = vrsqrt.pop %v4747
  %v4838 = vrsqrt.pop %v4748
  %v4839 = vrsqrt.pop %v4749
  %v4840 = vrsqrt.pop %v4750
  %v4841 = vrsqrt.pop %v4751
  %v4842 = vrsqrt.pop %v4752
  %v4843 = vrsqrt.pop %v4753
  %v4844 = vrsqrt.pop %v4754
  %v4845 = vrsqrt.pop %v4755
  %v4846 = vrsqrt.pop %v4756
  %v4847 = vrsqrt.pop %v4757
  %v4848 = vrsqrt.pop %v4758
  %v4849 = vrsqrt.pop %v4759
  %v4850 = vrsqrt.pop %v4760
  %v4851 = vrsqrt.pop %v4761
  %v4852 = vrsqrt.pop %v4762
  %v4853 = vrsqrt.pop %v4763
  %v4854 = vrsqrt.pop %v4764
  %v4855 = vrsqrt.pop %v4765
  %v4856 = vrsqrt.pop %v4766
  %v4857 = vrsqrt.pop %v4767
  %v4858 = vrsqrt.pop %v4768
  %v4859 = vrsqrt.pop %v4769
  %v4860 = vrsqrt.pop %v4770
  %v4861 = vrsqrt.pop %v4771
  %v4862 = vrsqrt.pop %v4772
  %v4863 = vrsqrt.pop %v4773
  %v4864 = vrsqrt.pop %v4774
  %v4865 = vrsqrt.pop %v4775
  %v4866 = vrsqrt.pop %v4776
  %v4867 = vrsqrt.pop %v4777
  %v4868 = vrsqrt.pop %v4778
  %v4869 = vrsqrt.pop %v4779
  %v4870 = vrsqrt.pop %v4780
  %v4871 = vrsqrt.pop %v4781
  %v4872 = vrsqrt.pop %v4782
  %v4873 = vrsqrt.pop %v4783
  %v4874 = vrsqrt.pop %v4784
  %v4875 = vrsqrt.pop %v4785
  %v4876 = vrsqrt.pop %v4786
  %v4877 = vrsqrt.pop %v4787
  %v4878 = vrsqrt.pop %v4788
  %v4879 = vrsqrt.pop %v4789
  %v4880 = vrsqrt.pop %v4790
  %v4881 = vrsqrt.pop %v4791
  %v4882 = vrsqrt.pop %v4792
  %v4883 = vrsqrt.pop %v4793
  %v4884 = vrsqrt.pop %v4794
  %v4885 = vrsqrt.pop %v4795
  %v4886 = vrsqrt.pop %v4796
  %v4887 = vrsqrt.pop %v4797
  %v4888 = vrsqrt.pop %v4798
  %v4889 = vrsqrt.pop %v4799
  %v4890 = vrsqrt.pop %v4800
  %v4891 = vrsqrt.pop %v4801
  %v4892 = vrsqrt.pop %v4802
  %v4893 = vrsqrt.pop %v4803
  %v4894 = vmul.f32 %v4624, %v4804
  %v4895 = vmul.f32 %v4625, %v4805
  %v4896 = vmul.f32 %v4626, %v4806
  %v4897 = vmul.f32 %v4627, %v4807
  %v4898 = vmul.f32 %v4628, %v4808
  %v4899 = vmul.f32 %v4629, %v4809
  %v4900 = vmul.f32 %v4630, %v4810
  %v4901 = vmul.f32 %v4631, %v4811
  %v4902 = vmul.f32 %v4632, %v4812
  %v4903 = vmul.f32 %v4633, %v4813
  %v4904 = vmul.f32 %v4634, %v4814
  %v4905 = vmul.f32 %v4635, %v4815
  %v4906 = vmul.f32 %v4636, %v4816
  %v4907 = vmul.f32 %v4637, %v4817
  %v4908 = vmul.f32 %v4638, %v4818
  %v4909 = vmul.f32 %v4639, %v4819
  %v4910 = vmul.f32 %v4640, %v4820
  %v4911 = vmul.f32 %v4641, %v4821
  %v4912 = vmul.f32 %v4642, %v4822
  %v4913 = vmul.f32 %v4643, %v4823
  %v4914 = vmul.f32 %v4644, %v4824
  %v4915 = vmul.f32 %v4645, %v4825
  %v4916 = vmul.f32 %v4646, %v4826
  %v4917 = vmul.f32 %v4647, %v4827
  %v4918 = vmul.f32 %v4648, %v4828
  %v4919 = vmul.f32 %v4649, %v4829
  %v4920 = vmul.f32 %v4650, %v4830
  %v4921 = vmul.f32 %v4651, %v4831
  %v4922 = vmul.f32 %v4652, %v4832
  %v4923 = vmul.f32 %v4653, %v4833
  %v4924 = vmul.f32 %v4654, %v4834
  %v4925 = vmul.f32 %v4655, %v4835
  %v4926 = vmul.f32 %v4656, %v4836
  %v4927 = vmul.f32 %v4657, %v4837
  %v4928 = vmul.f32 %v4658, %v4838
  %v4929 = vmul.f32 %v4659, %v4839
  %v4930 = vmul.f32 %v4660, %v4840
  %v4931 = vmul.f32 %v4661, %v4841
  %v4932 = vmul.f32 %v4662, %v4842
  %v4933 = vmul.f32 %v4663, %v4843
  %v4934 = vmul.f32 %v4664, %v4844
  %v4935 = vmul.f32 %v4665, %v4845
  %v4936 = vmul.f32 %v4666, %v4846
  %v4937 = vmul.f32 %v4667, %v4847
  %v4938 = vmul.f32 %v4668, %v4848
  %v4939 = vmul.f32 %v4669, %v4849
  %v4940 = vmul.f32 %v4670, %v4850
  %v4941 = vmul.f32 %v4671, %v4851
  %v4942 = vmul.f32 %v4672, %v4852
  %v4943 = vmul.f32 %v4673, %v4853
  %v4944 = vmul.f32 %v4674, %v4854
  %v4945 = vmul.f32 %v4675, %v4855
  %v4946 = vmul.f32 %v4676, %v4856
  %v4947 = vmul.f32 %v4677, %v4857
  %v4948 = vmul.f32 %v4678, %v4858
  %v4949 = vmul.f32 %v4679, %v4859
  %v4950 = vmul.f32 %v4680, %v4860
  %v4951 = vmul.f32 %v4681, %v4861
  %v4952 = vmul.f32 %v4682, %v4862
  %v4953 = vmul.f32 %v4683, %v4863
  %v4954 = vmul.f32 %v4684, %v4864
  %v4955 = vmul.f32 %v4685, %v4865
  %v4956 = vmul.f32 %v4686, %v4866
  %v4957 = vmul.f32 %v4687, %v4867
  %v4958 = vmul.f32 %v4688, %v4868
  %v4959 = vmul.f32 %v4689, %v4869
  %v4960 = vmul.f32 %v4690, %v4870
  %v4961 = vmul.f32 %v4691, %v4871
  %v4962 = vmul.f32 %v4692, %v4872
  %v4963 = vmul.f32 %v4693, %v4873
  %v4964 = vmul.f32 %v4694, %v4874
  %v4965 = vmul.f32 %v4695, %v4875
  %v4966 = vmul.f32 %v4696, %v4876
  %v4967 = vmul.f32 %v4697, %v4877
  %v4968 = vmul.f32 %v4698, %v4878
  %v4969 = vmul.f32 %v4699, %v4879
  %v4970 = vmul.f32 %v4700, %v4880
  %v4971 = vmul.f32 %v4701, %v4881
  %v4972 = vmul.f32 %v4702, %v4882
  %v4973 = vmul.f32 %v4703, %v4883
  %v4974 = vmul.f32 %v4704, %v4884
  %v4975 = vmul.f32 %v4705, %v4885
  %v4976 = vmul.f32 %v4706, %v4886
  %v4977 = vmul.f32 %v4707, %v4887
  %v4978 = vmul.f32 %v4708, %v4888
  %v4979 = vmul.f32 %v4709, %v4889
  %v4980 = vmul.f32 %v4710, %v4890
  %v4981 = vmul.f32 %v4711, %v4891
  %v4982 = vmul.f32 %v4712, %v4892
  %v4983 = vmul.f32 %v4713, %v4893
  %4985 = vset.pattern.permute.xlu0 0
  %4986 = vperm.xlu0 %4985, %v4894
  %v4987 = vpop.permute.xlu0 %4986
  %4990 = vset.pattern.permute.xlu0 0
  %4991 = vperm.xlu0 %4990, %v4895
  %v4992 = vpop.permute.xlu0 %4991
  %4995 = vset.pattern.permute.xlu0 0
  %4996 = vperm.xlu0 %4995, %v4896
  %v4997 = vpop.permute.xlu0 %4996
  %5000 = vset.pattern.permute.xlu0 0
  %5001 = vperm.xlu0 %5000, %v4897
  %v5002 = vpop.permute.xlu0 %5001
  %5005 = vset.pattern.permute.xlu0 0
  %5006 = vperm.xlu0 %5005, %v4898
  %v5007 = vpop.permute.xlu0 %5006
  %5010 = vset.pattern.permute.xlu0 0
  %5011 = vperm.xlu0 %5010, %v4899
  %v5012 = vpop.permute.xlu0 %5011
  %5015 = vset.pattern.permute.xlu0 0
  %5016 = vperm.xlu0 %5015, %v4900
  %v5017 = vpop.permute.xlu0 %5016
  %5020 = vset.pattern.permute.xlu0 0
  %5021 = vperm.xlu0 %5020, %v4901
  %v5022 = vpop.permute.xlu0 %5021
  %5025 = vset.pattern.permute.xlu0 0
  %5026 = vperm.xlu0 %5025, %v4902
  %v5027 = vpop.permute.xlu0 %5026
  %5030 = vset.pattern.permute.xlu0 0
  %5031 = vperm.xlu0 %5030, %v4903
  %v5032 = vpop.permute.xlu0 %5031
  %5035 = vset.pattern.permute.xlu0 0
  %5036 = vperm.xlu0 %5035, %v4904
  %v5037 = vpop.permute.xlu0 %5036
  %5040 = vset.pattern.permute.xlu0 0
  %5041 = vperm.xlu0 %5040, %v4905
  %v5042 = vpop.permute.xlu0 %5041
  %5045 = vset.pattern.permute.xlu0 0
  %5046 = vperm.xlu0 %5045, %v4906
  %v5047 = vpop.permute.xlu0 %5046
  %5050 = vset.pattern.permute.xlu0 0
  %5051 = vperm.xlu0 %5050, %v4907
  %v5052 = vpop.permute.xlu0 %5051
  %5055 = vset.pattern.permute.xlu0 0
  %5056 = vperm.xlu0 %5055, %v4908
  %v5057 = vpop.permute.xlu0 %5056
  %5060 = vset.pattern.permute.xlu0 0
  %5061 = vperm.xlu0 %5060, %v4909
  %v5062 = vpop.permute.xlu0 %5061
  %5065 = vset.pattern.permute.xlu0 0
  %5066 = vperm.xlu0 %5065, %v4910
  %v5067 = vpop.permute.xlu0 %5066
  %5070 = vset.pattern.permute.xlu0 0
  %5071 = vperm.xlu0 %5070, %v4911
  %v5072 = vpop.permute.xlu0 %5071
  %5075 = vset.pattern.permute.xlu0 0
  %5076 = vperm.xlu0 %5075, %v4912
  %v5077 = vpop.permute.xlu0 %5076
  %5080 = vset.pattern.permute.xlu0 0
  %5081 = vperm.xlu0 %5080, %v4913
  %v5082 = vpop.permute.xlu0 %5081
  %5085 = vset.pattern.permute.xlu0 0
  %5086 = vperm.xlu0 %5085, %v4914
  %v5087 = vpop.permute.xlu0 %5086
  %5090 = vset.pattern.permute.xlu0 0
  %5091 = vperm.xlu0 %5090, %v4915
  %v5092 = vpop.permute.xlu0 %5091
  %5095 = vset.pattern.permute.xlu0 0
  %5096 = vperm.xlu0 %5095, %v4916
  %v5097 = vpop.permute.xlu0 %5096
  %5100 = vset.pattern.permute.xlu0 0
  %5101 = vperm.xlu0 %5100, %v4917
  %v5102 = vpop.permute.xlu0 %5101
  %5105 = vset.pattern.permute.xlu0 0
  %5106 = vperm.xlu0 %5105, %v4918
  %v5107 = vpop.permute.xlu0 %5106
  %5110 = vset.pattern.permute.xlu0 0
  %5111 = vperm.xlu0 %5110, %v4919
  %v5112 = vpop.permute.xlu0 %5111
  %5115 = vset.pattern.permute.xlu0 0
  %5116 = vperm.xlu0 %5115, %v4920
  %v5117 = vpop.permute.xlu0 %5116
  %5120 = vset.pattern.permute.xlu0 0
  %5121 = vperm.xlu0 %5120, %v4921
  %v5122 = vpop.permute.xlu0 %5121
  %5125 = vset.pattern.permute.xlu0 0
  %5126 = vperm.xlu0 %5125, %v4922
  %v5127 = vpop.permute.xlu0 %5126
  %5130 = vset.pattern.permute.xlu0 0
  %5131 = vperm.xlu0 %5130, %v4923
  %v5132 = vpop.permute.xlu0 %5131
  %5135 = vset.pattern.permute.xlu0 0
  %5136 = vperm.xlu0 %5135, %v4924
  %v5137 = vpop.permute.xlu0 %5136
  %5140 = vset.pattern.permute.xlu0 0
  %5141 = vperm.xlu0 %5140, %v4925
  %v5142 = vpop.permute.xlu0 %5141
  %5145 = vset.pattern.permute.xlu0 0
  %5146 = vperm.xlu0 %5145, %v4926
  %v5147 = vpop.permute.xlu0 %5146
  %5150 = vset.pattern.permute.xlu0 0
  %5151 = vperm.xlu0 %5150, %v4927
  %v5152 = vpop.permute.xlu0 %5151
  %5155 = vset.pattern.permute.xlu0 0
  %5156 = vperm.xlu0 %5155, %v4928
  %v5157 = vpop.permute.xlu0 %5156
  %5160 = vset.pattern.permute.xlu0 0
  %5161 = vperm.xlu0 %5160, %v4929
  %v5162 = vpop.permute.xlu0 %5161
  %5165 = vset.pattern.permute.xlu0 0
  %5166 = vperm.xlu0 %5165, %v4930
  %v5167 = vpop.permute.xlu0 %5166
  %5170 = vset.pattern.permute.xlu0 0
  %5171 = vperm.xlu0 %5170, %v4931
  %v5172 = vpop.permute.xlu0 %5171
  %5175 = vset.pattern.permute.xlu0 0
  %5176 = vperm.xlu0 %5175, %v4932
  %v5177 = vpop.permute.xlu0 %5176
  %5180 = vset.pattern.permute.xlu0 0
  %5181 = vperm.xlu0 %5180, %v4933
  %v5182 = vpop.permute.xlu0 %5181
  %5185 = vset.pattern.permute.xlu0 0
  %5186 = vperm.xlu0 %5185, %v4934
  %v5187 = vpop.permute.xlu0 %5186
  %5190 = vset.pattern.permute.xlu0 0
  %5191 = vperm.xlu0 %5190, %v4935
  %v5192 = vpop.permute.xlu0 %5191
  %5195 = vset.pattern.permute.xlu0 0
  %5196 = vperm.xlu0 %5195, %v4936
  %v5197 = vpop.permute.xlu0 %5196
  %5200 = vset.pattern.permute.xlu0 0
  %5201 = vperm.xlu0 %5200, %v4937
  %v5202 = vpop.permute.xlu0 %5201
  %5205 = vset.pattern.permute.xlu0 0
  %5206 = vperm.xlu0 %5205, %v4938
  %v5207 = vpop.permute.xlu0 %5206
  %5210 = vset.pattern.permute.xlu0 0
  %5211 = vperm.xlu0 %5210, %v4939
  %v5212 = vpop.permute.xlu0 %5211
  %5215 = vset.pattern.permute.xlu0 0
  %5216 = vperm.xlu0 %5215, %v4940
  %v5217 = vpop.permute.xlu0 %5216
  %5220 = vset.pattern.permute.xlu0 0
  %5221 = vperm.xlu0 %5220, %v4941
  %v5222 = vpop.permute.xlu0 %5221
  %5225 = vset.pattern.permute.xlu0 0
  %5226 = vperm.xlu0 %5225, %v4942
  %v5227 = vpop.permute.xlu0 %5226
  %5230 = vset.pattern.permute.xlu0 0
  %5231 = vperm.xlu0 %5230, %v4943
  %v5232 = vpop.permute.xlu0 %5231
  %5235 = vset.pattern.permute.xlu0 0
  %5236 = vperm.xlu0 %5235, %v4944
  %v5237 = vpop.permute.xlu0 %5236
  %5240 = vset.pattern.permute.xlu0 0
  %5241 = vperm.xlu0 %5240, %v4945
  %v5242 = vpop.permute.xlu0 %5241
  %5245 = vset.pattern.permute.xlu0 0
  %5246 = vperm.xlu0 %5245, %v4946
  %v5247 = vpop.permute.xlu0 %5246
  %5250 = vset.pattern.permute.xlu0 0
  %5251 = vperm.xlu0 %5250, %v4947
  %v5252 = vpop.permute.xlu0 %5251
  %5255 = vset.pattern.permute.xlu0 0
  %5256 = vperm.xlu0 %5255, %v4948
  %v5257 = vpop.permute.xlu0 %5256
  %5260 = vset.pattern.permute.xlu0 0
  %5261 = vperm.xlu0 %5260, %v4949
  %v5262 = vpop.permute.xlu0 %5261
  %5265 = vset.pattern.permute.xlu0 0
  %5266 = vperm.xlu0 %5265, %v4950
  %v5267 = vpop.permute.xlu0 %5266
  %5270 = vset.pattern.permute.xlu0 0
  %5271 = vperm.xlu0 %5270, %v4951
  %v5272 = vpop.permute.xlu0 %5271
  %5275 = vset.pattern.permute.xlu0 0
  %5276 = vperm.xlu0 %5275, %v4952
  %v5277 = vpop.permute.xlu0 %5276
  %5280 = vset.pattern.permute.xlu0 0
  %5281 = vperm.xlu0 %5280, %v4953
  %v5282 = vpop.permute.xlu0 %5281
  %5285 = vset.pattern.permute.xlu0 0
  %5286 = vperm.xlu0 %5285, %v4954
  %v5287 = vpop.permute.xlu0 %5286
  %5290 = vset.pattern.permute.xlu0 0
  %5291 = vperm.xlu0 %5290, %v4955
  %v5292 = vpop.permute.xlu0 %5291
  %5295 = vset.pattern.permute.xlu0 0
  %5296 = vperm.xlu0 %5295, %v4956
  %v5297 = vpop.permute.xlu0 %5296
  %5300 = vset.pattern.permute.xlu0 0
  %5301 = vperm.xlu0 %5300, %v4957
  %v5302 = vpop.permute.xlu0 %5301
  %5305 = vset.pattern.permute.xlu0 0
  %5306 = vperm.xlu0 %5305, %v4958
  %v5307 = vpop.permute.xlu0 %5306
  %5310 = vset.pattern.permute.xlu0 0
  %5311 = vperm.xlu0 %5310, %v4959
  %v5312 = vpop.permute.xlu0 %5311
  %5315 = vset.pattern.permute.xlu0 0
  %5316 = vperm.xlu0 %5315, %v4960
  %v5317 = vpop.permute.xlu0 %5316
  %5320 = vset.pattern.permute.xlu0 0
  %5321 = vperm.xlu0 %5320, %v4961
  %v5322 = vpop.permute.xlu0 %5321
  %5325 = vset.pattern.permute.xlu0 0
  %5326 = vperm.xlu0 %5325, %v4962
  %v5327 = vpop.permute.xlu0 %5326
  %5330 = vset.pattern.permute.xlu0 0
  %5331 = vperm.xlu0 %5330, %v4963
  %v5332 = vpop.permute.xlu0 %5331
  %5335 = vset.pattern.permute.xlu0 0
  %5336 = vperm.xlu0 %5335, %v4964
  %v5337 = vpop.permute.xlu0 %5336
  %5340 = vset.pattern.permute.xlu0 0
  %5341 = vperm.xlu0 %5340, %v4965
  %v5342 = vpop.permute.xlu0 %5341
  %5345 = vset.pattern.permute.xlu0 0
  %5346 = vperm.xlu0 %5345, %v4966
  %v5347 = vpop.permute.xlu0 %5346
  %5350 = vset.pattern.permute.xlu0 0
  %5351 = vperm.xlu0 %5350, %v4967
  %v5352 = vpop.permute.xlu0 %5351
  %5355 = vset.pattern.permute.xlu0 0
  %5356 = vperm.xlu0 %5355, %v4968
  %v5357 = vpop.permute.xlu0 %5356
  %5360 = vset.pattern.permute.xlu0 0
  %5361 = vperm.xlu0 %5360, %v4969
  %v5362 = vpop.permute.xlu0 %5361
  %5365 = vset.pattern.permute.xlu0 0
  %5366 = vperm.xlu0 %5365, %v4970
  %v5367 = vpop.permute.xlu0 %5366
  %5370 = vset.pattern.permute.xlu0 0
  %5371 = vperm.xlu0 %5370, %v4971
  %v5372 = vpop.permute.xlu0 %5371
  %5375 = vset.pattern.permute.xlu0 0
  %5376 = vperm.xlu0 %5375, %v4972
  %v5377 = vpop.permute.xlu0 %5376
  %5380 = vset.pattern.permute.xlu0 0
  %5381 = vperm.xlu0 %5380, %v4973
  %v5382 = vpop.permute.xlu0 %5381
  %5385 = vset.pattern.permute.xlu0 0
  %5386 = vperm.xlu0 %5385, %v4974
  %v5387 = vpop.permute.xlu0 %5386
  %5390 = vset.pattern.permute.xlu0 0
  %5391 = vperm.xlu0 %5390, %v4975
  %v5392 = vpop.permute.xlu0 %5391
  %5395 = vset.pattern.permute.xlu0 0
  %5396 = vperm.xlu0 %5395, %v4976
  %v5397 = vpop.permute.xlu0 %5396
  %5400 = vset.pattern.permute.xlu0 0
  %5401 = vperm.xlu0 %5400, %v4977
  %v5402 = vpop.permute.xlu0 %5401
  %5405 = vset.pattern.permute.xlu0 0
  %5406 = vperm.xlu0 %5405, %v4978
  %v5407 = vpop.permute.xlu0 %5406
  %5410 = vset.pattern.permute.xlu0 0
  %5411 = vperm.xlu0 %5410, %v4979
  %v5412 = vpop.permute.xlu0 %5411
  %5415 = vset.pattern.permute.xlu0 0
  %5416 = vperm.xlu0 %5415, %v4980
  %v5417 = vpop.permute.xlu0 %5416
  %5420 = vset.pattern.permute.xlu0 0
  %5421 = vperm.xlu0 %5420, %v4981
  %v5422 = vpop.permute.xlu0 %5421
  %5425 = vset.pattern.permute.xlu0 0
  %5426 = vperm.xlu0 %5425, %v4982
  %v5427 = vpop.permute.xlu0 %5426
  %5430 = vset.pattern.permute.xlu0 0
  %5431 = vperm.xlu0 %5430, %v4983
  %v5432 = vpop.permute.xlu0 %5431
  %v5434 = vmul.f32 %v3814, %v4987
  %v5435 = vmul.f32 %v3815, %v4987
  %v5436 = vmul.f32 %v3816, %v4992
  %v5437 = vmul.f32 %v3817, %v4992
  %v5438 = vmul.f32 %v3818, %v4997
  %v5439 = vmul.f32 %v3819, %v4997
  %v5440 = vmul.f32 %v3820, %v5002
  %v5441 = vmul.f32 %v3821, %v5002
  %v5442 = vmul.f32 %v3822, %v5007
  %v5443 = vmul.f32 %v3823, %v5007
  %v5444 = vmul.f32 %v3824, %v5012
  %v5445 = vmul.f32 %v3825, %v5012
  %v5446 = vmul.f32 %v3826, %v5017
  %v5447 = vmul.f32 %v3827, %v5017
  %v5448 = vmul.f32 %v3828, %v5022
  %v5449 = vmul.f32 %v3829, %v5022
  %v5450 = vmul.f32 %v3830, %v5027
  %v5451 = vmul.f32 %v3831, %v5027
  %v5452 = vmul.f32 %v3832, %v5032
  %v5453 = vmul.f32 %v3833, %v5032
  %v5454 = vmul.f32 %v3834, %v5037
  %v5455 = vmul.f32 %v3835, %v5037
  %v5456 = vmul.f32 %v3836, %v5042
  %v5457 = vmul.f32 %v3837, %v5042
  %v5458 = vmul.f32 %v3838, %v5047
  %v5459 = vmul.f32 %v3839, %v5047
  %v5460 = vmul.f32 %v3840, %v5052
  %v5461 = vmul.f32 %v3841, %v5052
  %v5462 = vmul.f32 %v3842, %v5057
  %v5463 = vmul.f32 %v3843, %v5057
  %v5464 = vmul.f32 %v3844, %v5062
  %v5465 = vmul.f32 %v3845, %v5062
  %v5466 = vmul.f32 %v3846, %v5067
  %v5467 = vmul.f32 %v3847, %v5067
  %v5468 = vmul.f32 %v3848, %v5072
  %v5469 = vmul.f32 %v3849, %v5072
  %v5470 = vmul.f32 %v3850, %v5077
  %v5471 = vmul.f32 %v3851, %v5077
  %v5472 = vmul.f32 %v3852, %v5082
  %v5473 = vmul.f32 %v3853, %v5082
  %v5474 = vmul.f32 %v3854, %v5087
  %v5475 = vmul.f32 %v3855, %v5087
  %v5476 = vmul.f32 %v3856, %v5092
  %v5477 = vmul.f32 %v3857, %v5092
  %v5478 = vmul.f32 %v3858, %v5097
  %v5479 = vmul.f32 %v3859, %v5097
  %v5480 = vmul.f32 %v3860, %v5102
  %v5481 = vmul.f32 %v3861, %v5102
  %v5482 = vmul.f32 %v3862, %v5107
  %v5483 = vmul.f32 %v3863, %v5107
  %v5484 = vmul.f32 %v3864, %v5112
  %v5485 = vmul.f32 %v3865, %v5112
  %v5486 = vmul.f32 %v3866, %v5117
  %v5487 = vmul.f32 %v3867, %v5117
  %v5488 = vmul.f32 %v3868, %v5122
  %v5489 = vmul.f32 %v3869, %v5122
  %v5490 = vmul.f32 %v3870, %v5127
  %v5491 = vmul.f32 %v3871, %v5127
  %v5492 = vmul.f32 %v3872, %v5132
  %v5493 = vmul.f32 %v3873, %v5132
  %v5494 = vmul.f32 %v3874, %v5137
  %v5495 = vmul.f32 %v3875, %v5137
  %v5496 = vmul.f32 %v3876, %v5142
  %v5497 = vmul.f32 %v3877, %v5142
  %v5498 = vmul.f32 %v3878, %v5147
  %v5499 = vmul.f32 %v3879, %v5147
  %v5500 = vmul.f32 %v3880, %v5152
  %v5501 = vmul.f32 %v3881, %v5152
  %v5502 = vmul.f32 %v3882, %v5157
  %v5503 = vmul.f32 %v3883, %v5157
  %v5504 = vmul.f32 %v3884, %v5162
  %v5505 = vmul.f32 %v3885, %v5162
  %v5506 = vmul.f32 %v3886, %v5167
  %v5507 = vmul.f32 %v3887, %v5167
  %v5508 = vmul.f32 %v3888, %v5172
  %v5509 = vmul.f32 %v3889, %v5172
  %v5510 = vmul.f32 %v3890, %v5177
  %v5511 = vmul.f32 %v3891, %v5177
  %v5512 = vmul.f32 %v3892, %v5182
  %v5513 = vmul.f32 %v3893, %v5182
  %v5514 = vmul.f32 %v3894, %v5187
  %v5515 = vmul.f32 %v3895, %v5187
  %v5516 = vmul.f32 %v3896, %v5192
  %v5517 = vmul.f32 %v3897, %v5192
  %v5518 = vmul.f32 %v3898, %v5197
  %v5519 = vmul.f32 %v3899, %v5197
  %v5520 = vmul.f32 %v3900, %v5202
  %v5521 = vmul.f32 %v3901, %v5202
  %v5522 = vmul.f32 %v3902, %v5207
  %v5523 = vmul.f32 %v3903, %v5207
  %v5524 = vmul.f32 %v3904, %v5212
  %v5525 = vmul.f32 %v3905, %v5212
  %v5526 = vmul.f32 %v3906, %v5217
  %v5527 = vmul.f32 %v3907, %v5217
  %v5528 = vmul.f32 %v3908, %v5222
  %v5529 = vmul.f32 %v3909, %v5222
  %v5530 = vmul.f32 %v3910, %v5227
  %v5531 = vmul.f32 %v3911, %v5227
  %v5532 = vmul.f32 %v3912, %v5232
  %v5533 = vmul.f32 %v3913, %v5232
  %v5534 = vmul.f32 %v3914, %v5237
  %v5535 = vmul.f32 %v3915, %v5237
  %v5536 = vmul.f32 %v3916, %v5242
  %v5537 = vmul.f32 %v3917, %v5242
  %v5538 = vmul.f32 %v3918, %v5247
  %v5539 = vmul.f32 %v3919, %v5247
  %v5540 = vmul.f32 %v3920, %v5252
  %v5541 = vmul.f32 %v3921, %v5252
  %v5542 = vmul.f32 %v3922, %v5257
  %v5543 = vmul.f32 %v3923, %v5257
  %v5544 = vmul.f32 %v3924, %v5262
  %v5545 = vmul.f32 %v3925, %v5262
  %v5546 = vmul.f32 %v3926, %v5267
  %v5547 = vmul.f32 %v3927, %v5267
  %v5548 = vmul.f32 %v3928, %v5272
  %v5549 = vmul.f32 %v3929, %v5272
  %v5550 = vmul.f32 %v3930, %v5277
  %v5551 = vmul.f32 %v3931, %v5277
  %v5552 = vmul.f32 %v3932, %v5282
  %v5553 = vmul.f32 %v3933, %v5282
  %v5554 = vmul.f32 %v3934, %v5287
  %v5555 = vmul.f32 %v3935, %v5287
  %v5556 = vmul.f32 %v3936, %v5292
  %v5557 = vmul.f32 %v3937, %v5292
  %v5558 = vmul.f32 %v3938, %v5297
  %v5559 = vmul.f32 %v3939, %v5297
  %v5560 = vmul.f32 %v3940, %v5302
  %v5561 = vmul.f32 %v3941, %v5302
  %v5562 = vmul.f32 %v3942, %v5307
  %v5563 = vmul.f32 %v3943, %v5307
  %v5564 = vmul.f32 %v3944, %v5312
  %v5565 = vmul.f32 %v3945, %v5312
  %v5566 = vmul.f32 %v3946, %v5317
  %v5567 = vmul.f32 %v3947, %v5317
  %v5568 = vmul.f32 %v3948, %v5322
  %v5569 = vmul.f32 %v3949, %v5322
  %v5570 = vmul.f32 %v3950, %v5327
  %v5571 = vmul.f32 %v3951, %v5327
  %v5572 = vmul.f32 %v3952, %v5332
  %v5573 = vmul.f32 %v3953, %v5332
  %v5574 = vmul.f32 %v3954, %v5337
  %v5575 = vmul.f32 %v3955, %v5337
  %v5576 = vmul.f32 %v3956, %v5342
  %v5577 = vmul.f32 %v3957, %v5342
  %v5578 = vmul.f32 %v3958, %v5347
  %v5579 = vmul.f32 %v3959, %v5347
  %v5580 = vmul.f32 %v3960, %v5352
  %v5581 = vmul.f32 %v3961, %v5352
  %v5582 = vmul.f32 %v3962, %v5357
  %v5583 = vmul.f32 %v3963, %v5357
  %v5584 = vmul.f32 %v3964, %v5362
  %v5585 = vmul.f32 %v3965, %v5362
  %v5586 = vmul.f32 %v3966, %v5367
  %v5587 = vmul.f32 %v3967, %v5367
  %v5588 = vmul.f32 %v3968, %v5372
  %v5589 = vmul.f32 %v3969, %v5372
  %v5590 = vmul.f32 %v3970, %v5377
  %v5591 = vmul.f32 %v3971, %v5377
  %v5592 = vmul.f32 %v3972, %v5382
  %v5593 = vmul.f32 %v3973, %v5382
  %v5594 = vmul.f32 %v3974, %v5387
  %v5595 = vmul.f32 %v3975, %v5387
  %v5596 = vmul.f32 %v3976, %v5392
  %v5597 = vmul.f32 %v3977, %v5392
  %v5598 = vmul.f32 %v3978, %v5397
  %v5599 = vmul.f32 %v3979, %v5397
  %v5600 = vmul.f32 %v3980, %v5402
  %v5601 = vmul.f32 %v3981, %v5402
  %v5602 = vmul.f32 %v3982, %v5407
  %v5603 = vmul.f32 %v3983, %v5407
  %v5604 = vmul.f32 %v3984, %v5412
  %v5605 = vmul.f32 %v3985, %v5412
  %v5606 = vmul.f32 %v3986, %v5417
  %v5607 = vmul.f32 %v3987, %v5417
  %v5608 = vmul.f32 %v3988, %v5422
  %v5609 = vmul.f32 %v3989, %v5422
  %v5610 = vmul.f32 %v3990, %v5427
  %v5611 = vmul.f32 %v3991, %v5427
  %v5612 = vmul.f32 %v3992, %v5432
  %v5613 = vmul.f32 %v3993, %v5432
  %5615 = vset.pattern.permute.xlu0 1
  %5616 = vperm.xlu0 %5615, %v4624
  %v5617 = vpop.permute.xlu0 %5616
  %5620 = vset.pattern.permute.xlu0 1
  %5621 = vperm.xlu0 %5620, %v4625
  %v5622 = vpop.permute.xlu0 %5621
  %5625 = vset.pattern.permute.xlu0 1
  %5626 = vperm.xlu0 %5625, %v4626
  %v5627 = vpop.permute.xlu0 %5626
  %5630 = vset.pattern.permute.xlu0 1
  %5631 = vperm.xlu0 %5630, %v4627
  %v5632 = vpop.permute.xlu0 %5631
  %5635 = vset.pattern.permute.xlu0 1
  %5636 = vperm.xlu0 %5635, %v4628
  %v5637 = vpop.permute.xlu0 %5636
  %5640 = vset.pattern.permute.xlu0 1
  %5641 = vperm.xlu0 %5640, %v4629
  %v5642 = vpop.permute.xlu0 %5641
  %5645 = vset.pattern.permute.xlu0 1
  %5646 = vperm.xlu0 %5645, %v4630
  %v5647 = vpop.permute.xlu0 %5646
  %5650 = vset.pattern.permute.xlu0 1
  %5651 = vperm.xlu0 %5650, %v4631
  %v5652 = vpop.permute.xlu0 %5651
  %5655 = vset.pattern.permute.xlu0 1
  %5656 = vperm.xlu0 %5655, %v4632
  %v5657 = vpop.permute.xlu0 %5656
  %5660 = vset.pattern.permute.xlu0 1
  %5661 = vperm.xlu0 %5660, %v4633
  %v5662 = vpop.permute.xlu0 %5661
  %5665 = vset.pattern.permute.xlu0 1
  %5666 = vperm.xlu0 %5665, %v4634
  %v5667 = vpop.permute.xlu0 %5666
  %5670 = vset.pattern.permute.xlu0 1
  %5671 = vperm.xlu0 %5670, %v4635
  %v5672 = vpop.permute.xlu0 %5671
  %5675 = vset.pattern.permute.xlu0 1
  %5676 = vperm.xlu0 %5675, %v4636
  %v5677 = vpop.permute.xlu0 %5676
  %5680 = vset.pattern.permute.xlu0 1
  %5681 = vperm.xlu0 %5680, %v4637
  %v5682 = vpop.permute.xlu0 %5681
  %5685 = vset.pattern.permute.xlu0 1
  %5686 = vperm.xlu0 %5685, %v4638
  %v5687 = vpop.permute.xlu0 %5686
  %5690 = vset.pattern.permute.xlu0 1
  %5691 = vperm.xlu0 %5690, %v4639
  %v5692 = vpop.permute.xlu0 %5691
  %5695 = vset.pattern.permute.xlu0 1
  %5696 = vperm.xlu0 %5695, %v4640
  %v5697 = vpop.permute.xlu0 %5696
  %5700 = vset.pattern.permute.xlu0 1
  %5701 = vperm.xlu0 %5700, %v4641
  %v5702 = vpop.permute.xlu0 %5701
  %5705 = vset.pattern.permute.xlu0 1
  %5706 = vperm.xlu0 %5705, %v4642
  %v5707 = vpop.permute.xlu0 %5706
  %5710 = vset.pattern.permute.xlu0 1
  %5711 = vperm.xlu0 %5710, %v4643
  %v5712 = vpop.permute.xlu0 %5711
  %5715 = vset.pattern.permute.xlu0 1
  %5716 = vperm.xlu0 %5715, %v4644
  %v5717 = vpop.permute.xlu0 %5716
  %5720 = vset.pattern.permute.xlu0 1
  %5721 = vperm.xlu0 %5720, %v4645
  %v5722 = vpop.permute.xlu0 %5721
  %5725 = vset.pattern.permute.xlu0 1
  %5726 = vperm.xlu0 %5725, %v4646
  %v5727 = vpop.permute.xlu0 %5726
  %5730 = vset.pattern.permute.xlu0 1
  %5731 = vperm.xlu0 %5730, %v4647
  %v5732 = vpop.permute.xlu0 %5731
  %5735 = vset.pattern.permute.xlu0 1
  %5736 = vperm.xlu0 %5735, %v4648
  %v5737 = vpop.permute.xlu0 %5736
  %5740 = vset.pattern.permute.xlu0 1
  %5741 = vperm.xlu0 %5740, %v4649
  %v5742 = vpop.permute.xlu0 %5741
  %5745 = vset.pattern.permute.xlu0 1
  %5746 = vperm.xlu0 %5745, %v4650
  %v5747 = vpop.permute.xlu0 %5746
  %5750 = vset.pattern.permute.xlu0 1
  %5751 = vperm.xlu0 %5750, %v4651
  %v5752 = vpop.permute.xlu0 %5751
  %5755 = vset.pattern.permute.xlu0 1
  %5756 = vperm.xlu0 %5755, %v4652
  %v5757 = vpop.permute.xlu0 %5756
  %5760 = vset.pattern.permute.xlu0 1
  %5761 = vperm.xlu0 %5760, %v4653
  %v5762 = vpop.permute.xlu0 %5761
  %5765 = vset.pattern.permute.xlu0 1
  %5766 = vperm.xlu0 %5765, %v4654
  %v5767 = vpop.permute.xlu0 %5766
  %5770 = vset.pattern.permute.xlu0 1
  %5771 = vperm.xlu0 %5770, %v4655
  %v5772 = vpop.permute.xlu0 %5771
  %5775 = vset.pattern.permute.xlu0 1
  %5776 = vperm.xlu0 %5775, %v4656
  %v5777 = vpop.permute.xlu0 %5776
  %5780 = vset.pattern.permute.xlu0 1
  %5781 = vperm.xlu0 %5780, %v4657
  %v5782 = vpop.permute.xlu0 %5781
  %5785 = vset.pattern.permute.xlu0 1
  %5786 = vperm.xlu0 %5785, %v4658
  %v5787 = vpop.permute.xlu0 %5786
  %5790 = vset.pattern.permute.xlu0 1
  %5791 = vperm.xlu0 %5790, %v4659
  %v5792 = vpop.permute.xlu0 %5791
  %5795 = vset.pattern.permute.xlu0 1
  %5796 = vperm.xlu0 %5795, %v4660
  %v5797 = vpop.permute.xlu0 %5796
  %5800 = vset.pattern.permute.xlu0 1
  %5801 = vperm.xlu0 %5800, %v4661
  %v5802 = vpop.permute.xlu0 %5801
  %5805 = vset.pattern.permute.xlu0 1
  %5806 = vperm.xlu0 %5805, %v4662
  %v5807 = vpop.permute.xlu0 %5806
  %5810 = vset.pattern.permute.xlu0 1
  %5811 = vperm.xlu0 %5810, %v4663
  %v5812 = vpop.permute.xlu0 %5811
  %5815 = vset.pattern.permute.xlu0 1
  %5816 = vperm.xlu0 %5815, %v4664
  %v5817 = vpop.permute.xlu0 %5816
  %5820 = vset.pattern.permute.xlu0 1
  %5821 = vperm.xlu0 %5820, %v4665
  %v5822 = vpop.permute.xlu0 %5821
  %5825 = vset.pattern.permute.xlu0 1
  %5826 = vperm.xlu0 %5825, %v4666
  %v5827 = vpop.permute.xlu0 %5826
  %5830 = vset.pattern.permute.xlu0 1
  %5831 = vperm.xlu0 %5830, %v4667
  %v5832 = vpop.permute.xlu0 %5831
  %5835 = vset.pattern.permute.xlu0 1
  %5836 = vperm.xlu0 %5835, %v4668
  %v5837 = vpop.permute.xlu0 %5836
  %5840 = vset.pattern.permute.xlu0 1
  %5841 = vperm.xlu0 %5840, %v4669
  %v5842 = vpop.permute.xlu0 %5841
  %5845 = vset.pattern.permute.xlu0 1
  %5846 = vperm.xlu0 %5845, %v4670
  %v5847 = vpop.permute.xlu0 %5846
  %5850 = vset.pattern.permute.xlu0 1
  %5851 = vperm.xlu0 %5850, %v4671
  %v5852 = vpop.permute.xlu0 %5851
  %5855 = vset.pattern.permute.xlu0 1
  %5856 = vperm.xlu0 %5855, %v4672
  %v5857 = vpop.permute.xlu0 %5856
  %5860 = vset.pattern.permute.xlu0 1
  %5861 = vperm.xlu0 %5860, %v4673
  %v5862 = vpop.permute.xlu0 %5861
  %5865 = vset.pattern.permute.xlu0 1
  %5866 = vperm.xlu0 %5865, %v4674
  %v5867 = vpop.permute.xlu0 %5866
  %5870 = vset.pattern.permute.xlu0 1
  %5871 = vperm.xlu0 %5870, %v4675
  %v5872 = vpop.permute.xlu0 %5871
  %5875 = vset.pattern.permute.xlu0 1
  %5876 = vperm.xlu0 %5875, %v4676
  %v5877 = vpop.permute.xlu0 %5876
  %5880 = vset.pattern.permute.xlu0 1
  %5881 = vperm.xlu0 %5880, %v4677
  %v5882 = vpop.permute.xlu0 %5881
  %5885 = vset.pattern.permute.xlu0 1
  %5886 = vperm.xlu0 %5885, %v4678
  %v5887 = vpop.permute.xlu0 %5886
  %5890 = vset.pattern.permute.xlu0 1
  %5891 = vperm.xlu0 %5890, %v4679
  %v5892 = vpop.permute.xlu0 %5891
  %5895 = vset.pattern.permute.xlu0 1
  %5896 = vperm.xlu0 %5895, %v4680
  %v5897 = vpop.permute.xlu0 %5896
  %5900 = vset.pattern.permute.xlu0 1
  %5901 = vperm.xlu0 %5900, %v4681
  %v5902 = vpop.permute.xlu0 %5901
  %5905 = vset.pattern.permute.xlu0 1
  %5906 = vperm.xlu0 %5905, %v4682
  %v5907 = vpop.permute.xlu0 %5906
  %5910 = vset.pattern.permute.xlu0 1
  %5911 = vperm.xlu0 %5910, %v4683
  %v5912 = vpop.permute.xlu0 %5911
  %5915 = vset.pattern.permute.xlu0 1
  %5916 = vperm.xlu0 %5915, %v4684
  %v5917 = vpop.permute.xlu0 %5916
  %5920 = vset.pattern.permute.xlu0 1
  %5921 = vperm.xlu0 %5920, %v4685
  %v5922 = vpop.permute.xlu0 %5921
  %5925 = vset.pattern.permute.xlu0 1
  %5926 = vperm.xlu0 %5925, %v4686
  %v5927 = vpop.permute.xlu0 %5926
  %5930 = vset.pattern.permute.xlu0 1
  %5931 = vperm.xlu0 %5930, %v4687
  %v5932 = vpop.permute.xlu0 %5931
  %5935 = vset.pattern.permute.xlu0 1
  %5936 = vperm.xlu0 %5935, %v4688
  %v5937 = vpop.permute.xlu0 %5936
  %5940 = vset.pattern.permute.xlu0 1
  %5941 = vperm.xlu0 %5940, %v4689
  %v5942 = vpop.permute.xlu0 %5941
  %5945 = vset.pattern.permute.xlu0 1
  %5946 = vperm.xlu0 %5945, %v4690
  %v5947 = vpop.permute.xlu0 %5946
  %5950 = vset.pattern.permute.xlu0 1
  %5951 = vperm.xlu0 %5950, %v4691
  %v5952 = vpop.permute.xlu0 %5951
  %5955 = vset.pattern.permute.xlu0 1
  %5956 = vperm.xlu0 %5955, %v4692
  %v5957 = vpop.permute.xlu0 %5956
  %5960 = vset.pattern.permute.xlu0 1
  %5961 = vperm.xlu0 %5960, %v4693
  %v5962 = vpop.permute.xlu0 %5961
  %5965 = vset.pattern.permute.xlu0 1
  %5966 = vperm.xlu0 %5965, %v4694
  %v5967 = vpop.permute.xlu0 %5966
  %5970 = vset.pattern.permute.xlu0 1
  %5971 = vperm.xlu0 %5970, %v4695
  %v5972 = vpop.permute.xlu0 %5971
  %5975 = vset.pattern.permute.xlu0 1
  %5976 = vperm.xlu0 %5975, %v4696
  %v5977 = vpop.permute.xlu0 %5976
  %5980 = vset.pattern.permute.xlu0 1
  %5981 = vperm.xlu0 %5980, %v4697
  %v5982 = vpop.permute.xlu0 %5981
  %5985 = vset.pattern.permute.xlu0 1
  %5986 = vperm.xlu0 %5985, %v4698
  %v5987 = vpop.permute.xlu0 %5986
  %5990 = vset.pattern.permute.xlu0 1
  %5991 = vperm.xlu0 %5990, %v4699
  %v5992 = vpop.permute.xlu0 %5991
  %5995 = vset.pattern.permute.xlu0 1
  %5996 = vperm.xlu0 %5995, %v4700
  %v5997 = vpop.permute.xlu0 %5996
  %6000 = vset.pattern.permute.xlu0 1
  %6001 = vperm.xlu0 %6000, %v4701
  %v6002 = vpop.permute.xlu0 %6001
  %6005 = vset.pattern.permute.xlu0 1
  %6006 = vperm.xlu0 %6005, %v4702
  %v6007 = vpop.permute.xlu0 %6006
  %6010 = vset.pattern.permute.xlu0 1
  %6011 = vperm.xlu0 %6010, %v4703
  %v6012 = vpop.permute.xlu0 %6011
  %6015 = vset.pattern.permute.xlu0 1
  %6016 = vperm.xlu0 %6015, %v4704
  %v6017 = vpop.permute.xlu0 %6016
  %6020 = vset.pattern.permute.xlu0 1
  %6021 = vperm.xlu0 %6020, %v4705
  %v6022 = vpop.permute.xlu0 %6021
  %6025 = vset.pattern.permute.xlu0 1
  %6026 = vperm.xlu0 %6025, %v4706
  %v6027 = vpop.permute.xlu0 %6026
  %6030 = vset.pattern.permute.xlu0 1
  %6031 = vperm.xlu0 %6030, %v4707
  %v6032 = vpop.permute.xlu0 %6031
  %6035 = vset.pattern.permute.xlu0 1
  %6036 = vperm.xlu0 %6035, %v4708
  %v6037 = vpop.permute.xlu0 %6036
  %6040 = vset.pattern.permute.xlu0 1
  %6041 = vperm.xlu0 %6040, %v4709
  %v6042 = vpop.permute.xlu0 %6041
  %6045 = vset.pattern.permute.xlu0 1
  %6046 = vperm.xlu0 %6045, %v4710
  %v6047 = vpop.permute.xlu0 %6046
  %6050 = vset.pattern.permute.xlu0 1
  %6051 = vperm.xlu0 %6050, %v4711
  %v6052 = vpop.permute.xlu0 %6051
  %6055 = vset.pattern.permute.xlu0 1
  %6056 = vperm.xlu0 %6055, %v4712
  %v6057 = vpop.permute.xlu0 %6056
  %6060 = vset.pattern.permute.xlu0 1
  %6061 = vperm.xlu0 %6060, %v4713
  %v6062 = vpop.permute.xlu0 %6061
  %v6064 = vadd.f32 %v5434, %v5617
  %v6065 = vadd.f32 %v5435, %v5617
  %v6066 = vadd.f32 %v5436, %v5622
  %v6067 = vadd.f32 %v5437, %v5622
  %v6068 = vadd.f32 %v5438, %v5627
  %v6069 = vadd.f32 %v5439, %v5627
  %v6070 = vadd.f32 %v5440, %v5632
  %v6071 = vadd.f32 %v5441, %v5632
  %v6072 = vadd.f32 %v5442, %v5637
  %v6073 = vadd.f32 %v5443, %v5637
  %v6074 = vadd.f32 %v5444, %v5642
  %v6075 = vadd.f32 %v5445, %v5642
  %v6076 = vadd.f32 %v5446, %v5647
  %v6077 = vadd.f32 %v5447, %v5647
  %v6078 = vadd.f32 %v5448, %v5652
  %v6079 = vadd.f32 %v5449, %v5652
  %v6080 = vadd.f32 %v5450, %v5657
  %v6081 = vadd.f32 %v5451, %v5657
  %v6082 = vadd.f32 %v5452, %v5662
  %v6083 = vadd.f32 %v5453, %v5662
  %v6084 = vadd.f32 %v5454, %v5667
  %v6085 = vadd.f32 %v5455, %v5667
  %v6086 = vadd.f32 %v5456, %v5672
  %v6087 = vadd.f32 %v5457, %v5672
  %v6088 = vadd.f32 %v5458, %v5677
  %v6089 = vadd.f32 %v5459, %v5677
  %v6090 = vadd.f32 %v5460, %v5682
  %v6091 = vadd.f32 %v5461, %v5682
  %v6092 = vadd.f32 %v5462, %v5687
  %v6093 = vadd.f32 %v5463, %v5687
  %v6094 = vadd.f32 %v5464, %v5692
  %v6095 = vadd.f32 %v5465, %v5692
  %v6096 = vadd.f32 %v5466, %v5697
  %v6097 = vadd.f32 %v5467, %v5697
  %v6098 = vadd.f32 %v5468, %v5702
  %v6099 = vadd.f32 %v5469, %v5702
  %v6100 = vadd.f32 %v5470, %v5707
  %v6101 = vadd.f32 %v5471, %v5707
  %v6102 = vadd.f32 %v5472, %v5712
  %v6103 = vadd.f32 %v5473, %v5712
  %v6104 = vadd.f32 %v5474, %v5717
  %v6105 = vadd.f32 %v5475, %v5717
  %v6106 = vadd.f32 %v5476, %v5722
  %v6107 = vadd.f32 %v5477, %v5722
  %v6108 = vadd.f32 %v5478, %v5727
  %v6109 = vadd.f32 %v5479, %v5727
  %v6110 = vadd.f32 %v5480, %v5732
  %v6111 = vadd.f32 %v5481, %v5732
  %v6112 = vadd.f32 %v5482, %v5737
  %v6113 = vadd.f32 %v5483, %v5737
  %v6114 = vadd.f32 %v5484, %v5742
  %v6115 = vadd.f32 %v5485, %v5742
  %v6116 = vadd.f32 %v5486, %v5747
  %v6117 = vadd.f32 %v5487, %v5747
  %v6118 = vadd.f32 %v5488, %v5752
  %v6119 = vadd.f32 %v5489, %v5752
  %v6120 = vadd.f32 %v5490, %v5757
  %v6121 = vadd.f32 %v5491, %v5757
  %v6122 = vadd.f32 %v5492, %v5762
  %v6123 = vadd.f32 %v5493, %v5762
  %v6124 = vadd.f32 %v5494, %v5767
  %v6125 = vadd.f32 %v5495, %v5767
  %v6126 = vadd.f32 %v5496, %v5772
  %v6127 = vadd.f32 %v5497, %v5772
  %v6128 = vadd.f32 %v5498, %v5777
  %v6129 = vadd.f32 %v5499, %v5777
  %v6130 = vadd.f32 %v5500, %v5782
  %v6131 = vadd.f32 %v5501, %v5782
  %v6132 = vadd.f32 %v5502, %v5787
  %v6133 = vadd.f32 %v5503, %v5787
  %v6134 = vadd.f32 %v5504, %v5792
  %v6135 = vadd.f32 %v5505, %v5792
  %v6136 = vadd.f32 %v5506, %v5797
  %v6137 = vadd.f32 %v5507, %v5797
  %v6138 = vadd.f32 %v5508, %v5802
  %v6139 = vadd.f32 %v5509, %v5802
  %v6140 = vadd.f32 %v5510, %v5807
  %v6141 = vadd.f32 %v5511, %v5807
  %v6142 = vadd.f32 %v5512, %v5812
  %v6143 = vadd.f32 %v5513, %v5812
  %v6144 = vadd.f32 %v5514, %v5817
  %v6145 = vadd.f32 %v5515, %v5817
  %v6146 = vadd.f32 %v5516, %v5822
  %v6147 = vadd.f32 %v5517, %v5822
  %v6148 = vadd.f32 %v5518, %v5827
  %v6149 = vadd.f32 %v5519, %v5827
  %v6150 = vadd.f32 %v5520, %v5832
  %v6151 = vadd.f32 %v5521, %v5832
  %v6152 = vadd.f32 %v5522, %v5837
  %v6153 = vadd.f32 %v5523, %v5837
  %v6154 = vadd.f32 %v5524, %v5842
  %v6155 = vadd.f32 %v5525, %v5842
  %v6156 = vadd.f32 %v5526, %v5847
  %v6157 = vadd.f32 %v5527, %v5847
  %v6158 = vadd.f32 %v5528, %v5852
  %v6159 = vadd.f32 %v5529, %v5852
  %v6160 = vadd.f32 %v5530, %v5857
  %v6161 = vadd.f32 %v5531, %v5857
  %v6162 = vadd.f32 %v5532, %v5862
  %v6163 = vadd.f32 %v5533, %v5862
  %v6164 = vadd.f32 %v5534, %v5867
  %v6165 = vadd.f32 %v5535, %v5867
  %v6166 = vadd.f32 %v5536, %v5872
  %v6167 = vadd.f32 %v5537, %v5872
  %v6168 = vadd.f32 %v5538, %v5877
  %v6169 = vadd.f32 %v5539, %v5877
  %v6170 = vadd.f32 %v5540, %v5882
  %v6171 = vadd.f32 %v5541, %v5882
  %v6172 = vadd.f32 %v5542, %v5887
  %v6173 = vadd.f32 %v5543, %v5887
  %v6174 = vadd.f32 %v5544, %v5892
  %v6175 = vadd.f32 %v5545, %v5892
  %v6176 = vadd.f32 %v5546, %v5897
  %v6177 = vadd.f32 %v5547, %v5897
  %v6178 = vadd.f32 %v5548, %v5902
  %v6179 = vadd.f32 %v5549, %v5902
  %v6180 = vadd.f32 %v5550, %v5907
  %v6181 = vadd.f32 %v5551, %v5907
  %v6182 = vadd.f32 %v5552, %v5912
  %v6183 = vadd.f32 %v5553, %v5912
  %v6184 = vadd.f32 %v5554, %v5917
  %v6185 = vadd.f32 %v5555, %v5917
  %v6186 = vadd.f32 %v5556, %v5922
  %v6187 = vadd.f32 %v5557, %v5922
  %v6188 = vadd.f32 %v5558, %v5927
  %v6189 = vadd.f32 %v5559, %v5927
  %v6190 = vadd.f32 %v5560, %v5932
  %v6191 = vadd.f32 %v5561, %v5932
  %v6192 = vadd.f32 %v5562, %v5937
  %v6193 = vadd.f32 %v5563, %v5937
  %v6194 = vadd.f32 %v5564, %v5942
  %v6195 = vadd.f32 %v5565, %v5942
  %v6196 = vadd.f32 %v5566, %v5947
  %v6197 = vadd.f32 %v5567, %v5947
  %v6198 = vadd.f32 %v5568, %v5952
  %v6199 = vadd.f32 %v5569, %v5952
  %v6200 = vadd.f32 %v5570, %v5957
  %v6201 = vadd.f32 %v5571, %v5957
  %v6202 = vadd.f32 %v5572, %v5962
  %v6203 = vadd.f32 %v5573, %v5962
  %v6204 = vadd.f32 %v5574, %v5967
  %v6205 = vadd.f32 %v5575, %v5967
  %v6206 = vadd.f32 %v5576, %v5972
  %v6207 = vadd.f32 %v5577, %v5972
  %v6208 = vadd.f32 %v5578, %v5977
  %v6209 = vadd.f32 %v5579, %v5977
  %v6210 = vadd.f32 %v5580, %v5982
  %v6211 = vadd.f32 %v5581, %v5982
  %v6212 = vadd.f32 %v5582, %v5987
  %v6213 = vadd.f32 %v5583, %v5987
  %v6214 = vadd.f32 %v5584, %v5992
  %v6215 = vadd.f32 %v5585, %v5992
  %v6216 = vadd.f32 %v5586, %v5997
  %v6217 = vadd.f32 %v5587, %v5997
  %v6218 = vadd.f32 %v5588, %v6002
  %v6219 = vadd.f32 %v5589, %v6002
  %v6220 = vadd.f32 %v5590, %v6007
  %v6221 = vadd.f32 %v5591, %v6007
  %v6222 = vadd.f32 %v5592, %v6012
  %v6223 = vadd.f32 %v5593, %v6012
  %v6224 = vadd.f32 %v5594, %v6017
  %v6225 = vadd.f32 %v5595, %v6017
  %v6226 = vadd.f32 %v5596, %v6022
  %v6227 = vadd.f32 %v5597, %v6022
  %v6228 = vadd.f32 %v5598, %v6027
  %v6229 = vadd.f32 %v5599, %v6027
  %v6230 = vadd.f32 %v5600, %v6032
  %v6231 = vadd.f32 %v5601, %v6032
  %v6232 = vadd.f32 %v5602, %v6037
  %v6233 = vadd.f32 %v5603, %v6037
  %v6234 = vadd.f32 %v5604, %v6042
  %v6235 = vadd.f32 %v5605, %v6042
  %v6236 = vadd.f32 %v5606, %v6047
  %v6237 = vadd.f32 %v5607, %v6047
  %v6238 = vadd.f32 %v5608, %v6052
  %v6239 = vadd.f32 %v5609, %v6052
  %v6240 = vadd.f32 %v5610, %v6057
  %v6241 = vadd.f32 %v5611, %v6057
  %v6242 = vadd.f32 %v5612, %v6062
  %v6243 = vadd.f32 %v5613, %v6062
  %6244 = vst [vmem:[%s4] sm:$0xff] %v6064
  %6245 = vst.msk [vmem:[%s4 + $0x8] sm:$0xff] %vm3363, %v6065
  %6246 = vst [vmem:[%s4 + $0x10] sm:$0xff] %v6066
  %6247 = vst.msk [vmem:[%s4 + $0x18] sm:$0xff] %vm3363, %v6067
  %6248 = vst [vmem:[%s4 + $0x20] sm:$0xff] %v6068
  %6249 = vst.msk [vmem:[%s4 + $0x28] sm:$0xff] %vm3363, %v6069
  %6250 = vst [vmem:[%s4 + $0x30] sm:$0xff] %v6070
  %6251 = vst.msk [vmem:[%s4 + $0x38] sm:$0xff] %vm3363, %v6071
  %6252 = vst [vmem:[%s4 + $0x40] sm:$0xff] %v6072
  %6253 = vst.msk [vmem:[%s4 + $0x48] sm:$0xff] %vm3363, %v6073
  %6254 = vst [vmem:[%s4 + $0x50] sm:$0xff] %v6074
  %6255 = vst.msk [vmem:[%s4 + $0x58] sm:$0xff] %vm3363, %v6075
  %6256 = vst [vmem:[%s4 + $0x60] sm:$0xff] %v6076
  %6257 = vst.msk [vmem:[%s4 + $0x68] sm:$0xff] %vm3363, %v6077
  %6258 = vst [vmem:[%s4 + $0x70] sm:$0xff] %v6078
  %6259 = vst.msk [vmem:[%s4 + $0x78] sm:$0xff] %vm3363, %v6079
  %6260 = vst [vmem:[%s4 + $0x80] sm:$0xff] %v6080
  %6261 = vst.msk [vmem:[%s4 + $0x88] sm:$0xff] %vm3363, %v6081
  %6262 = vst [vmem:[%s4 + $0x90] sm:$0xff] %v6082
  %6263 = vst.msk [vmem:[%s4 + $0x98] sm:$0xff] %vm3363, %v6083
  %6264 = vst [vmem:[%s4 + $0xa0] sm:$0xff] %v6084
  %6265 = vst.msk [vmem:[%s4 + $0xa8] sm:$0xff] %vm3363, %v6085
  %6266 = vst [vmem:[%s4 + $0xb0] sm:$0xff] %v6086
  %6267 = vst.msk [vmem:[%s4 + $0xb8] sm:$0xff] %vm3363, %v6087
  %6268 = vst [vmem:[%s4 + $0xc0] sm:$0xff] %v6088
  %6269 = vst.msk [vmem:[%s4 + $0xc8] sm:$0xff] %vm3363, %v6089
  %6270 = vst [vmem:[%s4 + $0xd0] sm:$0xff] %v6090
  %6271 = vst.msk [vmem:[%s4 + $0xd8] sm:$0xff] %vm3363, %v6091
  %6272 = vst [vmem:[%s4 + $0xe0] sm:$0xff] %v6092
  %6273 = vst.msk [vmem:[%s4 + $0xe8] sm:$0xff] %vm3363, %v6093
  %6274 = vst [vmem:[%s4 + $0xf0] sm:$0xff] %v6094
  %6275 = vst.msk [vmem:[%s4 + $0xf8] sm:$0xff] %vm3363, %v6095
  %6276 = vst [vmem:[%s4 + $0x100] sm:$0xff] %v6096
  %6277 = vst.msk [vmem:[%s4 + $0x108] sm:$0xff] %vm3363, %v6097
  %6278 = vst [vmem:[%s4 + $0x110] sm:$0xff] %v6098
  %6279 = vst.msk [vmem:[%s4 + $0x118] sm:$0xff] %vm3363, %v6099
  %6280 = vst [vmem:[%s4 + $0x120] sm:$0xff] %v6100
  %6281 = vst.msk [vmem:[%s4 + $0x128] sm:$0xff] %vm3363, %v6101
  %6282 = vst [vmem:[%s4 + $0x130] sm:$0xff] %v6102
  %6283 = vst.msk [vmem:[%s4 + $0x138] sm:$0xff] %vm3363, %v6103
  %6284 = vst [vmem:[%s4 + $0x140] sm:$0xff] %v6104
  %6285 = vst.msk [vmem:[%s4 + $0x148] sm:$0xff] %vm3363, %v6105
  %6286 = vst [vmem:[%s4 + $0x150] sm:$0xff] %v6106
  %6287 = vst.msk [vmem:[%s4 + $0x158] sm:$0xff] %vm3363, %v6107
  %6288 = vst [vmem:[%s4 + $0x160] sm:$0xff] %v6108
  %6289 = vst.msk [vmem:[%s4 + $0x168] sm:$0xff] %vm3363, %v6109
  %6290 = vst [vmem:[%s4 + $0x170] sm:$0xff] %v6110
  %6291 = vst.msk [vmem:[%s4 + $0x178] sm:$0xff] %vm3363, %v6111
  %6292 = vst [vmem:[%s4 + $0x180] sm:$0xff] %v6112
  %6293 = vst.msk [vmem:[%s4 + $0x188] sm:$0xff] %vm3363, %v6113
  %6294 = vst [vmem:[%s4 + $0x190] sm:$0xff] %v6114
  %6295 = vst.msk [vmem:[%s4 + $0x198] sm:$0xff] %vm3363, %v6115
  %6296 = vst [vmem:[%s4 + $0x1a0] sm:$0xff] %v6116
  %6297 = vst.msk [vmem:[%s4 + $0x1a8] sm:$0xff] %vm3363, %v6117
  %6298 = vst [vmem:[%s4 + $0x1b0] sm:$0xff] %v6118
  %6299 = vst.msk [vmem:[%s4 + $0x1b8] sm:$0xff] %vm3363, %v6119
  %6300 = vst [vmem:[%s4 + $0x1c0] sm:$0xff] %v6120
  %6301 = vst.msk [vmem:[%s4 + $0x1c8] sm:$0xff] %vm3363, %v6121
  %6302 = vst [vmem:[%s4 + $0x1d0] sm:$0xff] %v6122
  %6303 = vst.msk [vmem:[%s4 + $0x1d8] sm:$0xff] %vm3363, %v6123
  %6304 = vst [vmem:[%s4 + $0x1e0] sm:$0xff] %v6124
  %6305 = vst.msk [vmem:[%s4 + $0x1e8] sm:$0xff] %vm3363, %v6125
  %6306 = vst [vmem:[%s4 + $0x1f0] sm:$0xff] %v6126
  %6307 = vst.msk [vmem:[%s4 + $0x1f8] sm:$0xff] %vm3363, %v6127
  %6308 = vst [vmem:[%s4 + $0x200] sm:$0xff] %v6128
  %6309 = vst.msk [vmem:[%s4 + $0x208] sm:$0xff] %vm3363, %v6129
  %6310 = vst [vmem:[%s4 + $0x210] sm:$0xff] %v6130
  %6311 = vst.msk [vmem:[%s4 + $0x218] sm:$0xff] %vm3363, %v6131
  %6312 = vst [vmem:[%s4 + $0x220] sm:$0xff] %v6132
  %6313 = vst.msk [vmem:[%s4 + $0x228] sm:$0xff] %vm3363, %v6133
  %6314 = vst [vmem:[%s4 + $0x230] sm:$0xff] %v6134
  %6315 = vst.msk [vmem:[%s4 + $0x238] sm:$0xff] %vm3363, %v6135
  %6316 = vst [vmem:[%s4 + $0x240] sm:$0xff] %v6136
  %6317 = vst.msk [vmem:[%s4 + $0x248] sm:$0xff] %vm3363, %v6137
  %6318 = vst [vmem:[%s4 + $0x250] sm:$0xff] %v6138
  %6319 = vst.msk [vmem:[%s4 + $0x258] sm:$0xff] %vm3363, %v6139
  %6320 = vst [vmem:[%s4 + $0x260] sm:$0xff] %v6140
  %6321 = vst.msk [vmem:[%s4 + $0x268] sm:$0xff] %vm3363, %v6141
  %6322 = vst [vmem:[%s4 + $0x270] sm:$0xff] %v6142
  %6323 = vst.msk [vmem:[%s4 + $0x278] sm:$0xff] %vm3363, %v6143
  %6324 = vst [vmem:[%s4 + $0x280] sm:$0xff] %v6144
  %6325 = vst.msk [vmem:[%s4 + $0x288] sm:$0xff] %vm3363, %v6145
  %6326 = vst [vmem:[%s4 + $0x290] sm:$0xff] %v6146
  %6327 = vst.msk [vmem:[%s4 + $0x298] sm:$0xff] %vm3363, %v6147
  %6328 = vst [vmem:[%s4 + $0x2a0] sm:$0xff] %v6148
  %6329 = vst.msk [vmem:[%s4 + $0x2a8] sm:$0xff] %vm3363, %v6149
  %6330 = vst [vmem:[%s4 + $0x2b0] sm:$0xff] %v6150
  %6331 = vst.msk [vmem:[%s4 + $0x2b8] sm:$0xff] %vm3363, %v6151
  %6332 = vst [vmem:[%s4 + $0x2c0] sm:$0xff] %v6152
  %6333 = vst.msk [vmem:[%s4 + $0x2c8] sm:$0xff] %vm3363, %v6153
  %6334 = vst [vmem:[%s4 + $0x2d0] sm:$0xff] %v6154
  %6335 = vst.msk [vmem:[%s4 + $0x2d8] sm:$0xff] %vm3363, %v6155
  %6336 = vst [vmem:[%s4 + $0x2e0] sm:$0xff] %v6156
  %6337 = vst.msk [vmem:[%s4 + $0x2e8] sm:$0xff] %vm3363, %v6157
  %6338 = vst [vmem:[%s4 + $0x2f0] sm:$0xff] %v6158
  %6339 = vst.msk [vmem:[%s4 + $0x2f8] sm:$0xff] %vm3363, %v6159
  %6340 = vst [vmem:[%s4 + $0x300] sm:$0xff] %v6160
  %6341 = vst.msk [vmem:[%s4 + $0x308] sm:$0xff] %vm3363, %v6161
  %6342 = vst [vmem:[%s4 + $0x310] sm:$0xff] %v6162
  %6343 = vst.msk [vmem:[%s4 + $0x318] sm:$0xff] %vm3363, %v6163
  %6344 = vst [vmem:[%s4 + $0x320] sm:$0xff] %v6164
  %6345 = vst.msk [vmem:[%s4 + $0x328] sm:$0xff] %vm3363, %v6165
  %6346 = vst [vmem:[%s4 + $0x330] sm:$0xff] %v6166
  %6347 = vst.msk [vmem:[%s4 + $0x338] sm:$0xff] %vm3363, %v6167
  %6348 = vst [vmem:[%s4 + $0x340] sm:$0xff] %v6168
  %6349 = vst.msk [vmem:[%s4 + $0x348] sm:$0xff] %vm3363, %v6169
  %6350 = vst [vmem:[%s4 + $0x350] sm:$0xff] %v6170
  %6351 = vst.msk [vmem:[%s4 + $0x358] sm:$0xff] %vm3363, %v6171
  %6352 = vst [vmem:[%s4 + $0x360] sm:$0xff] %v6172
  %6353 = vst.msk [vmem:[%s4 + $0x368] sm:$0xff] %vm3363, %v6173
  %6354 = vst [vmem:[%s4 + $0x370] sm:$0xff] %v6174
  %6355 = vst.msk [vmem:[%s4 + $0x378] sm:$0xff] %vm3363, %v6175
  %6356 = vst [vmem:[%s4 + $0x380] sm:$0xff] %v6176
  %6357 = vst.msk [vmem:[%s4 + $0x388] sm:$0xff] %vm3363, %v6177
  %6358 = vst [vmem:[%s4 + $0x390] sm:$0xff] %v6178
  %6359 = vst.msk [vmem:[%s4 + $0x398] sm:$0xff] %vm3363, %v6179
  %6360 = vst [vmem:[%s4 + $0x3a0] sm:$0xff] %v6180
  %6361 = vst.msk [vmem:[%s4 + $0x3a8] sm:$0xff] %vm3363, %v6181
  %6362 = vst [vmem:[%s4 + $0x3b0] sm:$0xff] %v6182
  %6363 = vst.msk [vmem:[%s4 + $0x3b8] sm:$0xff] %vm3363, %v6183
  %6364 = vst [vmem:[%s4 + $0x3c0] sm:$0xff] %v6184
  %6365 = vst.msk [vmem:[%s4 + $0x3c8] sm:$0xff] %vm3363, %v6185
  %6366 = vst [vmem:[%s4 + $0x3d0] sm:$0xff] %v6186
  %6367 = vst.msk [vmem:[%s4 + $0x3d8] sm:$0xff] %vm3363, %v6187
  %6368 = vst [vmem:[%s4 + $0x3e0] sm:$0xff] %v6188
  %6369 = vst.msk [vmem:[%s4 + $0x3e8] sm:$0xff] %vm3363, %v6189
  %6370 = vst [vmem:[%s4 + $0x3f0] sm:$0xff] %v6190
  %6371 = vst.msk [vmem:[%s4 + $0x3f8] sm:$0xff] %vm3363, %v6191
  %6372 = vst [vmem:[%s4 + $0x400] sm:$0xff] %v6192
  %6373 = vst.msk [vmem:[%s4 + $0x408] sm:$0xff] %vm3363, %v6193
  %6374 = vst [vmem:[%s4 + $0x410] sm:$0xff] %v6194
  %6375 = vst.msk [vmem:[%s4 + $0x418] sm:$0xff] %vm3363, %v6195
  %6376 = vst [vmem:[%s4 + $0x420] sm:$0xff] %v6196
  %6377 = vst.msk [vmem:[%s4 + $0x428] sm:$0xff] %vm3363, %v6197
  %6378 = vst [vmem:[%s4 + $0x430] sm:$0xff] %v6198
  %6379 = vst.msk [vmem:[%s4 + $0x438] sm:$0xff] %vm3363, %v6199
  %6380 = vst [vmem:[%s4 + $0x440] sm:$0xff] %v6200
  %6381 = vst.msk [vmem:[%s4 + $0x448] sm:$0xff] %vm3363, %v6201
  %6382 = vst [vmem:[%s4 + $0x450] sm:$0xff] %v6202
  %6383 = vst.msk [vmem:[%s4 + $0x458] sm:$0xff] %vm3363, %v6203
  %6384 = vst [vmem:[%s4 + $0x460] sm:$0xff] %v6204
  %6385 = vst.msk [vmem:[%s4 + $0x468] sm:$0xff] %vm3363, %v6205
  %6386 = vst [vmem:[%s4 + $0x470] sm:$0xff] %v6206
  %6387 = vst.msk [vmem:[%s4 + $0x478] sm:$0xff] %vm3363, %v6207
  %6388 = vst [vmem:[%s4 + $0x480] sm:$0xff] %v6208
  %6389 = vst.msk [vmem:[%s4 + $0x488] sm:$0xff] %vm3363, %v6209
  %6390 = vst [vmem:[%s4 + $0x490] sm:$0xff] %v6210
  %6391 = vst.msk [vmem:[%s4 + $0x498] sm:$0xff] %vm3363, %v6211
  %6392 = vst [vmem:[%s4 + $0x4a0] sm:$0xff] %v6212
  %6393 = vst.msk [vmem:[%s4 + $0x4a8] sm:$0xff] %vm3363, %v6213
  %6394 = vst [vmem:[%s4 + $0x4b0] sm:$0xff] %v6214
  %6395 = vst.msk [vmem:[%s4 + $0x4b8] sm:$0xff] %vm3363, %v6215
  %6396 = vst [vmem:[%s4 + $0x4c0] sm:$0xff] %v6216
  %6397 = vst.msk [vmem:[%s4 + $0x4c8] sm:$0xff] %vm3363, %v6217
  %6398 = vst [vmem:[%s4 + $0x4d0] sm:$0xff] %v6218
  %6399 = vst.msk [vmem:[%s4 + $0x4d8] sm:$0xff] %vm3363, %v6219
  %6400 = vst [vmem:[%s4 + $0x4e0] sm:$0xff] %v6220
  %6401 = vst.msk [vmem:[%s4 + $0x4e8] sm:$0xff] %vm3363, %v6221
  %6402 = vst [vmem:[%s4 + $0x4f0] sm:$0xff] %v6222
  %6403 = vst.msk [vmem:[%s4 + $0x4f8] sm:$0xff] %vm3363, %v6223
  %6404 = vst [vmem:[%s4 + $0x500] sm:$0xff] %v6224
  %6405 = vst.msk [vmem:[%s4 + $0x508] sm:$0xff] %vm3363, %v6225
  %6406 = vst [vmem:[%s4 + $0x510] sm:$0xff] %v6226
  %6407 = vst.msk [vmem:[%s4 + $0x518] sm:$0xff] %vm3363, %v6227
  %6408 = vst [vmem:[%s4 + $0x520] sm:$0xff] %v6228
  %6409 = vst.msk [vmem:[%s4 + $0x528] sm:$0xff] %vm3363, %v6229
  %6410 = vst [vmem:[%s4 + $0x530] sm:$0xff] %v6230
  %6411 = vst.msk [vmem:[%s4 + $0x538] sm:$0xff] %vm3363, %v6231
  %6412 = vst [vmem:[%s4 + $0x540] sm:$0xff] %v6232
  %6413 = vst.msk [vmem:[%s4 + $0x548] sm:$0xff] %vm3363, %v6233
  %6414 = vst [vmem:[%s4 + $0x550] sm:$0xff] %v6234
  %6415 = vst.msk [vmem:[%s4 + $0x558] sm:$0xff] %vm3363, %v6235
  %6416 = vst [vmem:[%s4 + $0x560] sm:$0xff] %v6236
  %6417 = vst.msk [vmem:[%s4 + $0x568] sm:$0xff] %vm3363, %v6237
  %6418 = vst [vmem:[%s4 + $0x570] sm:$0xff] %v6238
  %6419 = vst.msk [vmem:[%s4 + $0x578] sm:$0xff] %vm3363, %v6239
  %6420 = vst [vmem:[%s4 + $0x580] sm:$0xff] %v6240
  %6421 = vst.msk [vmem:[%s4 + $0x588] sm:$0xff] %vm3363, %v6241
  %6422 = vst [vmem:[%s4 + $0x590] sm:$0xff] %v6242
  %6423 = vst.msk [vmem:[%s4 + $0x598] sm:$0xff] %vm3363, %v6243
  // Predicated region
  $region18: #{tpu_custom_call.1} parent=0 // pred_check
    _
  $region19: #{tpu_custom_call.1} parent=0 // pred_check_branch
    %6425 = sbr.rel (0) target = $region21
  $region20: #{tpu_custom_call.1} parent=0 // pred_region
    _
  $region21: #{tpu_custom_call.1} parent=0 // pred_fallthru
    _
  // Predicated region
  $region22: #{tpu_custom_call.1} parent=0 // pred_check
    _
  $region23: #{tpu_custom_call.1} parent=0 // pred_check_branch
    %6427 = sbr.rel (0) target = $region25
  $region24: #{tpu_custom_call.1} parent=0 // pred_region
    _
  $region25: #{tpu_custom_call.1} parent=0 // pred_fallthru
    _

</llo_original>
